<compile_context>
chip_gen: v6e
topology: v6e:2x2x1
jax: 0.10.0
libtpu: 0.0.40
codegen_flags: <defaults>
</compile_context>

<pallas_src>
import functools

import jax
import jax.numpy as jnp
from jax.experimental import pallas as pl
from jax.experimental.pallas import tpu as pltpu

_VMEM_LIMIT = 48 * 1024 * 1024  # safe on v5e/v6e/v7x


def _round_up(x, m):
    return ((x + m - 1) // m) * m


def _pick_tile(dim, target, align):
    """Largest tile <= target that divides dim and respects (8,128) alignment.
    Falls back to the full dim (always a legal block) when no divisor exists."""
    if dim <= target:
        return dim
    t = (target // align) * align
    while t >= align:
        if dim % t == 0:
            return t
        t -= align
    return dim


def _gelu(y):
    # tanh-approx GELU (Mosaic-safe); HF exact-erf GELU differs at the ~1e-3 level.
    return 0.5 * y * (1.0 + jnp.tanh(0.7978845608028654 * (y + 0.044715 * y * y * y)))


# --------------------------- Linear (+ optional GELU) -------------------------

def _linear_kernel(x_ref, w_ref, b_ref, o_ref, *, activation):
    """K kept whole: single MXU pass, no accumulator scratch, no revisit."""
    y = jnp.dot(x_ref[...].astype(jnp.bfloat16), w_ref[...],
                preferred_element_type=jnp.float32)
    y = y + b_ref[...].astype(jnp.float32)
    if activation == "gelu":
        y = _gelu(y)
    o_ref[...] = y.astype(o_ref.dtype)


def _linear_ksplit_kernel(x_ref, w_ref, b_ref, o_ref, acc_ref, *, activation):
    """K-blocked variant (only used when K is too large for one block)."""
    @pl.when(pl.program_id(2) == 0)
    def _():
        acc_ref[...] = jnp.zeros_like(acc_ref)

    acc_ref[...] += jnp.dot(x_ref[...].astype(jnp.bfloat16), w_ref[...],
                            preferred_element_type=jnp.float32)

    @pl.when(pl.program_id(2) == pl.num_programs(2) - 1)
    def _():
        y = acc_ref[...] + b_ref[...].astype(jnp.float32)
        if activation == "gelu":
            y = _gelu(y)
        o_ref[...] = y.astype(o_ref.dtype)


def linear(x, w, b, activation=None, out_dtype=None):
    """y = x @ w + b.  w stored [in, out] bf16; f32 accumulation on the MXU."""
    M, K = x.shape
    N = w.shape[1]
    out_dtype = out_dtype if out_dtype is not None else x.dtype

    # Defensive lane padding (the vocab head is already padded at init time).
    Np = N
    if N > 128 and N % 128 != 0:
        Np = _round_up(N, 128)
        w = jnp.pad(w, ((0, 0), (0, Np - N)))
        b = jnp.pad(b, (0, Np - N))

    tm = _pick_tile(M, 256, 8)
    tn = _pick_tile(Np, 512, 128)
    b2d = b.reshape(1, Np)

    if K <= 1024:
        out = pl.pallas_call(
            functools.partial(_linear_kernel, activation=activation),
            out_shape=jax.ShapeDtypeStruct((M, Np), out_dtype),
            grid=(M // tm, Np // tn),
            in_specs=[pl.BlockSpec((tm, K), lambda i, j: (i, 0)),
                      pl.BlockSpec((K, tn), lambda i, j: (0, j)),
                      pl.BlockSpec((1, tn), lambda i, j: (0, j))],
            out_specs=pl.BlockSpec((tm, tn), lambda i, j: (i, j)),
            compiler_params=pltpu.CompilerParams(
                dimension_semantics=("parallel", "parallel"),
                vmem_limit_bytes=_VMEM_LIMIT),
        )(x, w, b2d)
    else:
        tk = _pick_tile(K, 512, 128)
        out = pl.pallas_call(
            functools.partial(_linear_ksplit_kernel, activation=activation),
            out_shape=jax.ShapeDtypeStruct((M, Np), out_dtype),
            grid=(M // tm, Np // tn, K // tk),
            in_specs=[pl.BlockSpec((tm, tk), lambda i, j, k: (i, k)),
                      pl.BlockSpec((tk, tn), lambda i, j, k: (k, j)),
                      pl.BlockSpec((1, tn), lambda i, j, k: (0, j))],
            out_specs=pl.BlockSpec((tm, tn), lambda i, j, k: (i, j)),
            scratch_shapes=[pltpu.VMEM((tm, tn), jnp.float32)],
            compiler_params=pltpu.CompilerParams(
                dimension_semantics=("parallel", "parallel", "arbitrary"),
                vmem_limit_bytes=_VMEM_LIMIT),
        )(x, w, b2d)

    return out if Np == N else out[:, :N]


# ----------------- fused Linear + residual-add + LayerNorm --------------------

def _linear_add_ln_kernel(x_ref, w_ref, b_ref, r_ref, g_ref, be_ref, o_ref, *, eps):
    y = jnp.dot(x_ref[...].astype(jnp.bfloat16), w_ref[...],
                preferred_element_type=jnp.float32)
    y = y + b_ref[...].astype(jnp.float32) + r_ref[...].astype(jnp.float32)
    mean = jnp.mean(y, axis=-1, keepdims=True)
    var = jnp.mean((y - mean) ** 2, axis=-1, keepdims=True)
    y = (y - mean) * jax.lax.rsqrt(var + eps)
    o_ref[...] = (y * g_ref[...] + be_ref[...]).astype(o_ref.dtype)


def linear_add_ln(x, w, b, residual, gamma, beta, eps=1e-12, out_dtype=None):
    """LayerNorm(x @ w + b + residual).  K=N=hidden kept whole (fits one block)."""
    M, K = x.shape
    N = w.shape[1]
    out_dtype = out_dtype if out_dtype is not None else x.dtype
    tm = _pick_tile(M, 256, 8)
    return pl.pallas_call(
        functools.partial(_linear_add_ln_kernel, eps=eps),
        out_shape=jax.ShapeDtypeStruct((M, N), out_dtype),
        grid=(M // tm,),
        in_specs=[pl.BlockSpec((tm, K), lambda i: (i, 0)),
                  pl.BlockSpec((K, N), lambda i: (0, 0)),
                  pl.BlockSpec((1, N), lambda i: (0, 0)),
                  pl.BlockSpec((tm, N), lambda i: (i, 0)),
                  pl.BlockSpec((1, N), lambda i: (0, 0)),
                  pl.BlockSpec((1, N), lambda i: (0, 0))],
        out_specs=pl.BlockSpec((tm, N), lambda i: (i, 0)),
        compiler_params=pltpu.CompilerParams(
            dimension_semantics=("parallel",), vmem_limit_bytes=_VMEM_LIMIT),
    )(x, w, b.reshape(1, N), residual, gamma.reshape(1, N), beta.reshape(1, N))


# --------- fused FFN: GELU(x@w1+b1)@w2 + b2 + residual, then LayerNorm --------

def _ffn_kernel(x_ref, w1_ref, b1_ref, w2_ref, b2_ref, g_ref, be_ref, o_ref,
                acc_ref, *, eps):
    @pl.when(pl.program_id(1) == 0)
    def _():
        acc_ref[...] = jnp.zeros_like(acc_ref)

    t = jnp.dot(x_ref[...].astype(jnp.bfloat16), w1_ref[...],
                preferred_element_type=jnp.float32)
    t = _gelu(t + b1_ref[...].astype(jnp.float32))
    acc_ref[...] += jnp.dot(t.astype(jnp.bfloat16), w2_ref[...],
                            preferred_element_type=jnp.float32)

    @pl.when(pl.program_id(1) == pl.num_programs(1) - 1)
    def _():
        # residual is the FFN input itself (still VMEM-resident: same block across k)
        y = acc_ref[...] + b2_ref[...].astype(jnp.float32) + x_ref[...].astype(jnp.float32)
        mean = jnp.mean(y, axis=-1, keepdims=True)
        var = jnp.mean((y - mean) ** 2, axis=-1, keepdims=True)
        y = (y - mean) * jax.lax.rsqrt(var + eps)
        o_ref[...] = (y * g_ref[...] + be_ref[...]).astype(o_ref.dtype)


def ffn_fused(x, w1, b1, w2, b2, gamma, beta, eps=1e-12, out_dtype=None):
    """The (B*S, intermediate) activation never leaves VMEM."""
    M, H = x.shape
    I = w1.shape[1]
    out_dtype = out_dtype if out_dtype is not None else x.dtype
    tm = _pick_tile(M, 256, 8)
    tki = _pick_tile(I, 512, 128)
    return pl.pallas_call(
        functools.partial(_ffn_kernel, eps=eps),
        out_shape=jax.ShapeDtypeStruct((M, H), out_dtype),
        grid=(M // tm, I // tki),
        in_specs=[pl.BlockSpec((tm, H), lambda i, k: (i, 0)),
                  pl.BlockSpec((H, tki), lambda i, k: (0, k)),
                  pl.BlockSpec((1, tki), lambda i, k: (0, k)),
                  pl.BlockSpec((tki, H), lambda i, k: (k, 0)),
                  pl.BlockSpec((1, H), lambda i, k: (0, 0)),
                  pl.BlockSpec((1, H), lambda i, k: (0, 0)),
                  pl.BlockSpec((1, H), lambda i, k: (0, 0))],
        out_specs=pl.BlockSpec((tm, H), lambda i, k: (i, 0)),
        scratch_shapes=[pltpu.VMEM((tm, H), jnp.float32)],
        compiler_params=pltpu.CompilerParams(
            dimension_semantics=("parallel", "arbitrary"),
            vmem_limit_bytes=_VMEM_LIMIT),
    )(x, w1, b1.reshape(1, I), w2, b2.reshape(1, H),
      gamma.reshape(1, H), beta.reshape(1, H))


# --------------------------- LayerNorm (no residual) --------------------------

def _layernorm_kernel(x_ref, g_ref, b_ref, o_ref, *, eps):
    x = x_ref[...].astype(jnp.float32)
    mean = jnp.mean(x, axis=-1, keepdims=True)
    var = jnp.mean((x - mean) ** 2, axis=-1, keepdims=True)
    y = (x - mean) * jax.lax.rsqrt(var + eps)
    o_ref[...] = (y * g_ref[...] + b_ref[...]).astype(o_ref.dtype)


def layernorm(x, gamma, beta, eps=1e-12):
    M, H = x.shape
    tm = _pick_tile(M, 512, 8)
    return pl.pallas_call(
        functools.partial(_layernorm_kernel, eps=eps),
        out_shape=jax.ShapeDtypeStruct((M, H), x.dtype),
        grid=(M // tm,),
        in_specs=[pl.BlockSpec((tm, H), lambda i: (i, 0)),
                  pl.BlockSpec((1, H), lambda i: (0, 0)),
                  pl.BlockSpec((1, H), lambda i: (0, 0))],
        out_specs=pl.BlockSpec((tm, H), lambda i: (i, 0)),
        compiler_params=pltpu.CompilerParams(
            dimension_semantics=("parallel",), vmem_limit_bytes=_VMEM_LIMIT),
    )(x, gamma.reshape(1, H), beta.reshape(1, H))


# ----------------------- head-group batched attention -------------------------

def _attention_kernel(*args, hpg, d_head, scale, has_bias):
    if has_bias:
        q_ref, k_ref, v_ref, bias_ref, o_ref = args
        bias = bias_ref[0].astype(jnp.float32)                  # (1, S)
    else:
        q_ref, k_ref, v_ref, o_ref = args
        bias = None
    qg = q_ref[0]                                               # (S, hpg*d_head) bf16
    kg = k_ref[0]
    vg = v_ref[0]
    outs = []
    for h in range(hpg):                                        # hpg is small (1-2)
        sl = slice(h * d_head, (h + 1) * d_head)
        q = (qg[:, sl] * scale).astype(jnp.bfloat16)            # scale folded into q
        k = kg[:, sl].astype(jnp.bfloat16)
        v = vg[:, sl].astype(jnp.bfloat16)
        s = jax.lax.dot_general(q, k, (((1,), (1,)), ((), ())),
                                preferred_element_type=jnp.float32)
        if bias is not None:
            s = s + bias                                        # broadcast over query rows
        s = s - jnp.max(s, axis=-1, keepdims=True)
        p = jnp.exp(s)
        p = p * pl.reciprocal(jnp.sum(p, axis=-1, keepdims=True), approx=True)
        outs.append(jnp.dot(p.astype(jnp.bfloat16), v,
                            preferred_element_type=jnp.float32))
    # lane-dense (S, 128)-wide store
    o_ref[0] = jnp.concatenate(outs, axis=-1).astype(o_ref.dtype)


def attention(qkv, mask_bias, n_heads):
    """qkv: [B, S, 3H] fused projections; mask_bias: [B, 1, S] additive bias or None."""
    # TODO(synk): kv-blocked flash-style online softmax for S >= 1024 (bounded VMEM).
    B, S, H3 = qkv.shape
    H = H3 // 3
    d_head = H // n_heads
    scale = 1.0 / (d_head ** 0.5)

    # 128-lane head groups (real BERT: d_head=64 -> 2 heads/group).
    if d_head >= 128:
        assert d_head % 128 == 0, "d_head must be a multiple of 128 when >= 128"
        hpg = 1
    else:
        assert 128 % d_head == 0 and n_heads % (128 // d_head) == 0, \
            "need 128-lane-alignable head groups"  # TODO(synk): masked fallback
        hpg = 128 // d_head
    gw = hpg * d_head
    n_groups = n_heads // hpg
    has_bias = mask_bias is not None

    in_specs = [pl.BlockSpec((1, S, gw), lambda b, g: (b, 0, g)),
                pl.BlockSpec((1, S, gw), lambda b, g: (b, 0, n_groups + g)),
                pl.BlockSpec((1, S, gw), lambda b, g: (b, 0, 2 * n_groups + g))]
    args = [qkv, qkv, qkv]
    if has_bias:
        in_specs.append(pl.BlockSpec((1, 1, S), lambda b, g: (b, 0, 0)))
        args.append(mask_bias)

    return pl.pallas_call(
        functools.partial(_attention_kernel, hpg=hpg, d_head=d_head,
                          scale=scale, has_bias=has_bias),
        out_shape=jax.ShapeDtypeStruct((B, S, H), qkv.dtype),
        grid=(B, n_groups),
        in_specs=in_specs,
        out_specs=pl.BlockSpec((1, S, gw), lambda b, g: (b, 0, g)),
        compiler_params=pltpu.CompilerParams(
            dimension_semantics=("parallel", "parallel"),
            vmem_limit_bytes=_VMEM_LIMIT),
    )(*args)


# --------------------------- model glue (plain JAX) ---------------------------

def transformer_layer(x, p, mask_bias, n_heads):
    B, S, H = x.shape
    xf = x.reshape(B * S, H)
    qkv = linear(xf, p["w_qkv"], p["b_qkv"], out_dtype=jnp.bfloat16)     # [B*S, 3H]
    ctx = attention(qkv.reshape(B, S, 3 * H), mask_bias, n_heads)        # [B, S, H]
    h1 = linear_add_ln(ctx.reshape(B * S, H), p["wo"], p["bo"],          # out-proj+res+LN
                       xf, p["ln1_g"], p["ln1_b"], out_dtype=jnp.bfloat16)
    h2 = ffn_fused(h1, p["w1"], p["b1"], p["w2"], p["b2"],               # fused FFN+res+LN
                   p["ln2_g"], p["ln2_b"], out_dtype=jnp.bfloat16)
    return h2.reshape(B, S, H)


def combine_bert_forward(params, src, src_mask, n_heads):
    B, S = src.shape
    vocab = params["word_emb"].shape[0]
    H = params["word_emb"].shape[1]

    # encoder embeddings (gather is glue, plain JAX) + LN; embeddings stored bf16
    emb = jnp.take(params["word_emb"], src, axis=0) + params["pos_emb"][:S][None]
    x = layernorm(emb.reshape(B * S, H),
                  params["emb_ln_g"], params["emb_ln_b"]).reshape(B, S, H)

    # encoder block with BERT-style additive mask bias (1 = attend, 0 = pad)
    enc_bias = ((1.0 - src_mask.astype(jnp.float32)) * -1e9).reshape(B, 1, S)
    x = transformer_layer(x, params["enc_layer"], enc_bias, n_heads)   # last_hidden_state

    # decoder(x): transformer block over encoder hidden states, no mask (matches spec)
    x = transformer_layer(x, params["dec_layer"], None, n_heads)

    # final Linear(decoder.hidden_size -> encoder.vocab_size); weight padded at init
    logits = linear(x.reshape(B * S, H), params["out_w"], params["out_b"],
                    out_dtype=jnp.float32)
    return logits[:, :vocab].reshape(B, S, vocab)


def init_params(key, vocab, hidden, intermediate, max_pos):
    ks = iter(jax.random.split(key, 64))

    def w(shape, dtype=jnp.bfloat16):   # matmul weights stored bf16 (MXU-native)
        return (0.02 * jax.random.normal(next(ks), shape)).astype(dtype)

    zeros = lambda s: jnp.zeros(s, jnp.float32)
    ones = lambda s: jnp.ones(s, jnp.float32)

    def layer():
        return dict(
            w_qkv=w((hidden, 3 * hidden)), b_qkv=zeros((3 * hidden,)),
            wo=w((hidden, hidden)), bo=zeros((hidden,)),
            ln1_g=ones((hidden,)), ln1_b=zeros((hidden,)),
            w1=w((hidden, intermediate)), b1=zeros((intermediate,)),
            w2=w((intermediate, hidden)), b2=zeros((hidden,)),
            ln2_g=ones((hidden,)), ln2_b=zeros((hidden,)),
        )

    # vocab head padded to a multiple of 256 lanes; padded columns are zero and
    # sliced off after the kernel (keeps tn 128-aligned at real vocab sizes).
    v_pad = _round_up(vocab, 256)
    out_w = jnp.pad(w((hidden, vocab)), ((0, 0), (0, v_pad - vocab)))
    out_b = zeros((v_pad,))

    return dict(
        word_emb=w((vocab, hidden)),                 # bf16 (LN re-normalizes in f32)
        pos_emb=w((max_pos, hidden)),
        emb_ln_g=ones((hidden,)), emb_ln_b=zeros((hidden,)),
        enc_layer=layer(),
        dec_layer=layer(),
        out_w=out_w, out_b=out_b,
    )


if __name__ == "__main__":
    # Small but layout-realistic shapes: d_head=64 (like BERT) -> 128-lane head pairs.
    B, S, H, NH, I, V, MAXP = 2, 16, 128, 2, 256, 384, 32
    key = jax.random.PRNGKey(0)
    kp, ktok = jax.random.split(key)
    params = init_params(kp, V, H, I, MAXP)

    src = jax.random.randint(ktok, (B, S), 0, V, dtype=jnp.int32)
    src_mask = jnp.ones((B, S), jnp.int32).at[:, -2:].set(0)   # last 2 tokens padded

    fwd = jax.jit(combine_bert_forward, static_argnums=3)
    out = fwd(params, src, src_mask, NH)
    jax.block_until_ready(out)
    assert out.shape == (B, S, V) and out.dtype == jnp.float32
    print("KERNEL_OK")
</pallas_src>

<mosaic_0001>
module attributes {stable_mosaic.version = 11 : i64} {
  func.func @_linear_kernel(%arg0: i32, %arg1: i32, %arg2: memref<32x128xbf16, #tpu.memory_space<vmem>>, %arg3: memref<128x384xbf16, #tpu.memory_space<vmem>>, %arg4: memref<1x384xf32, #tpu.memory_space<vmem>>, %arg5: memref<32x384xbf16, #tpu.memory_space<vmem>>) attributes {dimension_semantics = [#tpu.dimension_semantics<parallel>, #tpu.dimension_semantics<parallel>], iteration_bounds = array<i64: 1, 1>, scalar_prefetch = 0 : i64, scratch_operands = 0 : i64, tpu.core_type = #tpu.core_type<tc>, window_params = [{transform_indices = @transform_0, window_bounds = array<i64: 32, 128>}, {transform_indices = @transform_1, window_bounds = array<i64: 128, 384>}, {transform_indices = @transform_2, window_bounds = array<i64: 1, 384>}, {transform_indices = @transform_3, window_bounds = array<i64: 32, 384>}]} {
    %c0 = arith.constant 0 : index
    %c0_0 = arith.constant 0 : index
    %0 = vector.load %arg2[%c0, %c0_0] : memref<32x128xbf16, #tpu.memory_space<vmem>>, vector<32x128xbf16>
    %c0_1 = arith.constant 0 : index
    %c0_2 = arith.constant 0 : index
    %1 = vector.load %arg3[%c0_1, %c0_2] : memref<128x384xbf16, #tpu.memory_space<vmem>>, vector<128x384xbf16>
    %cst = arith.constant dense<0.000000e+00> : vector<32x384xf32>
    %2 = tpu.matmul %0, %1, %cst {dimension_numbers = #tpu.dot_dimension_numbers<[1], [0], [0], [1], [0, 0, 1, 1], [], []>} : vector<32x128xbf16>, vector<128x384xbf16>, vector<32x384xf32> -> vector<32x384xf32>
    %c0_3 = arith.constant 0 : index
    %c0_4 = arith.constant 0 : index
    %3 = vector.load %arg4[%c0_3, %c0_4] : memref<1x384xf32, #tpu.memory_space<vmem>>, vector<1x384xf32>
    %4 = vector.broadcast %3 : vector<1x384xf32> to vector<32x384xf32>
    %5 = arith.addf %2, %4 : vector<32x384xf32>
    %6 = arith.truncf %5 : vector<32x384xf32> to vector<32x384xbf16>
    %c0_5 = arith.constant 0 : index
    %c0_6 = arith.constant 0 : index
    %7 = vector.load %arg5[%c0_5, %c0_6] : memref<32x384xbf16, #tpu.memory_space<vmem>>, vector<32x384xbf16>
    tpu.vector_store %arg5[%c0_5, %c0_6], %6 {strides = array<i32>} : memref<32x384xbf16, #tpu.memory_space<vmem>>, vector<32x384xbf16>,
    return
  }
  func.func @transform_0(%arg0: i32, %arg1: i32) -> (i32, i32) {
    %c0_i32 = arith.constant 0 : i32
    %c0_i32_0 = arith.constant 0 : i32
    return %arg0, %c0_i32 : i32, i32
  }
  func.func @transform_1(%arg0: i32, %arg1: i32) -> (i32, i32) {
    %c0_i32 = arith.constant 0 : i32
    %c0_i32_0 = arith.constant 0 : i32
    return %c0_i32, %arg1 : i32, i32
  }
  func.func @transform_2(%arg0: i32, %arg1: i32) -> (i32, i32) {
    %c0_i32 = arith.constant 0 : i32
    %c0_i32_0 = arith.constant 0 : i32
    return %c0_i32, %arg1 : i32, i32
  }
  func.func @transform_3(%arg0: i32, %arg1: i32) -> (i32, i32) {
    %c0_i32 = arith.constant 0 : i32
    return %arg0, %arg1 : i32, i32
  }
}

module attributes {stable_mosaic.version = 11 : i64} {
  func.func @_layernorm_kernel(%arg0: i32, %arg1: memref<32x128xbf16, #tpu.memory_space<vmem>>, %arg2: memref<1x128xf32, #tpu.memory_space<vmem>>, %arg3: memref<1x128xf32, #tpu.memory_space<vmem>>, %arg4: memref<32x128xbf16, #tpu.memory_space<vmem>>) attributes {dimension_semantics = [#tpu.dimension_semantics<parallel>], iteration_bounds = array<i64: 1>, scalar_prefetch = 0 : i64, scratch_operands = 0 : i64, tpu.core_type = #tpu.core_type<tc>, window_params = [{transform_indices = @transform_0, window_bounds = array<i64: 32, 128>}, {pipeline_mode = #tpu.pipeline_mode<synchronous>, transform_indices = @transform_1, window_bounds = array<i64: 1, 128>}, {pipeline_mode = #tpu.pipeline_mode<synchronous>, transform_indices = @transform_2, window_bounds = array<i64: 1, 128>}, {transform_indices = @transform_3, window_bounds = array<i64: 32, 128>}]} {
    %c0 = arith.constant 0 : index
    %c0_0 = arith.constant 0 : index
    %0 = vector.load %arg1[%c0, %c0_0] : memref<32x128xbf16, #tpu.memory_space<vmem>>, vector<32x128xbf16>
    %1 = arith.extf %0 : vector<32x128xbf16> to vector<32x128xf32>
    %cst = arith.constant dense<0.000000e+00> : vector<32xf32>
    %2 = vector.multi_reduction <add>, %1, %cst [1] : vector<32x128xf32> to vector<32xf32>
    %3 = vector.shape_cast %2 : vector<32xf32> to vector<32x1xf32>
    %cst_1 = arith.constant 1.280000e+02 : f32
    %4 = vector.broadcast %cst_1 : f32 to vector<32x1xf32>
    %5 = arith.divf %3, %4 : vector<32x1xf32>
    %6 = vector.broadcast %5 : vector<32x1xf32> to vector<32x128xf32>
    %7 = arith.subf %1, %6 : vector<32x128xf32>
    %8 = arith.mulf %7, %7 : vector<32x128xf32>
    %cst_2 = arith.constant dense<0.000000e+00> : vector<32xf32>
    %9 = vector.multi_reduction <add>, %8, %cst_2 [1] : vector<32x128xf32> to vector<32xf32>
    %10 = vector.shape_cast %9 : vector<32xf32> to vector<32x1xf32>
    %cst_3 = arith.constant 1.280000e+02 : f32
    %11 = vector.broadcast %cst_3 : f32 to vector<32x1xf32>
    %12 = arith.divf %10, %11 : vector<32x1xf32>
    %13 = vector.broadcast %5 : vector<32x1xf32> to vector<32x128xf32>
    %14 = arith.subf %1, %13 : vector<32x128xf32>
    %cst_4 = arith.constant 9.99999996E-13 : f32
    %15 = vector.broadcast %cst_4 : f32 to vector<32x1xf32>
    %16 = arith.addf %12, %15 : vector<32x1xf32>
    %17 = math.rsqrt %16 : vector<32x1xf32>
    %18 = vector.broadcast %17 : vector<32x1xf32> to vector<32x128xf32>
    %19 = arith.mulf %14, %18 : vector<32x128xf32>
    %c0_5 = arith.constant 0 : index
    %c0_6 = arith.constant 0 : index
    %20 = vector.load %arg2[%c0_5, %c0_6] : memref<1x128xf32, #tpu.memory_space<vmem>>, vector<1x128xf32>
    %21 = vector.broadcast %20 : vector<1x128xf32> to vector<32x128xf32>
    %22 = arith.mulf %19, %21 : vector<32x128xf32>
    %c0_7 = arith.constant 0 : index
    %c0_8 = arith.constant 0 : index
    %23 = vector.load %arg3[%c0_7, %c0_8] : memref<1x128xf32, #tpu.memory_space<vmem>>, vector<1x128xf32>
    %24 = vector.broadcast %23 : vector<1x128xf32> to vector<32x128xf32>
    %25 = arith.addf %22, %24 : vector<32x128xf32>
    %26 = arith.truncf %25 : vector<32x128xf32> to vector<32x128xbf16>
    %c0_9 = arith.constant 0 : index
    %c0_10 = arith.constant 0 : index
    %27 = vector.load %arg4[%c0_9, %c0_10] : memref<32x128xbf16, #tpu.memory_space<vmem>>, vector<32x128xbf16>
    tpu.vector_store %arg4[%c0_9, %c0_10], %26 {strides = array<i32>} : memref<32x128xbf16, #tpu.memory_space<vmem>>, vector<32x128xbf16>,
    return
  }
  func.func @transform_0(%arg0: i32) -> (i32, i32) {
    %c0_i32 = arith.constant 0 : i32
    %c0_i32_0 = arith.constant 0 : i32
    return %arg0, %c0_i32 : i32, i32
  }
  func.func @transform_1(%arg0: i32) -> (i32, i32) {
    %c0_i32 = arith.constant 0 : i32
    %c0_i32_0 = arith.constant 0 : i32
    %c0_i32_1 = arith.constant 0 : i32
    return %c0_i32, %c0_i32_0 : i32, i32
  }
  func.func @transform_2(%arg0: i32) -> (i32, i32) {
    %c0_i32 = arith.constant 0 : i32
    %c0_i32_0 = arith.constant 0 : i32
    %c0_i32_1 = arith.constant 0 : i32
    return %c0_i32, %c0_i32_0 : i32, i32
  }
  func.func @transform_3(%arg0: i32) -> (i32, i32) {
    %c0_i32 = arith.constant 0 : i32
    %c0_i32_0 = arith.constant 0 : i32
    return %arg0, %c0_i32 : i32, i32
  }
}

module attributes {stable_mosaic.version = 11 : i64} {
  func.func @_attention_kernel(%arg0: i32, %arg1: i32, %arg2: memref<1x16x128xbf16, #tpu.memory_space<vmem>>, %arg3: memref<1x16x128xbf16, #tpu.memory_space<vmem>>, %arg4: memref<1x16x128xbf16, #tpu.memory_space<vmem>>, %arg5: memref<1x1x16xf32, #tpu.memory_space<vmem>>, %arg6: memref<1x16x128xbf16, #tpu.memory_space<vmem>>) attributes {dimension_semantics = [#tpu.dimension_semantics<parallel>, #tpu.dimension_semantics<parallel>], iteration_bounds = array<i64: 2, 1>, scalar_prefetch = 0 : i64, scratch_operands = 0 : i64, tpu.core_type = #tpu.core_type<tc>, window_params = [{transform_indices = @transform_0, window_bounds = array<i64: 1, 16, 128>}, {transform_indices = @transform_1, window_bounds = array<i64: 1, 16, 128>}, {transform_indices = @transform_2, window_bounds = array<i64: 1, 16, 128>}, {transform_indices = @transform_3, window_bounds = array<i64: 1, 1, 16>}, {transform_indices = @transform_4, window_bounds = array<i64: 1, 16, 128>}]} {
    %c0 = arith.constant 0 : index
    %c0_0 = arith.constant 0 : index
    %c0_1 = arith.constant 0 : index
    %0 = vector.load %arg5[%c0, %c0_0, %c0_1] : memref<1x1x16xf32, #tpu.memory_space<vmem>>, vector<1x1x16xf32>
    %1 = vector.shape_cast %0 : vector<1x1x16xf32> to vector<1x16xf32>
    %c0_2 = arith.constant 0 : index
    %c0_3 = arith.constant 0 : index
    %c0_4 = arith.constant 0 : index
    %2 = vector.load %arg2[%c0_2, %c0_3, %c0_4] : memref<1x16x128xbf16, #tpu.memory_space<vmem>>, vector<1x16x128xbf16>
    %3 = vector.shape_cast %2 : vector<1x16x128xbf16> to vector<16x128xbf16>
    %c0_5 = arith.constant 0 : index
    %c0_6 = arith.constant 0 : index
    %c0_7 = arith.constant 0 : index
    %4 = vector.load %arg3[%c0_5, %c0_6, %c0_7] : memref<1x16x128xbf16, #tpu.memory_space<vmem>>, vector<1x16x128xbf16>
    %5 = vector.shape_cast %4 : vector<1x16x128xbf16> to vector<16x128xbf16>
    %c0_8 = arith.constant 0 : index
    %c0_9 = arith.constant 0 : index
    %c0_10 = arith.constant 0 : index
    %6 = vector.load %arg4[%c0_8, %c0_9, %c0_10] : memref<1x16x128xbf16, #tpu.memory_space<vmem>>, vector<1x16x128xbf16>
    %7 = vector.shape_cast %6 : vector<1x16x128xbf16> to vector<16x128xbf16>
    %8 = vector.extract_strided_slice %3 {offsets = [0, 0], sizes = [16, 64], strides = [1, 1]} : vector<16x128xbf16> to vector<16x64xbf16>
    %cst = arith.constant 1.250000e-01 : bf16
    %9 = vector.broadcast %cst : bf16 to vector<16x64xbf16>
    %10 = arith.mulf %8, %9 : vector<16x64xbf16>
    %11 = vector.extract_strided_slice %5 {offsets = [0, 0], sizes = [16, 64], strides = [1, 1]} : vector<16x128xbf16> to vector<16x64xbf16>
    %12 = vector.extract_strided_slice %7 {offsets = [0, 0], sizes = [16, 64], strides = [1, 1]} : vector<16x128xbf16> to vector<16x64xbf16>
    %cst_11 = arith.constant dense<0.000000e+00> : vector<16x16xf32>
    %13 = tpu.matmul %10, %11, %cst_11 {dimension_numbers = #tpu.dot_dimension_numbers<[1], [1], [0], [0], [0, 0, 1, 0], [], []>} : vector<16x64xbf16>, vector<16x64xbf16>, vector<16x16xf32> -> vector<16x16xf32>
    %14 = vector.broadcast %1 : vector<1x16xf32> to vector<16x16xf32>
    %15 = arith.addf %13, %14 : vector<16x16xf32>
    %cst_12 = arith.constant dense<0xFF800000> : vector<16xf32>
    %16 = vector.multi_reduction <maximumf>, %15, %cst_12 [1] : vector<16x16xf32> to vector<16xf32>
    %17 = vector.shape_cast %16 : vector<16xf32> to vector<16x1xf32>
    %18 = vector.broadcast %17 : vector<16x1xf32> to vector<16x16xf32>
    %19 = arith.subf %15, %18 : vector<16x16xf32>
    %20 = math.exp %19 : vector<16x16xf32>
    %cst_13 = arith.constant dense<0.000000e+00> : vector<16xf32>
    %21 = vector.multi_reduction <add>, %20, %cst_13 [1] : vector<16x16xf32> to vector<16xf32>
    %22 = vector.shape_cast %21 : vector<16xf32> to vector<16x1xf32>
    %23 = tpu.reciprocal %22 {approx = true} : vector<16x1xf32> -> vector<16x1xf32>
    %24 = vector.broadcast %23 : vector<16x1xf32> to vector<16x16xf32>
    %25 = arith.mulf %20, %24 : vector<16x16xf32>
    %26 = arith.truncf %25 : vector<16x16xf32> to vector<16x16xbf16>
    %cst_14 = arith.constant dense<0.000000e+00> : vector<16x64xf32>
    %27 = tpu.matmul %26, %12, %cst_14 {dimension_numbers = #tpu.dot_dimension_numbers<[1], [0], [0], [1], [0, 0, 1, 1], [], []>} : vector<16x16xbf16>, vector<16x64xbf16>, vector<16x64xf32> -> vector<16x64xf32>
    %28 = vector.extract_strided_slice %3 {offsets = [0, 64], sizes = [16, 64], strides = [1, 1]} : vector<16x128xbf16> to vector<16x64xbf16>
    %cst_15 = arith.constant 1.250000e-01 : bf16
    %29 = vector.broadcast %cst_15 : bf16 to vector<16x64xbf16>
    %30 = arith.mulf %28, %29 : vector<16x64xbf16>
    %31 = vector.extract_strided_slice %5 {offsets = [0, 64], sizes = [16, 64], strides = [1, 1]} : vector<16x128xbf16> to vector<16x64xbf16>
    %32 = vector.extract_strided_slice %7 {offsets = [0, 64], sizes = [16, 64], strides = [1, 1]} : vector<16x128xbf16> to vector<16x64xbf16>
    %cst_16 = arith.constant dense<0.000000e+00> : vector<16x16xf32>
    %33 = tpu.matmul %30, %31, %cst_16 {dimension_numbers = #tpu.dot_dimension_numbers<[1], [1], [0], [0], [0, 0, 1, 0], [], []>} : vector<16x64xbf16>, vector<16x64xbf16>, vector<16x16xf32> -> vector<16x16xf32>
    %34 = vector.broadcast %1 : vector<1x16xf32> to vector<16x16xf32>
    %35 = arith.addf %33, %34 : vector<16x16xf32>
    %cst_17 = arith.constant dense<0xFF800000> : vector<16xf32>
    %36 = vector.multi_reduction <maximumf>, %35, %cst_17 [1] : vector<16x16xf32> to vector<16xf32>
    %37 = vector.shape_cast %36 : vector<16xf32> to vector<16x1xf32>
    %38 = vector.broadcast %37 : vector<16x1xf32> to vector<16x16xf32>
    %39 = arith.subf %35, %38 : vector<16x16xf32>
    %40 = math.exp %39 : vector<16x16xf32>
    %cst_18 = arith.constant dense<0.000000e+00> : vector<16xf32>
    %41 = vector.multi_reduction <add>, %40, %cst_18 [1] : vector<16x16xf32> to vector<16xf32>
    %42 = vector.shape_cast %41 : vector<16xf32> to vector<16x1xf32>
    %43 = tpu.reciprocal %42 {approx = true} : vector<16x1xf32> -> vector<16x1xf32>
    %44 = vector.broadcast %43 : vector<16x1xf32> to vector<16x16xf32>
    %45 = arith.mulf %40, %44 : vector<16x16xf32>
    %46 = arith.truncf %45 : vector<16x16xf32> to vector<16x16xbf16>
    %cst_19 = arith.constant dense<0.000000e+00> : vector<16x64xf32>
    %47 = tpu.matmul %46, %32, %cst_19 {dimension_numbers = #tpu.dot_dimension_numbers<[1], [0], [0], [1], [0, 0, 1, 1], [], []>} : vector<16x16xbf16>, vector<16x64xbf16>, vector<16x64xf32> -> vector<16x64xf32>
    %48 = tpu.concatenate %27, %47 in 1 : vector<16x64xf32>, vector<16x64xf32> -> vector<16x128xf32>
    %49 = arith.truncf %48 : vector<16x128xf32> to vector<16x128xbf16>
    %c0_20 = arith.constant 0 : index
    %c0_21 = arith.constant 0 : index
    %c0_22 = arith.constant 0 : index
    %50 = vector.load %arg6[%c0_20, %c0_21, %c0_22] : memref<1x16x128xbf16, #tpu.memory_space<vmem>>, vector<1x16x128xbf16>
    %51 = vector.shape_cast %50 : vector<1x16x128xbf16> to vector<16x128xbf16>
    %52 = vector.shape_cast %49 : vector<16x128xbf16> to vector<1x16x128xbf16>
    tpu.vector_store %arg6[%c0_20, %c0_21, %c0_22], %52 {strides = array<i32>} : memref<1x16x128xbf16, #tpu.memory_space<vmem>>, vector<1x16x128xbf16>,
    return
  }
  func.func @transform_0(%arg0: i32, %arg1: i32) -> (i32, i32, i32) {
    %c0_i32 = arith.constant 0 : i32
    %c0_i32_0 = arith.constant 0 : i32
    return %arg0, %c0_i32, %arg1 : i32, i32, i32
  }
  func.func @transform_1(%arg0: i32, %arg1: i32) -> (i32, i32, i32) {
    %c1_i32 = arith.constant 1 : i32
    %0 = arith.addi %c1_i32, %arg1 : i32
    %c0_i32 = arith.constant 0 : i32
    %c0_i32_0 = arith.constant 0 : i32
    return %arg0, %c0_i32, %0 : i32, i32, i32
  }
  func.func @transform_2(%arg0: i32, %arg1: i32) -> (i32, i32, i32) {
    %c2_i32 = arith.constant 2 : i32
    %0 = arith.addi %c2_i32, %arg1 : i32
    %c0_i32 = arith.constant 0 : i32
    %c0_i32_0 = arith.constant 0 : i32
    return %arg0, %c0_i32, %0 : i32, i32, i32
  }
  func.func @transform_3(%arg0: i32, %arg1: i32) -> (i32, i32, i32) {
    %c0_i32 = arith.constant 0 : i32
    %c0_i32_0 = arith.constant 0 : i32
    %c0_i32_1 = arith.constant 0 : i32
    return %arg0, %c0_i32, %c0_i32_0 : i32, i32, i32
  }
  func.func @transform_4(%arg0: i32, %arg1: i32) -> (i32, i32, i32) {
    %c0_i32 = arith.constant 0 : i32
    %c0_i32_0 = arith.constant 0 : i32
    return %arg0, %c0_i32, %arg1 : i32, i32, i32
  }
}

module attributes {stable_mosaic.version = 11 : i64} {
  func.func @_linear_add_ln_kernel(%arg0: i32, %arg1: memref<32x128xbf16, #tpu.memory_space<vmem>>, %arg2: memref<128x128xbf16, #tpu.memory_space<vmem>>, %arg3: memref<1x128xf32, #tpu.memory_space<vmem>>, %arg4: memref<32x128xbf16, #tpu.memory_space<vmem>>, %arg5: memref<1x128xf32, #tpu.memory_space<vmem>>, %arg6: memref<1x128xf32, #tpu.memory_space<vmem>>, %arg7: memref<32x128xbf16, #tpu.memory_space<vmem>>) attributes {dimension_semantics = [#tpu.dimension_semantics<parallel>], iteration_bounds = array<i64: 1>, scalar_prefetch = 0 : i64, scratch_operands = 0 : i64, tpu.core_type = #tpu.core_type<tc>, window_params = [{transform_indices = @transform_0, window_bounds = array<i64: 32, 128>}, {pipeline_mode = #tpu.pipeline_mode<synchronous>, transform_indices = @transform_1, window_bounds = array<i64: 128, 128>}, {pipeline_mode = #tpu.pipeline_mode<synchronous>, transform_indices = @transform_2, window_bounds = array<i64: 1, 128>}, {transform_indices = @transform_3, window_bounds = array<i64: 32, 128>}, {pipeline_mode = #tpu.pipeline_mode<synchronous>, transform_indices = @transform_4, window_bounds = array<i64: 1, 128>}, {pipeline_mode = #tpu.pipeline_mode<synchronous>, transform_indices = @transform_5, window_bounds = array<i64: 1, 128>}, {transform_indices = @transform_6, window_bounds = array<i64: 32, 128>}]} {
    %c0 = arith.constant 0 : index
    %c0_0 = arith.constant 0 : index
    %0 = vector.load %arg1[%c0, %c0_0] : memref<32x128xbf16, #tpu.memory_space<vmem>>, vector<32x128xbf16>
    %c0_1 = arith.constant 0 : index
    %c0_2 = arith.constant 0 : index
    %1 = vector.load %arg2[%c0_1, %c0_2] : memref<128x128xbf16, #tpu.memory_space<vmem>>, vector<128x128xbf16>
    %cst = arith.constant dense<0.000000e+00> : vector<32x128xf32>
    %2 = tpu.matmul %0, %1, %cst {dimension_numbers = #tpu.dot_dimension_numbers<[1], [0], [0], [1], [0, 0, 1, 1], [], []>} : vector<32x128xbf16>, vector<128x128xbf16>, vector<32x128xf32> -> vector<32x128xf32>
    %c0_3 = arith.constant 0 : index
    %c0_4 = arith.constant 0 : index
    %3 = vector.load %arg3[%c0_3, %c0_4] : memref<1x128xf32, #tpu.memory_space<vmem>>, vector<1x128xf32>
    %4 = vector.broadcast %3 : vector<1x128xf32> to vector<32x128xf32>
    %5 = arith.addf %2, %4 : vector<32x128xf32>
    %c0_5 = arith.constant 0 : index
    %c0_6 = arith.constant 0 : index
    %6 = vector.load %arg4[%c0_5, %c0_6] : memref<32x128xbf16, #tpu.memory_space<vmem>>, vector<32x128xbf16>
    %7 = arith.extf %6 : vector<32x128xbf16> to vector<32x128xf32>
    %8 = arith.addf %5, %7 : vector<32x128xf32>
    %cst_7 = arith.constant dense<0.000000e+00> : vector<32xf32>
    %9 = vector.multi_reduction <add>, %8, %cst_7 [1] : vector<32x128xf32> to vector<32xf32>
    %10 = vector.shape_cast %9 : vector<32xf32> to vector<32x1xf32>
    %cst_8 = arith.constant 1.280000e+02 : f32
    %11 = vector.broadcast %cst_8 : f32 to vector<32x1xf32>
    %12 = arith.divf %10, %11 : vector<32x1xf32>
    %13 = vector.broadcast %12 : vector<32x1xf32> to vector<32x128xf32>
    %14 = arith.subf %8, %13 : vector<32x128xf32>
    %15 = arith.mulf %14, %14 : vector<32x128xf32>
    %cst_9 = arith.constant dense<0.000000e+00> : vector<32xf32>
    %16 = vector.multi_reduction <add>, %15, %cst_9 [1] : vector<32x128xf32> to vector<32xf32>
    %17 = vector.shape_cast %16 : vector<32xf32> to vector<32x1xf32>
    %cst_10 = arith.constant 1.280000e+02 : f32
    %18 = vector.broadcast %cst_10 : f32 to vector<32x1xf32>
    %19 = arith.divf %17, %18 : vector<32x1xf32>
    %20 = vector.broadcast %12 : vector<32x1xf32> to vector<32x128xf32>
    %21 = arith.subf %8, %20 : vector<32x128xf32>
    %cst_11 = arith.constant 9.99999996E-13 : f32
    %22 = vector.broadcast %cst_11 : f32 to vector<32x1xf32>
    %23 = arith.addf %19, %22 : vector<32x1xf32>
    %24 = math.rsqrt %23 : vector<32x1xf32>
    %25 = vector.broadcast %24 : vector<32x1xf32> to vector<32x128xf32>
    %26 = arith.mulf %21, %25 : vector<32x128xf32>
    %c0_12 = arith.constant 0 : index
    %c0_13 = arith.constant 0 : index
    %27 = vector.load %arg5[%c0_12, %c0_13] : memref<1x128xf32, #tpu.memory_space<vmem>>, vector<1x128xf32>
    %28 = vector.broadcast %27 : vector<1x128xf32> to vector<32x128xf32>
    %29 = arith.mulf %26, %28 : vector<32x128xf32>
    %c0_14 = arith.constant 0 : index
    %c0_15 = arith.constant 0 : index
    %30 = vector.load %arg6[%c0_14, %c0_15] : memref<1x128xf32, #tpu.memory_space<vmem>>, vector<1x128xf32>
    %31 = vector.broadcast %30 : vector<1x128xf32> to vector<32x128xf32>
    %32 = arith.addf %29, %31 : vector<32x128xf32>
    %33 = arith.truncf %32 : vector<32x128xf32> to vector<32x128xbf16>
    %c0_16 = arith.constant 0 : index
    %c0_17 = arith.constant 0 : index
    %34 = vector.load %arg7[%c0_16, %c0_17] : memref<32x128xbf16, #tpu.memory_space<vmem>>, vector<32x128xbf16>
    tpu.vector_store %arg7[%c0_16, %c0_17], %33 {strides = array<i32>} : memref<32x128xbf16, #tpu.memory_space<vmem>>, vector<32x128xbf16>,
    return
  }
  func.func @transform_0(%arg0: i32) -> (i32, i32) {
    %c0_i32 = arith.constant 0 : i32
    %c0_i32_0 = arith.constant 0 : i32
    return %arg0, %c0_i32 : i32, i32
  }
  func.func @transform_1(%arg0: i32) -> (i32, i32) {
    %c0_i32 = arith.constant 0 : i32
    %c0_i32_0 = arith.constant 0 : i32
    %c0_i32_1 = arith.constant 0 : i32
    return %c0_i32, %c0_i32_0 : i32, i32
  }
  func.func @transform_2(%arg0: i32) -> (i32, i32) {
    %c0_i32 = arith.constant 0 : i32
    %c0_i32_0 = arith.constant 0 : i32
    %c0_i32_1 = arith.constant 0 : i32
    return %c0_i32, %c0_i32_0 : i32, i32
  }
  func.func @transform_3(%arg0: i32) -> (i32, i32) {
    %c0_i32 = arith.constant 0 : i32
    %c0_i32_0 = arith.constant 0 : i32
    return %arg0, %c0_i32 : i32, i32
  }
  func.func @transform_4(%arg0: i32) -> (i32, i32) {
    %c0_i32 = arith.constant 0 : i32
    %c0_i32_0 = arith.constant 0 : i32
    %c0_i32_1 = arith.constant 0 : i32
    return %c0_i32, %c0_i32_0 : i32, i32
  }
  func.func @transform_5(%arg0: i32) -> (i32, i32) {
    %c0_i32 = arith.constant 0 : i32
    %c0_i32_0 = arith.constant 0 : i32
    %c0_i32_1 = arith.constant 0 : i32
    return %c0_i32, %c0_i32_0 : i32, i32
  }
  func.func @transform_6(%arg0: i32) -> (i32, i32) {
    %c0_i32 = arith.constant 0 : i32
    %c0_i32_0 = arith.constant 0 : i32
    return %arg0, %c0_i32 : i32, i32
  }
}

module attributes {stable_mosaic.version = 11 : i64} {
  func.func @_attention_kernel(%arg0: i32, %arg1: i32, %arg2: memref<1x16x128xbf16, #tpu.memory_space<vmem>>, %arg3: memref<1x16x128xbf16, #tpu.memory_space<vmem>>, %arg4: memref<1x16x128xbf16, #tpu.memory_space<vmem>>, %arg5: memref<1x16x128xbf16, #tpu.memory_space<vmem>>) attributes {dimension_semantics = [#tpu.dimension_semantics<parallel>, #tpu.dimension_semantics<parallel>], iteration_bounds = array<i64: 2, 1>, scalar_prefetch = 0 : i64, scratch_operands = 0 : i64, tpu.core_type = #tpu.core_type<tc>, window_params = [{transform_indices = @transform_0, window_bounds = array<i64: 1, 16, 128>}, {transform_indices = @transform_1, window_bounds = array<i64: 1, 16, 128>}, {transform_indices = @transform_2, window_bounds = array<i64: 1, 16, 128>}, {transform_indices = @transform_3, window_bounds = array<i64: 1, 16, 128>}]} {
    %c0 = arith.constant 0 : index
    %c0_0 = arith.constant 0 : index
    %c0_1 = arith.constant 0 : index
    %0 = vector.load %arg2[%c0, %c0_0, %c0_1] : memref<1x16x128xbf16, #tpu.memory_space<vmem>>, vector<1x16x128xbf16>
    %1 = vector.shape_cast %0 : vector<1x16x128xbf16> to vector<16x128xbf16>
    %c0_2 = arith.constant 0 : index
    %c0_3 = arith.constant 0 : index
    %c0_4 = arith.constant 0 : index
    %2 = vector.load %arg3[%c0_2, %c0_3, %c0_4] : memref<1x16x128xbf16, #tpu.memory_space<vmem>>, vector<1x16x128xbf16>
    %3 = vector.shape_cast %2 : vector<1x16x128xbf16> to vector<16x128xbf16>
    %c0_5 = arith.constant 0 : index
    %c0_6 = arith.constant 0 : index
    %c0_7 = arith.constant 0 : index
    %4 = vector.load %arg4[%c0_5, %c0_6, %c0_7] : memref<1x16x128xbf16, #tpu.memory_space<vmem>>, vector<1x16x128xbf16>
    %5 = vector.shape_cast %4 : vector<1x16x128xbf16> to vector<16x128xbf16>
    %6 = vector.extract_strided_slice %1 {offsets = [0, 0], sizes = [16, 64], strides = [1, 1]} : vector<16x128xbf16> to vector<16x64xbf16>
    %cst = arith.constant 1.250000e-01 : bf16
    %7 = vector.broadcast %cst : bf16 to vector<16x64xbf16>
    %8 = arith.mulf %6, %7 : vector<16x64xbf16>
    %9 = vector.extract_strided_slice %3 {offsets = [0, 0], sizes = [16, 64], strides = [1, 1]} : vector<16x128xbf16> to vector<16x64xbf16>
    %10 = vector.extract_strided_slice %5 {offsets = [0, 0], sizes = [16, 64], strides = [1, 1]} : vector<16x128xbf16> to vector<16x64xbf16>
    %cst_8 = arith.constant dense<0.000000e+00> : vector<16x16xf32>
    %11 = tpu.matmul %8, %9, %cst_8 {dimension_numbers = #tpu.dot_dimension_numbers<[1], [1], [0], [0], [0, 0, 1, 0], [], []>} : vector<16x64xbf16>, vector<16x64xbf16>, vector<16x16xf32> -> vector<16x16xf32>
    %cst_9 = arith.constant dense<0xFF800000> : vector<16xf32>
    %12 = vector.multi_reduction <maximumf>, %11, %cst_9 [1] : vector<16x16xf32> to vector<16xf32>
    %13 = vector.shape_cast %12 : vector<16xf32> to vector<16x1xf32>
    %14 = vector.broadcast %13 : vector<16x1xf32> to vector<16x16xf32>
    %15 = arith.subf %11, %14 : vector<16x16xf32>
    %16 = math.exp %15 : vector<16x16xf32>
    %cst_10 = arith.constant dense<0.000000e+00> : vector<16xf32>
    %17 = vector.multi_reduction <add>, %16, %cst_10 [1] : vector<16x16xf32> to vector<16xf32>
    %18 = vector.shape_cast %17 : vector<16xf32> to vector<16x1xf32>
    %19 = tpu.reciprocal %18 {approx = true} : vector<16x1xf32> -> vector<16x1xf32>
    %20 = vector.broadcast %19 : vector<16x1xf32> to vector<16x16xf32>
    %21 = arith.mulf %16, %20 : vector<16x16xf32>
    %22 = arith.truncf %21 : vector<16x16xf32> to vector<16x16xbf16>
    %cst_11 = arith.constant dense<0.000000e+00> : vector<16x64xf32>
    %23 = tpu.matmul %22, %10, %cst_11 {dimension_numbers = #tpu.dot_dimension_numbers<[1], [0], [0], [1], [0, 0, 1, 1], [], []>} : vector<16x16xbf16>, vector<16x64xbf16>, vector<16x64xf32> -> vector<16x64xf32>
    %24 = vector.extract_strided_slice %1 {offsets = [0, 64], sizes = [16, 64], strides = [1, 1]} : vector<16x128xbf16> to vector<16x64xbf16>
    %cst_12 = arith.constant 1.250000e-01 : bf16
    %25 = vector.broadcast %cst_12 : bf16 to vector<16x64xbf16>
    %26 = arith.mulf %24, %25 : vector<16x64xbf16>
    %27 = vector.extract_strided_slice %3 {offsets = [0, 64], sizes = [16, 64], strides = [1, 1]} : vector<16x128xbf16> to vector<16x64xbf16>
    %28 = vector.extract_strided_slice %5 {offsets = [0, 64], sizes = [16, 64], strides = [1, 1]} : vector<16x128xbf16> to vector<16x64xbf16>
    %cst_13 = arith.constant dense<0.000000e+00> : vector<16x16xf32>
    %29 = tpu.matmul %26, %27, %cst_13 {dimension_numbers = #tpu.dot_dimension_numbers<[1], [1], [0], [0], [0, 0, 1, 0], [], []>} : vector<16x64xbf16>, vector<16x64xbf16>, vector<16x16xf32> -> vector<16x16xf32>
    %cst_14 = arith.constant dense<0xFF800000> : vector<16xf32>
    %30 = vector.multi_reduction <maximumf>, %29, %cst_14 [1] : vector<16x16xf32> to vector<16xf32>
    %31 = vector.shape_cast %30 : vector<16xf32> to vector<16x1xf32>
    %32 = vector.broadcast %31 : vector<16x1xf32> to vector<16x16xf32>
    %33 = arith.subf %29, %32 : vector<16x16xf32>
    %34 = math.exp %33 : vector<16x16xf32>
    %cst_15 = arith.constant dense<0.000000e+00> : vector<16xf32>
    %35 = vector.multi_reduction <add>, %34, %cst_15 [1] : vector<16x16xf32> to vector<16xf32>
    %36 = vector.shape_cast %35 : vector<16xf32> to vector<16x1xf32>
    %37 = tpu.reciprocal %36 {approx = true} : vector<16x1xf32> -> vector<16x1xf32>
    %38 = vector.broadcast %37 : vector<16x1xf32> to vector<16x16xf32>
    %39 = arith.mulf %34, %38 : vector<16x16xf32>
    %40 = arith.truncf %39 : vector<16x16xf32> to vector<16x16xbf16>
    %cst_16 = arith.constant dense<0.000000e+00> : vector<16x64xf32>
    %41 = tpu.matmul %40, %28, %cst_16 {dimension_numbers = #tpu.dot_dimension_numbers<[1], [0], [0], [1], [0, 0, 1, 1], [], []>} : vector<16x16xbf16>, vector<16x64xbf16>, vector<16x64xf32> -> vector<16x64xf32>
    %42 = tpu.concatenate %23, %41 in 1 : vector<16x64xf32>, vector<16x64xf32> -> vector<16x128xf32>
    %43 = arith.truncf %42 : vector<16x128xf32> to vector<16x128xbf16>
    %c0_17 = arith.constant 0 : index
    %c0_18 = arith.constant 0 : index
    %c0_19 = arith.constant 0 : index
    %44 = vector.load %arg5[%c0_17, %c0_18, %c0_19] : memref<1x16x128xbf16, #tpu.memory_space<vmem>>, vector<1x16x128xbf16>
    %45 = vector.shape_cast %44 : vector<1x16x128xbf16> to vector<16x128xbf16>
    %46 = vector.shape_cast %43 : vector<16x128xbf16> to vector<1x16x128xbf16>
    tpu.vector_store %arg5[%c0_17, %c0_18, %c0_19], %46 {strides = array<i32>} : memref<1x16x128xbf16, #tpu.memory_space<vmem>>, vector<1x16x128xbf16>,
    return
  }
  func.func @transform_0(%arg0: i32, %arg1: i32) -> (i32, i32, i32) {
    %c0_i32 = arith.constant 0 : i32
    %c0_i32_0 = arith.constant 0 : i32
    return %arg0, %c0_i32, %arg1 : i32, i32, i32
  }
  func.func @transform_1(%arg0: i32, %arg1: i32) -> (i32, i32, i32) {
    %c1_i32 = arith.constant 1 : i32
    %0 = arith.addi %c1_i32, %arg1 : i32
    %c0_i32 = arith.constant 0 : i32
    %c0_i32_0 = arith.constant 0 : i32
    return %arg0, %c0_i32, %0 : i32, i32, i32
  }
  func.func @transform_2(%arg0: i32, %arg1: i32) -> (i32, i32, i32) {
    %c2_i32 = arith.constant 2 : i32
    %0 = arith.addi %c2_i32, %arg1 : i32
    %c0_i32 = arith.constant 0 : i32
    %c0_i32_0 = arith.constant 0 : i32
    return %arg0, %c0_i32, %0 : i32, i32, i32
  }
  func.func @transform_3(%arg0: i32, %arg1: i32) -> (i32, i32, i32) {
    %c0_i32 = arith.constant 0 : i32
    %c0_i32_0 = arith.constant 0 : i32
    return %arg0, %c0_i32, %arg1 : i32, i32, i32
  }
}

module attributes {stable_mosaic.version = 11 : i64} {
  func.func @_linear_kernel(%arg0: i32, %arg1: i32, %arg2: memref<32x128xbf16, #tpu.memory_space<vmem>>, %arg3: memref<128x512xbf16, #tpu.memory_space<vmem>>, %arg4: memref<1x512xf32, #tpu.memory_space<vmem>>, %arg5: memref<32x512xf32, #tpu.memory_space<vmem>>) attributes {dimension_semantics = [#tpu.dimension_semantics<parallel>, #tpu.dimension_semantics<parallel>], iteration_bounds = array<i64: 1, 1>, scalar_prefetch = 0 : i64, scratch_operands = 0 : i64, tpu.core_type = #tpu.core_type<tc>, window_params = [{transform_indices = @transform_0, window_bounds = array<i64: 32, 128>}, {transform_indices = @transform_1, window_bounds = array<i64: 128, 512>}, {transform_indices = @transform_2, window_bounds = array<i64: 1, 512>}, {transform_indices = @transform_3, window_bounds = array<i64: 32, 512>}]} {
    %c0 = arith.constant 0 : index
    %c0_0 = arith.constant 0 : index
    %0 = vector.load %arg2[%c0, %c0_0] : memref<32x128xbf16, #tpu.memory_space<vmem>>, vector<32x128xbf16>
    %c0_1 = arith.constant 0 : index
    %c0_2 = arith.constant 0 : index
    %1 = vector.load %arg3[%c0_1, %c0_2] : memref<128x512xbf16, #tpu.memory_space<vmem>>, vector<128x512xbf16>
    %cst = arith.constant dense<0.000000e+00> : vector<32x512xf32>
    %2 = tpu.matmul %0, %1, %cst {dimension_numbers = #tpu.dot_dimension_numbers<[1], [0], [0], [1], [0, 0, 1, 1], [], []>} : vector<32x128xbf16>, vector<128x512xbf16>, vector<32x512xf32> -> vector<32x512xf32>
    %c0_3 = arith.constant 0 : index
    %c0_4 = arith.constant 0 : index
    %3 = vector.load %arg4[%c0_3, %c0_4] : memref<1x512xf32, #tpu.memory_space<vmem>>, vector<1x512xf32>
    %4 = vector.broadcast %3 : vector<1x512xf32> to vector<32x512xf32>
    %5 = arith.addf %2, %4 : vector<32x512xf32>
    %c0_5 = arith.constant 0 : index
    %c0_6 = arith.constant 0 : index
    %6 = vector.load %arg5[%c0_5, %c0_6] : memref<32x512xf32, #tpu.memory_space<vmem>>, vector<32x512xf32>
    tpu.vector_store %arg5[%c0_5, %c0_6], %5 {strides = array<i32>} : memref<32x512xf32, #tpu.memory_space<vmem>>, vector<32x512xf32>,
    return
  }
  func.func @transform_0(%arg0: i32, %arg1: i32) -> (i32, i32) {
    %c0_i32 = arith.constant 0 : i32
    %c0_i32_0 = arith.constant 0 : i32
    return %arg0, %c0_i32 : i32, i32
  }
  func.func @transform_1(%arg0: i32, %arg1: i32) -> (i32, i32) {
    %c0_i32 = arith.constant 0 : i32
    %c0_i32_0 = arith.constant 0 : i32
    return %c0_i32, %arg1 : i32, i32
  }
  func.func @transform_2(%arg0: i32, %arg1: i32) -> (i32, i32) {
    %c0_i32 = arith.constant 0 : i32
    %c0_i32_0 = arith.constant 0 : i32
    return %c0_i32, %arg1 : i32, i32
  }
  func.func @transform_3(%arg0: i32, %arg1: i32) -> (i32, i32) {
    %c0_i32 = arith.constant 0 : i32
    return %arg0, %arg1 : i32, i32
  }
}

module attributes {stable_mosaic.version = 11 : i64} {
  func.func @_ffn_kernel(%arg0: i32, %arg1: i32, %arg2: memref<32x128xbf16, #tpu.memory_space<vmem>>, %arg3: memref<128x256xbf16, #tpu.memory_space<vmem>>, %arg4: memref<1x256xf32, #tpu.memory_space<vmem>>, %arg5: memref<256x128xbf16, #tpu.memory_space<vmem>>, %arg6: memref<1x128xf32, #tpu.memory_space<vmem>>, %arg7: memref<1x128xf32, #tpu.memory_space<vmem>>, %arg8: memref<1x128xf32, #tpu.memory_space<vmem>>, %arg9: memref<32x128xbf16, #tpu.memory_space<vmem>>, %arg10: memref<32x128xf32, #tpu.memory_space<vmem>>) attributes {dimension_semantics = [#tpu.dimension_semantics<parallel>, #tpu.dimension_semantics<arbitrary>], iteration_bounds = array<i64: 1, 1>, scalar_prefetch = 0 : i64, scratch_operands = 1 : i64, tpu.core_type = #tpu.core_type<tc>, window_params = [{transform_indices = @transform_0, window_bounds = array<i64: 32, 128>}, {transform_indices = @transform_1, window_bounds = array<i64: 128, 256>}, {transform_indices = @transform_2, window_bounds = array<i64: 1, 256>}, {transform_indices = @transform_3, window_bounds = array<i64: 256, 128>}, {pipeline_mode = #tpu.pipeline_mode<synchronous>, transform_indices = @transform_4, window_bounds = array<i64: 1, 128>}, {pipeline_mode = #tpu.pipeline_mode<synchronous>, transform_indices = @transform_5, window_bounds = array<i64: 1, 128>}, {pipeline_mode = #tpu.pipeline_mode<synchronous>, transform_indices = @transform_6, window_bounds = array<i64: 1, 128>}, {transform_indices = @transform_7, window_bounds = array<i64: 32, 128>}]} {
    %c0_i32 = arith.constant 0 : i32
    %0 = arith.cmpi eq, %arg1, %c0_i32 : i32
    %1 = arith.extui %0 : i1 to i32
    %c0_i32_0 = arith.constant 0 : i32
    %2 = arith.cmpi ne, %1, %c0_i32_0 : i32
    scf.if %2 {
      %cst_19 = arith.constant 0.000000e+00 : f32
      %31 = vector.broadcast %cst_19 : f32 to vector<32x128xf32>
      %c0_20 = arith.constant 0 : index
      %c0_21 = arith.constant 0 : index
      %32 = vector.load %arg10[%c0_20, %c0_21] : memref<32x128xf32, #tpu.memory_space<vmem>>, vector<32x128xf32>
      tpu.vector_store %arg10[%c0_20, %c0_21], %31 {strides = array<i32>} : memref<32x128xf32, #tpu.memory_space<vmem>>, vector<32x128xf32>,
    } else {
    }
    %c0 = arith.constant 0 : index
    %c0_1 = arith.constant 0 : index
    %3 = vector.load %arg2[%c0, %c0_1] : memref<32x128xbf16, #tpu.memory_space<vmem>>, vector<32x128xbf16>
    %c0_2 = arith.constant 0 : index
    %c0_3 = arith.constant 0 : index
    %4 = vector.load %arg3[%c0_2, %c0_3] : memref<128x256xbf16, #tpu.memory_space<vmem>>, vector<128x256xbf16>
    %cst = arith.constant dense<0.000000e+00> : vector<32x256xf32>
    %5 = tpu.matmul %3, %4, %cst {dimension_numbers = #tpu.dot_dimension_numbers<[1], [0], [0], [1], [0, 0, 1, 1], [], []>} : vector<32x128xbf16>, vector<128x256xbf16>, vector<32x256xf32> -> vector<32x256xf32>
    %c0_4 = arith.constant 0 : index
    %c0_5 = arith.constant 0 : index
    %6 = vector.load %arg4[%c0_4, %c0_5] : memref<1x256xf32, #tpu.memory_space<vmem>>, vector<1x256xf32>
    %7 = vector.broadcast %6 : vector<1x256xf32> to vector<32x256xf32>
    %8 = arith.addf %5, %7 : vector<32x256xf32>
    %cst_6 = arith.constant 5.000000e-01 : f32
    %9 = vector.broadcast %cst_6 : f32 to vector<32x256xf32>
    %10 = arith.mulf %9, %8 : vector<32x256xf32>
    %cst_7 = arith.constant 4.471500e-02 : f32
    %11 = vector.broadcast %cst_7 : f32 to vector<32x256xf32>
    %12 = arith.mulf %11, %8 : vector<32x256xf32>
    %13 = arith.mulf %12, %8 : vector<32x256xf32>
    %14 = arith.mulf %13, %8 : vector<32x256xf32>
    %15 = arith.addf %8, %14 : vector<32x256xf32>
    %cst_8 = arith.constant 0.797884583 : f32
    %16 = vector.broadcast %cst_8 : f32 to vector<32x256xf32>
    %17 = arith.mulf %16, %15 : vector<32x256xf32>
    %18 = math.tanh %17 : vector<32x256xf32>
    %cst_9 = arith.constant 1.000000e+00 : f32
    %19 = vector.broadcast %cst_9 : f32 to vector<32x256xf32>
    %20 = arith.addf %19, %18 : vector<32x256xf32>
    %21 = arith.mulf %10, %20 : vector<32x256xf32>
    %c0_10 = arith.constant 0 : index
    %c0_11 = arith.constant 0 : index
    %22 = vector.load %arg10[%c0_10, %c0_11] : memref<32x128xf32, #tpu.memory_space<vmem>>, vector<32x128xf32>
    %23 = arith.truncf %21 : vector<32x256xf32> to vector<32x256xbf16>
    %c0_12 = arith.constant 0 : index
    %c0_13 = arith.constant 0 : index
    %24 = vector.load %arg5[%c0_12, %c0_13] : memref<256x128xbf16, #tpu.memory_space<vmem>>, vector<256x128xbf16>
    %cst_14 = arith.constant dense<0.000000e+00> : vector<32x128xf32>
    %25 = tpu.matmul %23, %24, %cst_14 {dimension_numbers = #tpu.dot_dimension_numbers<[1], [0], [0], [1], [0, 0, 1, 1], [], []>} : vector<32x256xbf16>, vector<256x128xbf16>, vector<32x128xf32> -> vector<32x128xf32>
    %26 = arith.addf %22, %25 : vector<32x128xf32>
    %c0_15 = arith.constant 0 : index
    %c0_16 = arith.constant 0 : index
    %27 = vector.load %arg10[%c0_15, %c0_16] : memref<32x128xf32, #tpu.memory_space<vmem>>, vector<32x128xf32>
    tpu.vector_store %arg10[%c0_15, %c0_16], %26 {strides = array<i32>} : memref<32x128xf32, #tpu.memory_space<vmem>>, vector<32x128xf32>,
    %c0_i32_17 = arith.constant 0 : i32
    %28 = arith.cmpi eq, %arg1, %c0_i32_17 : i32
    %29 = arith.extui %28 : i1 to i32
    %c0_i32_18 = arith.constant 0 : i32
    %30 = arith.cmpi ne, %29, %c0_i32_18 : i32
    scf.if %30 {
      %c0_19 = arith.constant 0 : index
      %c0_20 = arith.constant 0 : index
      %31 = vector.load %arg10[%c0_19, %c0_20] : memref<32x128xf32, #tpu.memory_space<vmem>>, vector<32x128xf32>
      %c0_21 = arith.constant 0 : index
      %c0_22 = arith.constant 0 : index
      %32 = vector.load %arg6[%c0_21, %c0_22] : memref<1x128xf32, #tpu.memory_space<vmem>>, vector<1x128xf32>
      %33 = vector.broadcast %32 : vector<1x128xf32> to vector<32x128xf32>
      %34 = arith.addf %31, %33 : vector<32x128xf32>
      %c0_23 = arith.constant 0 : index
      %c0_24 = arith.constant 0 : index
      %35 = vector.load %arg2[%c0_23, %c0_24] : memref<32x128xbf16, #tpu.memory_space<vmem>>, vector<32x128xbf16>
      %36 = arith.extf %35 : vector<32x128xbf16> to vector<32x128xf32>
      %37 = arith.addf %34, %36 : vector<32x128xf32>
      %cst_25 = arith.constant dense<0.000000e+00> : vector<32xf32>
      %38 = vector.multi_reduction <add>, %37, %cst_25 [1] : vector<32x128xf32> to vector<32xf32>
      %39 = vector.shape_cast %38 : vector<32xf32> to vector<32x1xf32>
      %cst_26 = arith.constant 1.280000e+02 : f32
      %40 = vector.broadcast %cst_26 : f32 to vector<32x1xf32>
      %41 = arith.divf %39, %40 : vector<32x1xf32>
      %42 = vector.broadcast %41 : vector<32x1xf32> to vector<32x128xf32>
      %43 = arith.subf %37, %42 : vector<32x128xf32>
      %44 = arith.mulf %43, %43 : vector<32x128xf32>
      %cst_27 = arith.constant dense<0.000000e+00> : vector<32xf32>
      %45 = vector.multi_reduction <add>, %44, %cst_27 [1] : vector<32x128xf32> to vector<32xf32>
      %46 = vector.shape_cast %45 : vector<32xf32> to vector<32x1xf32>
      %cst_28 = arith.constant 1.280000e+02 : f32
      %47 = vector.broadcast %cst_28 : f32 to vector<32x1xf32>
      %48 = arith.divf %46, %47 : vector<32x1xf32>
      %49 = vector.broadcast %41 : vector<32x1xf32> to vector<32x128xf32>
      %50 = arith.subf %37, %49 : vector<32x128xf32>
      %cst_29 = arith.constant 9.99999996E-13 : f32
      %51 = vector.broadcast %cst_29 : f32 to vector<32x1xf32>
      %52 = arith.addf %48, %51 : vector<32x1xf32>
      %53 = math.rsqrt %52 : vector<32x1xf32>
      %54 = vector.broadcast %53 : vector<32x1xf32> to vector<32x128xf32>
      %55 = arith.mulf %50, %54 : vector<32x128xf32>
      %c0_30 = arith.constant 0 : index
      %c0_31 = arith.constant 0 : index
      %56 = vector.load %arg7[%c0_30, %c0_31] : memref<1x128xf32, #tpu.memory_space<vmem>>, vector<1x128xf32>
      %57 = vector.broadcast %56 : vector<1x128xf32> to vector<32x128xf32>
      %58 = arith.mulf %55, %57 : vector<32x128xf32>
      %c0_32 = arith.constant 0 : index
      %c0_33 = arith.constant 0 : index
      %59 = vector.load %arg8[%c0_32, %c0_33] : memref<1x128xf32, #tpu.memory_space<vmem>>, vector<1x128xf32>
      %60 = vector.broadcast %59 : vector<1x128xf32> to vector<32x128xf32>
      %61 = arith.addf %58, %60 : vector<32x128xf32>
      %62 = arith.truncf %61 : vector<32x128xf32> to vector<32x128xbf16>
      %c0_34 = arith.constant 0 : index
      %c0_35 = arith.constant 0 : index
      %63 = vector.load %arg9[%c0_34, %c0_35] : memref<32x128xbf16, #tpu.memory_space<vmem>>, vector<32x128xbf16>
      tpu.vector_store %arg9[%c0_34, %c0_35], %62 {strides = array<i32>} : memref<32x128xbf16, #tpu.memory_space<vmem>>, vector<32x128xbf16>,
    } else {
    }
    return
  }
  func.func @transform_0(%arg0: i32, %arg1: i32) -> (i32, i32) {
    %c0_i32 = arith.constant 0 : i32
    %c0_i32_0 = arith.constant 0 : i32
    return %arg0, %c0_i32 : i32, i32
  }
  func.func @transform_1(%arg0: i32, %arg1: i32) -> (i32, i32) {
    %c0_i32 = arith.constant 0 : i32
    %c0_i32_0 = arith.constant 0 : i32
    return %c0_i32, %arg1 : i32, i32
  }
  func.func @transform_2(%arg0: i32, %arg1: i32) -> (i32, i32) {
    %c0_i32 = arith.constant 0 : i32
    %c0_i32_0 = arith.constant 0 : i32
    return %c0_i32, %arg1 : i32, i32
  }
  func.func @transform_3(%arg0: i32, %arg1: i32) -> (i32, i32) {
    %c0_i32 = arith.constant 0 : i32
    %c0_i32_0 = arith.constant 0 : i32
    return %arg1, %c0_i32 : i32, i32
  }
  func.func @transform_4(%arg0: i32, %arg1: i32) -> (i32, i32) {
    %c0_i32 = arith.constant 0 : i32
    %c0_i32_0 = arith.constant 0 : i32
    %c0_i32_1 = arith.constant 0 : i32
    return %c0_i32, %c0_i32_0 : i32, i32
  }
  func.func @transform_5(%arg0: i32, %arg1: i32) -> (i32, i32) {
    %c0_i32 = arith.constant 0 : i32
    %c0_i32_0 = arith.constant 0 : i32
    %c0_i32_1 = arith.constant 0 : i32
    return %c0_i32, %c0_i32_0 : i32, i32
  }
  func.func @transform_6(%arg0: i32, %arg1: i32) -> (i32, i32) {
    %c0_i32 = arith.constant 0 : i32
    %c0_i32_0 = arith.constant 0 : i32
    %c0_i32_1 = arith.constant 0 : i32
    return %c0_i32, %c0_i32_0 : i32, i32
  }
  func.func @transform_7(%arg0: i32, %arg1: i32) -> (i32, i32) {
    %c0_i32 = arith.constant 0 : i32
    %c0_i32_0 = arith.constant 0 : i32
    return %arg0, %c0_i32 : i32, i32
  }
}

</mosaic_0001>

<llo_original>
// kernel: combine_bert_forward.13
$region0: #{combine_bert_forward.13}
  #allocation0 [shape = 'u32[]', space=smem, size = 0x4, offset = 0x4, fixed_abs, tag = 'smem constant byte address 0x4 - core index']
  #allocation1 [shape = 'u32[144,128]{1,0:T(1,128)}', space=vmem, size = 0x12000, scoped, tag = 'internal scratch']
  %s0 = inlined_call_operand.vmem [shape: bf16[32,128], index: 0, kind: input, shape index: {}]
  %s1 = inlined_call_operand.vmem [shape: bf16[128,128], index: 1, kind: input, shape index: {}]
  %s2 = inlined_call_operand.vmem [shape: f32[1,128], index: 2, kind: input, shape index: {}]
  %s3 = inlined_call_operand.vmem [shape: bf16[32,128], index: 3, kind: input, shape index: {}]
  %s4 = inlined_call_operand.vmem [shape: f32[1,128], index: 4, kind: input, shape index: {}]
  %s5 = inlined_call_operand.vmem [shape: f32[1,128], index: 5, kind: input, shape index: {}]
  %s6 = inlined_call_operand.vmem [shape: bf16[32,128], index: 6, kind: output, shape index: {}]
  %s7 = sld [smem:[#allocation0]]
  $region34: #{combine_bert_forward.13} parent=0
    _
  %s9 = ssub.s32 1, %s7
  %s10 = scalar_select 0, %s9, %s7
  // Predicated region
  $region2: #{combine_bert_forward.13} parent=0 // pred_check
    _
  $region3: #{combine_bert_forward.13} parent=0 // pred_check_branch
    %12 = sbr.rel (0) target = $region5
  $region4: #{combine_bert_forward.13} parent=0 // pred_region
    _
  $region5: #{combine_bert_forward.13} parent=0 // pred_fallthru
    _
  // Predicated region
  $region6: #{combine_bert_forward.13} parent=0 // pred_check
    _
  $region7: #{combine_bert_forward.13} parent=0 // pred_check_branch
    %14 = sbr.rel (0) target = $region9
  $region8: #{combine_bert_forward.13} parent=0 // pred_region
    _
  $region9: #{combine_bert_forward.13} parent=0 // pred_fallthru
    _
  // Predicated region
  $region10: #{combine_bert_forward.13} parent=0 // pred_check
    _
  $region11: #{combine_bert_forward.13} parent=0 // pred_check_branch
    %16 = sbr.rel (0) target = $region13
  $region12: #{combine_bert_forward.13} parent=0 // pred_region
    _
  $region13: #{combine_bert_forward.13} parent=0 // pred_fallthru
    _
  // Predicated region
  $region14: #{combine_bert_forward.13} parent=0 // pred_check
    _
  $region15: #{combine_bert_forward.13} parent=0 // pred_check_branch
    %18 = sbr.rel (0) target = $region17
  $region16: #{combine_bert_forward.13} parent=0 // pred_region
    _
  $region17: #{combine_bert_forward.13} parent=0 // pred_fallthru
    _
  // Predicated region
  $region18: #{combine_bert_forward.13} parent=0 // pred_check
    _
  $region19: #{combine_bert_forward.13} parent=0 // pred_check_branch
    %20 = sbr.rel (0) target = $region21
  $region20: #{combine_bert_forward.13} parent=0 // pred_region
    _
  $region21: #{combine_bert_forward.13} parent=0 // pred_fallthru
    _
  // Predicated region
  $region22: #{combine_bert_forward.13} parent=0 // pred_check
    _
  $region23: #{combine_bert_forward.13} parent=0 // pred_check_branch
    %22 = sbr.rel (0) target = $region25
  $region24: #{combine_bert_forward.13} parent=0 // pred_region
    _
  $region25: #{combine_bert_forward.13} parent=0 // pred_fallthru
    _
  %v24 = vld [vmem:[%s0] sm:$0xf]
  %v25 = vld [vmem:[%s0 + $0x4] sm:$0xf]
  %v26 = vld [vmem:[%s0 + $0x8] sm:$0xf]
  %v27 = vld [vmem:[%s0 + $0xc] sm:$0xf]
  %v28 = vld [vmem:[%s1] sm:$0xf]
  %v29 = vld [vmem:[%s1 + $0x4] sm:$0xf]
  %v30 = vld [vmem:[%s1 + $0x8] sm:$0xf]
  %v31 = vld [vmem:[%s1 + $0xc] sm:$0xf]
  %v32 = vld [vmem:[%s1 + $0x10] sm:$0xf]
  %v33 = vld [vmem:[%s1 + $0x14] sm:$0xf]
  %v34 = vld [vmem:[%s1 + $0x18] sm:$0xf]
  %v35 = vld [vmem:[%s1 + $0x1c] sm:$0xf]
  %v36 = vld [vmem:[%s1 + $0x20] sm:$0xf]
  %v37 = vld [vmem:[%s1 + $0x24] sm:$0xf]
  %v38 = vld [vmem:[%s1 + $0x28] sm:$0xf]
  %v39 = vld [vmem:[%s1 + $0x2c] sm:$0xf]
  %v40 = vld [vmem:[%s1 + $0x30] sm:$0xf]
  %v41 = vld [vmem:[%s1 + $0x34] sm:$0xf]
  %v42 = vld [vmem:[%s1 + $0x38] sm:$0xf]
  %v43 = vld [vmem:[%s1 + $0x3c] sm:$0xf]
  %v44 = vld [vmem:[%s2] sm:$0x1]
  %v46 = vlaneseq
  %v47 = vshrl.u32 %v46, 7
  %v48 = vsub.s32 0, %v47
  %v49 = vrot.slane %v44, %v48
  %v55 = vunpack.c.l.b16 %v24
  %v56 = vunpack.c.l.b16 %v25
  %v57 = vunpack.c.l.b16 %v26
  %v58 = vunpack.c.l.b16 %v27
  %v59 = vpack.c.b16 %v56, %v55
  %v60 = vpack.c.b16 %v58, %v57
  %v79 = vunpack.c.l.b16 %v28
  %v80 = vunpack.c.l.b16 %v29
  %v81 = vunpack.c.l.b16 %v30
  %v82 = vunpack.c.l.b16 %v31
  %v83 = vunpack.c.l.b16 %v32
  %v84 = vunpack.c.l.b16 %v33
  %v85 = vunpack.c.l.b16 %v34
  %v86 = vunpack.c.l.b16 %v35
  %v87 = vunpack.c.l.b16 %v36
  %v88 = vunpack.c.l.b16 %v37
  %v89 = vunpack.c.l.b16 %v38
  %v90 = vunpack.c.l.b16 %v39
  %v91 = vunpack.c.l.b16 %v40
  %v92 = vunpack.c.l.b16 %v41
  %v93 = vunpack.c.l.b16 %v42
  %v94 = vunpack.c.l.b16 %v43
  %v95 = vpack.c.b16 %v80, %v79
  %v96 = vpack.c.b16 %v82, %v81
  %v97 = vpack.c.b16 %v84, %v83
  %v98 = vpack.c.b16 %v86, %v85
  %v99 = vpack.c.b16 %v88, %v87
  %v100 = vpack.c.b16 %v90, %v89
  %v101 = vpack.c.b16 %v92, %v91
  %v102 = vpack.c.b16 %v94, %v93
  %111 = vmatprep.subr.bf16.mxu0 0
  %112 = vmatpush1.bf16.msra.mxu0 %v102
  %113 = vmatprep.subr.bf16.mxu0 0
  %114 = vmatpush1.bf16.msra.mxu0 %v101
  %115 = vmatprep.subr.bf16.mxu0 0
  %116 = vmatpush1.bf16.msra.mxu0 %v100
  %117 = vmatprep.subr.bf16.mxu0 0
  %118 = vmatpush1.bf16.msra.mxu0 %v99
  %119 = vmatprep.subr.bf16.mxu0 0
  %120 = vmatpush1.bf16.msra.mxu0 %v98
  %121 = vmatprep.subr.bf16.mxu0 0
  %122 = vmatpush1.bf16.msra.mxu0 %v97
  %123 = vmatprep.subr.bf16.mxu0 0
  %124 = vmatpush1.bf16.msra.mxu0 %v96
  %125 = vmatprep.subr.bf16.mxu0 0
  %126 = vmatpush1.bf16.msra.mxu0 %v95
  %127 = vmatprep.subr.bf16.mxu0 0
  %128 = vmatpush2.bf16.msra.mxu0 0
  %129 = vmatprep.subr.bf16.mxu0 0
  %130 = vmatpush2.bf16.msra.mxu0 0
  %131 = vmatprep.subr.bf16.mxu0 0
  %132 = vmatpush2.bf16.msra.mxu0 0
  %133 = vmatprep.subr.bf16.mxu0 0
  %134 = vmatpush2.bf16.msra.mxu0 0
  %135 = vmatprep.subr.bf16.mxu0 0
  %136 = vmatpush2.bf16.msra.mxu0 0
  %137 = vmatprep.subr.bf16.mxu0 0
  %138 = vmatpush2.bf16.msra.mxu0 0
  %139 = vmatprep.subr.bf16.mxu0 0
  %140 = vmatpush2.bf16.msra.mxu0 0
  %141 = vmatprep.subr.bf16.mxu0 0
  %142 = vmatpush2.bf16.msra.mxu0 0
  %143 = vmatprep.mubr.bf16.mxu0 0
  %144 = vmatmul.mubr.bf16.gmra.mxu0 %v59
  %v145 = vpop.f32.mrf.mxu0
  %v146 = vadd.f32 %v49, %v145
  %v147 = vpop.f32.mrf.mxu0
  %v148 = vpop.f32.mrf.mxu0
  %v149 = vadd.f32 %v49, %v148
  %v150 = vpop.f32.mrf.mxu0
  %151 = vmatprep.mubr.bf16.mxu0 0
  %152 = vmatmul.mubr.bf16.gmra.mxu0 %v60
  %v153 = vpop.f32.mrf.mxu0
  %v154 = vadd.f32 %v49, %v153
  %v155 = vpop.f32.mrf.mxu0
  %v156 = vpop.f32.mrf.mxu0
  %v157 = vadd.f32 %v49, %v156
  %v158 = vpop.f32.mrf.mxu0
  %159 = vdwg.mxu0
  %v160 = vld [vmem:[%s3] sm:$0xf]
  %v161 = vld [vmem:[%s3 + $0x4] sm:$0xf]
  %v162 = vld [vmem:[%s3 + $0x8] sm:$0xf]
  %v163 = vld [vmem:[%s3 + $0xc] sm:$0xf]
  %v164 = vunpack.c.l.bf16 %v160
  %v165 = vunpack.c.l.bf16 %v161
  %v166 = vunpack.c.l.bf16 %v162
  %v167 = vunpack.c.l.bf16 %v163
  %v168 = vadd.f32 %v146, %v164
  %v169 = vadd.f32 %v149, %v165
  %v170 = vadd.f32 %v154, %v166
  %v171 = vadd.f32 %v157, %v167
  %172 = vadd.xlane.f32.xlu0 %v168
  %v173 = vpop.xlane.xlu0 %172
  %174 = vadd.xlane.f32.xlu0 %v169
  %v175 = vpop.xlane.xlu0 %174
  %176 = vadd.xlane.f32.xlu0 %v170
  %v177 = vpop.xlane.xlu0 %176
  %178 = vadd.xlane.f32.xlu0 %v171
  %v179 = vpop.xlane.xlu0 %178
  %v180 = vrcp.pop 128.0
  %v181 = vmul.f32 %v173, %v180
  %v182 = vmul.f32 %v175, %v180
  %v183 = vmul.f32 %v177, %v180
  %v184 = vmul.f32 %v179, %v180
  %v185 = vsub.f32 %v168, %v181
  %v186 = vsub.f32 %v169, %v182
  %v187 = vsub.f32 %v170, %v183
  %v188 = vsub.f32 %v171, %v184
  %v189 = vmul.f32 %v185, %v185
  %v190 = vmul.f32 %v186, %v186
  %v191 = vmul.f32 %v187, %v187
  %v192 = vmul.f32 %v188, %v188
  %193 = vadd.xlane.f32.xlu0 %v189
  %v194 = vpop.xlane.xlu0 %193
  %195 = vadd.xlane.f32.xlu0 %v190
  %v196 = vpop.xlane.xlu0 %195
  %197 = vadd.xlane.f32.xlu0 %v191
  %v198 = vpop.xlane.xlu0 %197
  %199 = vadd.xlane.f32.xlu0 %v192
  %v200 = vpop.xlane.xlu0 %199
  %v201 = vmul.f32 %v194, %v180
  %v202 = vmul.f32 %v196, %v180
  %v203 = vmul.f32 %v198, %v180
  %v204 = vmul.f32 %v200, %v180
  %v205 = vadd.f32 %v201, 1e-12
  %v206 = vadd.f32 %v202, 1e-12
  %v207 = vadd.f32 %v203, 1e-12
  %v208 = vadd.f32 %v204, 1e-12
  %v209 = vrsqrt.pop %v205
  %v210 = vrsqrt.pop %v206
  %v211 = vrsqrt.pop %v207
  %v212 = vrsqrt.pop %v208
  %v213 = vmul.f32 %v185, %v209
  %v214 = vmul.f32 %v186, %v210
  %v215 = vmul.f32 %v187, %v211
  %v216 = vmul.f32 %v188, %v212
  %v217 = vld [vmem:[%s4] sm:$0x1]
  %v219 = vlaneseq
  %v220 = vshrl.u32 %v219, 7
  %v221 = vsub.s32 0, %v220
  %v222 = vrot.slane %v217, %v221
  %v224 = vmul.f32 %v213, %v222
  %v225 = vmul.f32 %v214, %v222
  %v226 = vmul.f32 %v215, %v222
  %v227 = vmul.f32 %v216, %v222
  %v228 = vld [vmem:[%s5] sm:$0x1]
  %v230 = vlaneseq
  %v231 = vshrl.u32 %v230, 7
  %v232 = vsub.s32 0, %v231
  %v233 = vrot.slane %v228, %v232
  %v235 = vadd.f32 %v224, %v233
  %v236 = vadd.f32 %v225, %v233
  %v237 = vadd.f32 %v226, %v233
  %v238 = vadd.f32 %v227, %v233
  %v239 = vpack.c.bf16 %v236, %v235
  %v240 = vpack.c.bf16 %v238, %v237
  %v243 = vunpack.c.l.b16 %v239
  %v244 = vunpack.c.h.b16 %v239
  %v245 = vunpack.c.l.b16 %v240
  %v246 = vunpack.c.h.b16 %v240
  %v247 = vpack.c.b16 %v243, %v243
  %v248 = vpack.c.b16 %v244, %v244
  %v249 = vpack.c.b16 %v245, %v245
  %v250 = vpack.c.b16 %v246, %v246
  %255 = vst [vmem:[%s6] sm:$0xf] %v247
  %256 = vst [vmem:[%s6 + $0x4] sm:$0xf] %v248
  %257 = vst [vmem:[%s6 + $0x8] sm:$0xf] %v249
  %258 = vst [vmem:[%s6 + $0xc] sm:$0xf] %v250
  // Predicated region
  $region26: #{combine_bert_forward.13} parent=0 // pred_check
    _
  $region27: #{combine_bert_forward.13} parent=0 // pred_check_branch
    %260 = sbr.rel (0) target = $region29
  $region28: #{combine_bert_forward.13} parent=0 // pred_region
    _
  $region29: #{combine_bert_forward.13} parent=0 // pred_fallthru
    _
  // Predicated region
  $region30: #{combine_bert_forward.13} parent=0 // pred_check
    _
  $region31: #{combine_bert_forward.13} parent=0 // pred_check_branch
    %262 = sbr.rel (0) target = $region33
  $region32: #{combine_bert_forward.13} parent=0 // pred_region
    _
  $region33: #{combine_bert_forward.13} parent=0 // pred_fallthru
    _

// kernel: combine_bert_forward.10
$region0: #{combine_bert_forward.10}
  #allocation0 [shape = 'u32[]', space=smem, size = 0x4, offset = 0x4, fixed_abs, tag = 'smem constant byte address 0x4 - core index']
  #allocation1 [shape = 'u32[144,128]{1,0:T(1,128)}', space=vmem, size = 0x12000, scoped, tag = 'internal scratch']
  %s0 = inlined_call_operand.vmem [shape: bf16[32,128], index: 0, kind: input, shape index: {}]
  %s1 = inlined_call_operand.vmem [shape: f32[1,128], index: 1, kind: input, shape index: {}]
  %s2 = inlined_call_operand.vmem [shape: f32[1,128], index: 2, kind: input, shape index: {}]
  %s3 = inlined_call_operand.vmem [shape: bf16[32,128], index: 3, kind: output, shape index: {}]
  %s4 = sld [smem:[#allocation0]]
  $region22: #{combine_bert_forward.10} parent=0
    _
  %s6 = ssub.s32 1, %s4
  %s7 = scalar_select 0, %s6, %s4
  // Predicated region
  $region2: #{combine_bert_forward.10} parent=0 // pred_check
    _
  $region3: #{combine_bert_forward.10} parent=0 // pred_check_branch
    %9 = sbr.rel (0) target = $region5
  $region4: #{combine_bert_forward.10} parent=0 // pred_region
    _
  $region5: #{combine_bert_forward.10} parent=0 // pred_fallthru
    _
  // Predicated region
  $region6: #{combine_bert_forward.10} parent=0 // pred_check
    _
  $region7: #{combine_bert_forward.10} parent=0 // pred_check_branch
    %11 = sbr.rel (0) target = $region9
  $region8: #{combine_bert_forward.10} parent=0 // pred_region
    _
  $region9: #{combine_bert_forward.10} parent=0 // pred_fallthru
    _
  // Predicated region
  $region10: #{combine_bert_forward.10} parent=0 // pred_check
    _
  $region11: #{combine_bert_forward.10} parent=0 // pred_check_branch
    %13 = sbr.rel (0) target = $region13
  $region12: #{combine_bert_forward.10} parent=0 // pred_region
    _
  $region13: #{combine_bert_forward.10} parent=0 // pred_fallthru
    _
  %v14 = vld [vmem:[%s0] sm:$0xf]
  %v15 = vld [vmem:[%s0 + $0x4] sm:$0xf]
  %v16 = vld [vmem:[%s0 + $0x8] sm:$0xf]
  %v17 = vld [vmem:[%s0 + $0xc] sm:$0xf]
  %v18 = vunpack.c.l.bf16 %v14
  %v19 = vunpack.c.l.bf16 %v15
  %v20 = vunpack.c.l.bf16 %v16
  %v21 = vunpack.c.l.bf16 %v17
  %22 = vadd.xlane.f32.xlu0 %v18
  %v23 = vpop.xlane.xlu0 %22
  %24 = vadd.xlane.f32.xlu0 %v19
  %v25 = vpop.xlane.xlu0 %24
  %26 = vadd.xlane.f32.xlu0 %v20
  %v27 = vpop.xlane.xlu0 %26
  %28 = vadd.xlane.f32.xlu0 %v21
  %v29 = vpop.xlane.xlu0 %28
  %v30 = vrcp.pop 128.0
  %v31 = vmul.f32 %v23, %v30
  %v32 = vmul.f32 %v25, %v30
  %v33 = vmul.f32 %v27, %v30
  %v34 = vmul.f32 %v29, %v30
  %v35 = vsub.f32 %v18, %v31
  %v36 = vsub.f32 %v19, %v32
  %v37 = vsub.f32 %v20, %v33
  %v38 = vsub.f32 %v21, %v34
  %v39 = vmul.f32 %v35, %v35
  %v40 = vmul.f32 %v36, %v36
  %v41 = vmul.f32 %v37, %v37
  %v42 = vmul.f32 %v38, %v38
  %43 = vadd.xlane.f32.xlu0 %v39
  %v44 = vpop.xlane.xlu0 %43
  %45 = vadd.xlane.f32.xlu0 %v40
  %v46 = vpop.xlane.xlu0 %45
  %47 = vadd.xlane.f32.xlu0 %v41
  %v48 = vpop.xlane.xlu0 %47
  %49 = vadd.xlane.f32.xlu0 %v42
  %v50 = vpop.xlane.xlu0 %49
  %v51 = vmul.f32 %v44, %v30
  %v52 = vmul.f32 %v46, %v30
  %v53 = vmul.f32 %v48, %v30
  %v54 = vmul.f32 %v50, %v30
  %v55 = vadd.f32 %v51, 1e-12
  %v56 = vadd.f32 %v52, 1e-12
  %v57 = vadd.f32 %v53, 1e-12
  %v58 = vadd.f32 %v54, 1e-12
  %v59 = vrsqrt.pop %v55
  %v60 = vrsqrt.pop %v56
  %v61 = vrsqrt.pop %v57
  %v62 = vrsqrt.pop %v58
  %v63 = vmul.f32 %v35, %v59
  %v64 = vmul.f32 %v36, %v60
  %v65 = vmul.f32 %v37, %v61
  %v66 = vmul.f32 %v38, %v62
  %v67 = vld [vmem:[%s1] sm:$0x1]
  %v69 = vlaneseq
  %v70 = vshrl.u32 %v69, 7
  %v71 = vsub.s32 0, %v70
  %v72 = vrot.slane %v67, %v71
  %v74 = vmul.f32 %v63, %v72
  %v75 = vmul.f32 %v64, %v72
  %v76 = vmul.f32 %v65, %v72
  %v77 = vmul.f32 %v66, %v72
  %v78 = vld [vmem:[%s2] sm:$0x1]
  %v80 = vlaneseq
  %v81 = vshrl.u32 %v80, 7
  %v82 = vsub.s32 0, %v81
  %v83 = vrot.slane %v78, %v82
  %v85 = vadd.f32 %v74, %v83
  %v86 = vadd.f32 %v75, %v83
  %v87 = vadd.f32 %v76, %v83
  %v88 = vadd.f32 %v77, %v83
  %v89 = vpack.c.bf16 %v86, %v85
  %v90 = vpack.c.bf16 %v88, %v87
  %v93 = vunpack.c.l.b16 %v89
  %v94 = vunpack.c.h.b16 %v89
  %v95 = vunpack.c.l.b16 %v90
  %v96 = vunpack.c.h.b16 %v90
  %v97 = vpack.c.b16 %v93, %v93
  %v98 = vpack.c.b16 %v94, %v94
  %v99 = vpack.c.b16 %v95, %v95
  %v100 = vpack.c.b16 %v96, %v96
  %105 = vst [vmem:[%s3] sm:$0xf] %v97
  %106 = vst [vmem:[%s3 + $0x4] sm:$0xf] %v98
  %107 = vst [vmem:[%s3 + $0x8] sm:$0xf] %v99
  %108 = vst [vmem:[%s3 + $0xc] sm:$0xf] %v100
  // Predicated region
  $region14: #{combine_bert_forward.10} parent=0 // pred_check
    _
  $region15: #{combine_bert_forward.10} parent=0 // pred_check_branch
    %110 = sbr.rel (0) target = $region17
  $region16: #{combine_bert_forward.10} parent=0 // pred_region
    _
  $region17: #{combine_bert_forward.10} parent=0 // pred_fallthru
    _
  // Predicated region
  $region18: #{combine_bert_forward.10} parent=0 // pred_check
    _
  $region19: #{combine_bert_forward.10} parent=0 // pred_check_branch
    %112 = sbr.rel (0) target = $region21
  $region20: #{combine_bert_forward.10} parent=0 // pred_region
    _
  $region21: #{combine_bert_forward.10} parent=0 // pred_fallthru
    _

// kernel: combine_bert_forward.12
$region0: #{combine_bert_forward.12}
  #allocation0 [shape = 'u32[]', space=smem, size = 0x4, offset = 0x4, fixed_abs, tag = 'smem constant byte address 0x4 - core index']
  #allocation1 [shape = 'u32[144,128]{1,0:T(1,128)}', space=vmem, size = 0x12000, scoped, tag = 'internal scratch']
  %s0 = inlined_call_operand.vmem [shape: bf16[2,16,384], index: 0, kind: input, shape index: {}, may-alias: {0,1,2}]
  %s1 = inlined_call_operand.vmem [shape: bf16[2,16,384], index: 1, kind: input, shape index: {}, may-alias: {0,1,2}]
  %s2 = inlined_call_operand.vmem [shape: bf16[2,16,384], index: 2, kind: input, shape index: {}, may-alias: {0,1,2}]
  %s3 = inlined_call_operand.vmem [shape: f32[2,1,16], index: 3, kind: input, shape index: {}]
  %s4 = inlined_call_operand.vmem [shape: bf16[2,16,128], index: 4, kind: output, shape index: {}]
  %s5 = sld [smem:[#allocation0]]
  $region172: #{combine_bert_forward.12} parent=0
    _
  %s7 = ssub.s32 1, %s5
  %s8 = scalar_select 0, %s7, %s5
  $region1: #{combine_bert_forward.12} parent=0
    #allocation2 [shape = 'u8[8192]{0}', space=vmem, size = 0x2000, scoped, tag = 'input window, operand 0']
    #allocation3 [shape = 'u8[8192]{0}', space=vmem, size = 0x2000, scoped, tag = 'input window, operand 1']
    #allocation4 [shape = 'u8[8192]{0}', space=vmem, size = 0x2000, scoped, tag = 'input window, operand 2']
    loop: start=0, step=1, limit=4
    $region2: #{combine_bert_forward.12} parent=1 // loop_pre_header
      _
    $region3: #{combine_bert_forward.12} parent=1 // loop_header
      %s10 = sphi 0, %s14
      %p11 = scmp.ge.s32.totalorder %s10, 4
      %s17 = sphi 0, %s29
      %s18 = sphi 0, %s25
      %s19 = sphi 0, %s17
      %s20 = sphi 0, %s18
      %s21 = sphi 0, %s19
      %s22 = sphi 0, %s20
      %s34 = sphi 0, %s36
      %s37 = sphi 0, %s34
      %s38 = sphi 0, %s37
      %s54 = sphi 0, %s38
      %s64 = sphi 0, %s66
      %s67 = sphi 0, %s64
      %s68 = sphi 0, %s67
      %s84 = sphi 0, %s68
      %s94 = sphi 0, %s96
      %s97 = sphi 0, %s94
      %s98 = sphi 0, %s97
      %s114 = sphi 0, %s98
      %s120 = sphi 0, %s122
      %s123 = sphi 0, %s120
      %s124 = sphi 0, %s123
      %s140 = sphi 0, %s124
      %s148 = sphi 0, %s150
      %s151 = sphi 0, %s148
      %s152 = sphi 0, %s151
      %s168 = sphi 0, %s152
    $region4: #{combine_bert_forward.12} parent=1 // loop_header_branch
      %13 = sbr.rel (%p11) target = $region8
    $region5: #{combine_bert_forward.12} parent=1 // loop_body
      %s15 = ssub.s32 %s10, 1
      %s16 = ssub.s32 %s10, 2
      %s23 = sadd.s32 1, %s18
      %p24 = scmp.ge.s32.totalorder %s23, 1
      %s25 = scalar_select %p24, 0, %s23
      %s26 = sadd.s32 1, %s17
      %s27 = scalar_select %p24, %s26, %s17
      %p28 = scmp.ge.s32.totalorder %s27, 2
      %s29 = scalar_select %p28, 0, %s27
      %s30 = ssub.s32 %s17, %s29
      %s31 = ssub.s32 %s18, %s25
      %s32 = sor.u32 %s30, %s31
      %p33 = scmp.eq.s32.totalorder %s32, 0
      %s35 = sadd.s32 %s34, 1
      %s36 = scalar_select %p33, %s34, %s35
      %p39 = pneg %p33
      %p40 = scmp.eq.s32.totalorder %s10, 1
      %p41 = por %p39, %p40
      %p42 = scmp.ne.s32.totalorder %s34, %s37
      %p43 = scmp.eq.s32.totalorder %s10, 0
      %p44 = por %p42, %p43
      %p45 = scmp.ne.s32.totalorder %s34, %s37
      %p46 = scmp.eq.s32.totalorder %s15, 1
      %p47 = por %p45, %p46
      %p48 = scmp.ne.s32.totalorder %s37, %s38
      %p49 = scmp.eq.s32.totalorder %s15, 0
      %p50 = por %p48, %p49
      %p51 = scmp.ne.s32.totalorder %s37, %s38
      %p52 = scmp.eq.s32.totalorder %s16, 1
      %p53 = por %p51, %p52
      %p55 = scmp.ne.s32.totalorder %s38, %s54
      %p56 = scmp.eq.s32.totalorder %s16, 0
      %p57 = por %p55, %p56
      %s58 = sadd.s32 %s18, 1
      %s59 = sadd.s32 %s25, 1
      %s60 = ssub.s32 %s17, %s29
      %s61 = ssub.s32 %s58, %s59
      %s62 = sor.u32 %s60, %s61
      %p63 = scmp.eq.s32.totalorder %s62, 0
      %s65 = sadd.s32 %s64, 1
      %s66 = scalar_select %p63, %s64, %s65
      %p69 = pneg %p63
      %p70 = scmp.eq.s32.totalorder %s10, 1
      %p71 = por %p69, %p70
      %p72 = scmp.ne.s32.totalorder %s64, %s67
      %p73 = scmp.eq.s32.totalorder %s10, 0
      %p74 = por %p72, %p73
      %p75 = scmp.ne.s32.totalorder %s64, %s67
      %p76 = scmp.eq.s32.totalorder %s15, 1
      %p77 = por %p75, %p76
      %p78 = scmp.ne.s32.totalorder %s67, %s68
      %p79 = scmp.eq.s32.totalorder %s15, 0
      %p80 = por %p78, %p79
      %p81 = scmp.ne.s32.totalorder %s67, %s68
      %p82 = scmp.eq.s32.totalorder %s16, 1
      %p83 = por %p81, %p82
      %p85 = scmp.ne.s32.totalorder %s68, %s84
      %p86 = scmp.eq.s32.totalorder %s16, 0
      %p87 = por %p85, %p86
      %s88 = sadd.s32 %s18, 2
      %s89 = sadd.s32 %s25, 2
      %s90 = ssub.s32 %s17, %s29
      %s91 = ssub.s32 %s88, %s89
      %s92 = sor.u32 %s90, %s91
      %p93 = scmp.eq.s32.totalorder %s92, 0
      %s95 = sadd.s32 %s94, 1
      %s96 = scalar_select %p93, %s94, %s95
      %p99 = pneg %p93
      %p100 = scmp.eq.s32.totalorder %s10, 1
      %p101 = por %p99, %p100
      %p102 = scmp.ne.s32.totalorder %s94, %s97
      %p103 = scmp.eq.s32.totalorder %s10, 0
      %p104 = por %p102, %p103
      %p105 = scmp.ne.s32.totalorder %s94, %s97
      %p106 = scmp.eq.s32.totalorder %s15, 1
      %p107 = por %p105, %p106
      %p108 = scmp.ne.s32.totalorder %s97, %s98
      %p109 = scmp.eq.s32.totalorder %s15, 0
      %p110 = por %p108, %p109
      %p111 = scmp.ne.s32.totalorder %s97, %s98
      %p112 = scmp.eq.s32.totalorder %s16, 1
      %p113 = por %p111, %p112
      %p115 = scmp.ne.s32.totalorder %s98, %s114
      %p116 = scmp.eq.s32.totalorder %s16, 0
      %p117 = por %p115, %p116
      %s118 = ssub.s32 %s17, %s29
      %p119 = scmp.eq.s32.totalorder %s118, 0
      %s121 = sadd.s32 %s120, 1
      %s122 = scalar_select %p119, %s120, %s121
      %p125 = pneg %p119
      %p126 = scmp.eq.s32.totalorder %s10, 1
      %p127 = por %p125, %p126
      %p128 = scmp.ne.s32.totalorder %s120, %s123
      %p129 = scmp.eq.s32.totalorder %s10, 0
      %p130 = por %p128, %p129
      %p131 = scmp.ne.s32.totalorder %s120, %s123
      %p132 = scmp.eq.s32.totalorder %s15, 1
      %p133 = por %p131, %p132
      %p134 = scmp.ne.s32.totalorder %s123, %s124
      %p135 = scmp.eq.s32.totalorder %s15, 0
      %p136 = por %p134, %p135
      %p137 = scmp.ne.s32.totalorder %s123, %s124
      %p138 = scmp.eq.s32.totalorder %s16, 1
      %p139 = por %p137, %p138
      %p141 = scmp.ne.s32.totalorder %s124, %s140
      %p142 = scmp.eq.s32.totalorder %s16, 0
      %p143 = por %p141, %p142
      %s144 = ssub.s32 %s17, %s29
      %s145 = ssub.s32 %s18, %s25
      %s146 = sor.u32 %s144, %s145
      %p147 = scmp.eq.s32.totalorder %s146, 0
      %s149 = sadd.s32 %s148, 1
      %s150 = scalar_select %p147, %s148, %s149
      %p153 = pneg %p147
      %p154 = scmp.eq.s32.totalorder %s10, 1
      %p155 = por %p153, %p154
      %p156 = scmp.ne.s32.totalorder %s148, %s151
      %p157 = scmp.eq.s32.totalorder %s10, 0
      %p158 = por %p156, %p157
      %p159 = scmp.ne.s32.totalorder %s148, %s151
      %p160 = scmp.eq.s32.totalorder %s15, 1
      %p161 = por %p159, %p160
      %p162 = scmp.ne.s32.totalorder %s151, %s152
      %p163 = scmp.eq.s32.totalorder %s15, 0
      %p164 = por %p162, %p163
      %p165 = scmp.ne.s32.totalorder %s151, %s152
      %p166 = scmp.eq.s32.totalorder %s16, 1
      %p167 = por %p165, %p166
      %p169 = scmp.ne.s32.totalorder %s152, %s168
      %p170 = scmp.eq.s32.totalorder %s16, 0
      %p171 = por %p169, %p170
      %p172 = scmp.le.s32.totalorder 1, %s10
      %p173 = scmp.lt.s32.totalorder %s10, 3
      %p174 = pnand %p172, %p173
      %p175 = pneg %p174
      // Predicated region
      $region9: #{combine_bert_forward.12} parent=5 // pred_check
        _
      $region10: #{combine_bert_forward.12} parent=5 // pred_check_branch
        %177 = sbr.rel (%p174) target = $region12
      $region11: #{combine_bert_forward.12} parent=5 // pred_region
        %s178 = ssub.s32 %s10, 1
      $region12: #{combine_bert_forward.12} parent=5 // pred_fallthru
        _
      %p179 = scmp.lt.s32.totalorder %s10, 2
      // Predicated region
      $region13: #{combine_bert_forward.12} parent=5 // pred_check
        %p180 = pneg %p179
      $region14: #{combine_bert_forward.12} parent=5 // pred_check_branch
        %182 = sbr.rel (%p180) target = $region16
      $region15: #{combine_bert_forward.12} parent=5 // pred_region
        // Predicated region
        $region17: #{combine_bert_forward.12} parent=15 // pred_check
          %p183 = pneg %p44
        $region18: #{combine_bert_forward.12} parent=15 // pred_check_branch
          %185 = sbr.rel (%p183) target = $region20
        $region19: #{combine_bert_forward.12} parent=15 // pred_region
          %s186 = sand.u32 %s34, 1
          %s187 = sand.u32 %s34, 1
          %s188 = smul.addr %s187, 8
          %s189 = scalar_lea.vmem [#allocation2], %s188
          %s190 = smul.addr %s17, 6
          %s191 = sadd.s32 %s18, %s190
          %s192 = smul.addr %s191, 4
          %s193 = scalar_lea.vmem %s0, %s192
          // Predicated region
          $region21: #{combine_bert_forward.12} parent=19 // pred_check
            _
          $region22: #{combine_bert_forward.12} parent=19 // pred_check_branch
            %195 = sbr.rel (0) target = $region24
          $region23: #{combine_bert_forward.12} parent=19 // pred_region
            // Predicated region
            $region25: #{combine_bert_forward.12} parent=23 // pred_check
              _
            $region26: #{combine_bert_forward.12} parent=23 // pred_check_branch
              %197 = sbr.rel target = $region28
            $region27: #{combine_bert_forward.12} parent=23 // pred_region
              // Predicated region
              $region40: #{combine_bert_forward.12} parent=27 // pred_check
                _
              $region41: #{combine_bert_forward.12} parent=27 // pred_check_branch
                %215 = sbr.rel (0) target = $region43
              $region42: #{combine_bert_forward.12} parent=27 // pred_region
                loop: start=0, step=1, limit=1
                $region44: #{combine_bert_forward.12} parent=42 // loop_pre_header
                  _
                $region45: #{combine_bert_forward.12} parent=42 // loop_header
                  %s217 = sphi 0, %s221
                  %p218 = scmp.ge.s32.totalorder %s217, 1
                  %s222 = sphi %s193, %s193
                  %s223 = sphi %s189, %s189
                $region46: #{combine_bert_forward.12} parent=42 // loop_header_branch
                  %220 = sbr.rel (%p218) target = $region50
                $region47: #{combine_bert_forward.12} parent=42 // loop_body
                  _
                $region48: #{combine_bert_forward.12} parent=42 // loop_footer
                  %s221 = sadd.s32 1, %s217
                $region49: #{combine_bert_forward.12} parent=42 // loop_footer_branch
                  %216 = sbr.rel target = $region45
                $region50: #{combine_bert_forward.12} parent=42 // loop_exit
                  _
                %s225 = ssub.s32 16, 1
                loop: start=0, step=1, limit=1
                $region51: #{combine_bert_forward.12} parent=42 // loop_pre_header
                  _
                $region52: #{combine_bert_forward.12} parent=42 // loop_header
                  %s227 = sphi 0, %s231
                  %p228 = scmp.ge.s32.totalorder %s227, 1
                  %s232 = sphi %s193, %s193
                  %s233 = sphi %s189, %s189
                $region53: #{combine_bert_forward.12} parent=42 // loop_header_branch
                  %230 = sbr.rel (%p228) target = $region57
                $region54: #{combine_bert_forward.12} parent=42 // loop_body
                  %v234 = vld [vmem:[%s232] sm:%s225]
                  %235 = vst [vmem:[%s233] sm:%s225] %v234
                  %v236 = vld [vmem:[%s232 + $0xc] sm:%s225]
                  %237 = vst [vmem:[%s233 + $0x4] sm:%s225] %v236
                $region55: #{combine_bert_forward.12} parent=42 // loop_footer
                  %s231 = sadd.s32 1, %s227
                $region56: #{combine_bert_forward.12} parent=42 // loop_footer_branch
                  %226 = sbr.rel target = $region52
                $region57: #{combine_bert_forward.12} parent=42 // loop_exit
                  _
              $region43: #{combine_bert_forward.12} parent=27 // pred_fallthru
                _
            $region28: #{combine_bert_forward.12} parent=23 // pred_fallthru
              _
            // Predicated region
            $region29: #{combine_bert_forward.12} parent=23 // pred_check
              _
            $region30: #{combine_bert_forward.12} parent=23 // pred_check_branch
              %199 = sbr.rel (0) target = $region32
            $region31: #{combine_bert_forward.12} parent=23 // pred_region
              %s201 = ssub.s32 16, 1
              loop: start=0, step=1, limit=1
              $region33: #{combine_bert_forward.12} parent=31 // loop_pre_header
                _
              $region34: #{combine_bert_forward.12} parent=31 // loop_header
                %s203 = sphi 0, %s207
                %p204 = scmp.ge.s32.totalorder %s203, 1
                %s208 = sphi %s193, %s193
                %s209 = sphi %s189, %s189
              $region35: #{combine_bert_forward.12} parent=31 // loop_header_branch
                %206 = sbr.rel (%p204) target = $region39
              $region36: #{combine_bert_forward.12} parent=31 // loop_body
                %v210 = vld [vmem:[%s208] sm:%s201]
                %211 = vst [vmem:[%s209] sm:%s201] %v210
                %v212 = vld [vmem:[%s208 + $0xc] sm:%s201]
                %213 = vst [vmem:[%s209 + $0x4] sm:%s201] %v212
              $region37: #{combine_bert_forward.12} parent=31 // loop_footer
                %s207 = sadd.s32 1, %s203
              $region38: #{combine_bert_forward.12} parent=31 // loop_footer_branch
                %202 = sbr.rel target = $region34
              $region39: #{combine_bert_forward.12} parent=31 // loop_exit
                _
            $region32: #{combine_bert_forward.12} parent=23 // pred_fallthru
              _
          $region24: #{combine_bert_forward.12} parent=19 // pred_fallthru
            _
          %238 = vnop
        $region20: #{combine_bert_forward.12} parent=15 // pred_fallthru
          _
        // Predicated region
        $region58: #{combine_bert_forward.12} parent=15 // pred_check
          %p239 = pneg %p74
        $region59: #{combine_bert_forward.12} parent=15 // pred_check_branch
          %241 = sbr.rel (%p239) target = $region61
        $region60: #{combine_bert_forward.12} parent=15 // pred_region
          %s242 = sand.u32 %s64, 1
          %s243 = sand.u32 %s64, 1
          %s244 = smul.addr %s243, 8
          %s245 = scalar_lea.vmem [#allocation3], %s244
          %s246 = sadd.s32 %s18, 1
          %s247 = smul.addr %s17, 6
          %s248 = sadd.s32 %s246, %s247
          %s249 = smul.addr %s248, 4
          %s250 = scalar_lea.vmem %s1, %s249
          // Predicated region
          $region62: #{combine_bert_forward.12} parent=60 // pred_check
            _
          $region63: #{combine_bert_forward.12} parent=60 // pred_check_branch
            %252 = sbr.rel (0) target = $region65
          $region64: #{combine_bert_forward.12} parent=60 // pred_region
            // Predicated region
            $region66: #{combine_bert_forward.12} parent=64 // pred_check
              _
            $region67: #{combine_bert_forward.12} parent=64 // pred_check_branch
              %254 = sbr.rel target = $region69
            $region68: #{combine_bert_forward.12} parent=64 // pred_region
              // Predicated region
              $region81: #{combine_bert_forward.12} parent=68 // pred_check
                _
              $region82: #{combine_bert_forward.12} parent=68 // pred_check_branch
                %272 = sbr.rel (0) target = $region84
              $region83: #{combine_bert_forward.12} parent=68 // pred_region
                loop: start=0, step=1, limit=1
                $region85: #{combine_bert_forward.12} parent=83 // loop_pre_header
                  _
                $region86: #{combine_bert_forward.12} parent=83 // loop_header
                  %s274 = sphi 0, %s278
                  %p275 = scmp.ge.s32.totalorder %s274, 1
                  %s279 = sphi %s250, %s250
                  %s280 = sphi %s245, %s245
                $region87: #{combine_bert_forward.12} parent=83 // loop_header_branch
                  %277 = sbr.rel (%p275) target = $region91
                $region88: #{combine_bert_forward.12} parent=83 // loop_body
                  _
                $region89: #{combine_bert_forward.12} parent=83 // loop_footer
                  %s278 = sadd.s32 1, %s274
                $region90: #{combine_bert_forward.12} parent=83 // loop_footer_branch
                  %273 = sbr.rel target = $region86
                $region91: #{combine_bert_forward.12} parent=83 // loop_exit
                  _
                %s282 = ssub.s32 16, 1
                loop: start=0, step=1, limit=1
                $region92: #{combine_bert_forward.12} parent=83 // loop_pre_header
                  _
                $region93: #{combine_bert_forward.12} parent=83 // loop_header
                  %s284 = sphi 0, %s288
                  %p285 = scmp.ge.s32.totalorder %s284, 1
                  %s289 = sphi %s250, %s250
                  %s290 = sphi %s245, %s245
                $region94: #{combine_bert_forward.12} parent=83 // loop_header_branch
                  %287 = sbr.rel (%p285) target = $region98
                $region95: #{combine_bert_forward.12} parent=83 // loop_body
                  %v291 = vld [vmem:[%s289] sm:%s282]
                  %292 = vst [vmem:[%s290] sm:%s282] %v291
                  %v293 = vld [vmem:[%s289 + $0xc] sm:%s282]
                  %294 = vst [vmem:[%s290 + $0x4] sm:%s282] %v293
                $region96: #{combine_bert_forward.12} parent=83 // loop_footer
                  %s288 = sadd.s32 1, %s284
                $region97: #{combine_bert_forward.12} parent=83 // loop_footer_branch
                  %283 = sbr.rel target = $region93
                $region98: #{combine_bert_forward.12} parent=83 // loop_exit
                  _
              $region84: #{combine_bert_forward.12} parent=68 // pred_fallthru
                _
            $region69: #{combine_bert_forward.12} parent=64 // pred_fallthru
              _
            // Predicated region
            $region70: #{combine_bert_forward.12} parent=64 // pred_check
              _
            $region71: #{combine_bert_forward.12} parent=64 // pred_check_branch
              %256 = sbr.rel (0) target = $region73
            $region72: #{combine_bert_forward.12} parent=64 // pred_region
              %s258 = ssub.s32 16, 1
              loop: start=0, step=1, limit=1
              $region74: #{combine_bert_forward.12} parent=72 // loop_pre_header
                _
              $region75: #{combine_bert_forward.12} parent=72 // loop_header
                %s260 = sphi 0, %s264
                %p261 = scmp.ge.s32.totalorder %s260, 1
                %s265 = sphi %s250, %s250
                %s266 = sphi %s245, %s245
              $region76: #{combine_bert_forward.12} parent=72 // loop_header_branch
                %263 = sbr.rel (%p261) target = $region80
              $region77: #{combine_bert_forward.12} parent=72 // loop_body
                %v267 = vld [vmem:[%s265] sm:%s258]
                %268 = vst [vmem:[%s266] sm:%s258] %v267
                %v269 = vld [vmem:[%s265 + $0xc] sm:%s258]
                %270 = vst [vmem:[%s266 + $0x4] sm:%s258] %v269
              $region78: #{combine_bert_forward.12} parent=72 // loop_footer
                %s264 = sadd.s32 1, %s260
              $region79: #{combine_bert_forward.12} parent=72 // loop_footer_branch
                %259 = sbr.rel target = $region75
              $region80: #{combine_bert_forward.12} parent=72 // loop_exit
                _
            $region73: #{combine_bert_forward.12} parent=64 // pred_fallthru
              _
          $region65: #{combine_bert_forward.12} parent=60 // pred_fallthru
            _
          %295 = vnop
        $region61: #{combine_bert_forward.12} parent=15 // pred_fallthru
          _
        // Predicated region
        $region99: #{combine_bert_forward.12} parent=15 // pred_check
          %p296 = pneg %p104
        $region100: #{combine_bert_forward.12} parent=15 // pred_check_branch
          %298 = sbr.rel (%p296) target = $region102
        $region101: #{combine_bert_forward.12} parent=15 // pred_region
          %s299 = sand.u32 %s94, 1
          %s300 = sand.u32 %s94, 1
          %s301 = smul.addr %s300, 8
          %s302 = scalar_lea.vmem [#allocation4], %s301
          %s303 = sadd.s32 %s18, 2
          %s304 = smul.addr %s17, 6
          %s305 = sadd.s32 %s303, %s304
          %s306 = smul.addr %s305, 4
          %s307 = scalar_lea.vmem %s2, %s306
          // Predicated region
          $region103: #{combine_bert_forward.12} parent=101 // pred_check
            _
          $region104: #{combine_bert_forward.12} parent=101 // pred_check_branch
            %309 = sbr.rel (0) target = $region106
          $region105: #{combine_bert_forward.12} parent=101 // pred_region
            // Predicated region
            $region107: #{combine_bert_forward.12} parent=105 // pred_check
              _
            $region108: #{combine_bert_forward.12} parent=105 // pred_check_branch
              %311 = sbr.rel target = $region110
            $region109: #{combine_bert_forward.12} parent=105 // pred_region
              // Predicated region
              $region122: #{combine_bert_forward.12} parent=109 // pred_check
                _
              $region123: #{combine_bert_forward.12} parent=109 // pred_check_branch
                %329 = sbr.rel (0) target = $region125
              $region124: #{combine_bert_forward.12} parent=109 // pred_region
                loop: start=0, step=1, limit=1
                $region126: #{combine_bert_forward.12} parent=124 // loop_pre_header
                  _
                $region127: #{combine_bert_forward.12} parent=124 // loop_header
                  %s331 = sphi 0, %s335
                  %p332 = scmp.ge.s32.totalorder %s331, 1
                  %s336 = sphi %s307, %s307
                  %s337 = sphi %s302, %s302
                $region128: #{combine_bert_forward.12} parent=124 // loop_header_branch
                  %334 = sbr.rel (%p332) target = $region132
                $region129: #{combine_bert_forward.12} parent=124 // loop_body
                  _
                $region130: #{combine_bert_forward.12} parent=124 // loop_footer
                  %s335 = sadd.s32 1, %s331
                $region131: #{combine_bert_forward.12} parent=124 // loop_footer_branch
                  %330 = sbr.rel target = $region127
                $region132: #{combine_bert_forward.12} parent=124 // loop_exit
                  _
                %s339 = ssub.s32 16, 1
                loop: start=0, step=1, limit=1
                $region133: #{combine_bert_forward.12} parent=124 // loop_pre_header
                  _
                $region134: #{combine_bert_forward.12} parent=124 // loop_header
                  %s341 = sphi 0, %s345
                  %p342 = scmp.ge.s32.totalorder %s341, 1
                  %s346 = sphi %s307, %s307
                  %s347 = sphi %s302, %s302
                $region135: #{combine_bert_forward.12} parent=124 // loop_header_branch
                  %344 = sbr.rel (%p342) target = $region139
                $region136: #{combine_bert_forward.12} parent=124 // loop_body
                  %v348 = vld [vmem:[%s346] sm:%s339]
                  %349 = vst [vmem:[%s347] sm:%s339] %v348
                  %v350 = vld [vmem:[%s346 + $0xc] sm:%s339]
                  %351 = vst [vmem:[%s347 + $0x4] sm:%s339] %v350
                $region137: #{combine_bert_forward.12} parent=124 // loop_footer
                  %s345 = sadd.s32 1, %s341
                $region138: #{combine_bert_forward.12} parent=124 // loop_footer_branch
                  %340 = sbr.rel target = $region134
                $region139: #{combine_bert_forward.12} parent=124 // loop_exit
                  _
              $region125: #{combine_bert_forward.12} parent=109 // pred_fallthru
                _
            $region110: #{combine_bert_forward.12} parent=105 // pred_fallthru
              _
            // Predicated region
            $region111: #{combine_bert_forward.12} parent=105 // pred_check
              _
            $region112: #{combine_bert_forward.12} parent=105 // pred_check_branch
              %313 = sbr.rel (0) target = $region114
            $region113: #{combine_bert_forward.12} parent=105 // pred_region
              %s315 = ssub.s32 16, 1
              loop: start=0, step=1, limit=1
              $region115: #{combine_bert_forward.12} parent=113 // loop_pre_header
                _
              $region116: #{combine_bert_forward.12} parent=113 // loop_header
                %s317 = sphi 0, %s321
                %p318 = scmp.ge.s32.totalorder %s317, 1
                %s322 = sphi %s307, %s307
                %s323 = sphi %s302, %s302
              $region117: #{combine_bert_forward.12} parent=113 // loop_header_branch
                %320 = sbr.rel (%p318) target = $region121
              $region118: #{combine_bert_forward.12} parent=113 // loop_body
                %v324 = vld [vmem:[%s322] sm:%s315]
                %325 = vst [vmem:[%s323] sm:%s315] %v324
                %v326 = vld [vmem:[%s322 + $0xc] sm:%s315]
                %327 = vst [vmem:[%s323 + $0x4] sm:%s315] %v326
              $region119: #{combine_bert_forward.12} parent=113 // loop_footer
                %s321 = sadd.s32 1, %s317
              $region120: #{combine_bert_forward.12} parent=113 // loop_footer_branch
                %316 = sbr.rel target = $region116
              $region121: #{combine_bert_forward.12} parent=113 // loop_exit
                _
            $region114: #{combine_bert_forward.12} parent=105 // pred_fallthru
              _
          $region106: #{combine_bert_forward.12} parent=101 // pred_fallthru
            _
          %352 = vnop
        $region102: #{combine_bert_forward.12} parent=15 // pred_fallthru
          _
        // Predicated region
        $region140: #{combine_bert_forward.12} parent=15 // pred_check
          %p353 = pneg %p130
        $region141: #{combine_bert_forward.12} parent=15 // pred_check_branch
          %355 = sbr.rel (%p353) target = $region143
        $region142: #{combine_bert_forward.12} parent=15 // pred_region
          %p356 = scmp.lt.s32.totalorder %s17, 1
          %s357 = scalar_select %p356, %s17, 1
          %s358 = scalar_lea.vmem %s3, %s357
        $region143: #{combine_bert_forward.12} parent=15 // pred_fallthru
          _
      $region16: #{combine_bert_forward.12} parent=5 // pred_fallthru
        _
      %p359 = scmp.le.s32.totalorder 1, %s10
      %p360 = scmp.lt.s32.totalorder %s10, 3
      %p361 = pnand %p359, %p360
      %p362 = pneg %p361
      // Predicated region
      $region144: #{combine_bert_forward.12} parent=5 // pred_check
        _
      $region145: #{combine_bert_forward.12} parent=5 // pred_check_branch
        %364 = sbr.rel (%p361) target = $region147
      $region146: #{combine_bert_forward.12} parent=5 // pred_region
        %s365 = ssub.s32 %s10, 1
        %s366 = sand.u32 %s37, 1
        %s367 = sand.u32 %s37, 1
        %s368 = smul.addr %s367, 8
        %s369 = scalar_lea.vmem [#allocation2], %s368
        // Predicated region
        $region148: #{combine_bert_forward.12} parent=146 // pred_check
          %p370 = pneg %p50
        $region149: #{combine_bert_forward.12} parent=146 // pred_check_branch
          %372 = sbr.rel (%p370) target = $region151
        $region150: #{combine_bert_forward.12} parent=146 // pred_region
          _
        $region151: #{combine_bert_forward.12} parent=146 // pred_fallthru
          _
        %s373 = sand.u32 %s67, 1
        %s374 = sand.u32 %s67, 1
        %s375 = smul.addr %s374, 8
        %s376 = scalar_lea.vmem [#allocation3], %s375
        // Predicated region
        $region152: #{combine_bert_forward.12} parent=146 // pred_check
          %p377 = pneg %p80
        $region153: #{combine_bert_forward.12} parent=146 // pred_check_branch
          %379 = sbr.rel (%p377) target = $region155
        $region154: #{combine_bert_forward.12} parent=146 // pred_region
          _
        $region155: #{combine_bert_forward.12} parent=146 // pred_fallthru
          _
        %s380 = sand.u32 %s97, 1
        %s381 = sand.u32 %s97, 1
        %s382 = smul.addr %s381, 8
        %s383 = scalar_lea.vmem [#allocation4], %s382
        // Predicated region
        $region156: #{combine_bert_forward.12} parent=146 // pred_check
          %p384 = pneg %p110
        $region157: #{combine_bert_forward.12} parent=146 // pred_check_branch
          %386 = sbr.rel (%p384) target = $region159
        $region158: #{combine_bert_forward.12} parent=146 // pred_region
          _
        $region159: #{combine_bert_forward.12} parent=146 // pred_fallthru
          _
        %s387 = sand.u32 %s37, 1
        %s388 = sand.u32 %s37, 1
        %s389 = smul.addr %s388, 8
        %s390 = scalar_lea.vmem [#allocation2], %s389
        %p391 = pneg %p50
        %p392 = pneg %p47
        %s393 = sand.u32 %s67, 1
        %s394 = sand.u32 %s67, 1
        %s395 = smul.addr %s394, 8
        %s396 = scalar_lea.vmem [#allocation3], %s395
        %p397 = pneg %p80
        %p398 = pneg %p77
        %s399 = sand.u32 %s97, 1
        %s400 = sand.u32 %s97, 1
        %s401 = smul.addr %s400, 8
        %s402 = scalar_lea.vmem [#allocation4], %s401
        %p403 = pneg %p110
        %p404 = pneg %p107
        %p405 = scmp.lt.s32.totalorder %s19, 1
        %s406 = scalar_select %p405, %s19, 1
        %s407 = scalar_lea.vmem %s3, %s406
        %p408 = pneg %p136
        %p409 = pneg %p133
        %p410 = pneg %p164
        %p411 = pneg %p161
        %p412 = scmp.lt.s32.totalorder %s19, 1
        %s413 = scalar_select %p412, %s19, 1
        %p414 = scmp.lt.s32.totalorder %s20, 0
        %s415 = scalar_select %p414, %s20, 0
        %s416 = smul.addr %s413, 2
        %s417 = sadd.s32 %s415, %s416
        %s418 = smul.addr %s417, 4
        %s419 = scalar_lea.vmem %s4, %s418
        %s420 = sadd.s32 %s20, 1
        %s421 = sadd.s32 %s20, 2
        %p422 = scmp.lt.s32.totalorder %s19, 1
        %s423 = scalar_select %p422, %s19, 1
        %s424 = scalar_lea.vmem %s3, %s423
        %p425 = scmp.lt.s32.totalorder %s19, 1
        %s426 = scalar_select %p425, %s19, 1
        %p427 = scmp.lt.s32.totalorder %s20, 0
        %s428 = scalar_select %p427, %s20, 0
        %s429 = smul.addr %s426, 2
        %s430 = sadd.s32 %s428, %s429
        %s431 = smul.addr %s430, 4
        %s432 = scalar_lea.vmem %s4, %s431
        %v435 = vld [vmem:[%s424] sm:$0x1]
        %v436 = vld [vmem:[%s369] sm:$0xf]
        %v437 = vld [vmem:[%s369 + $0x4] sm:$0xf]
        %v438 = vld [vmem:[%s376] sm:$0xf]
        %v439 = vld [vmem:[%s376 + $0x4] sm:$0xf]
        %v440 = vld [vmem:[%s383] sm:$0xf]
        %v441 = vld [vmem:[%s383 + $0x4] sm:$0xf]
        %v442 = vmul.bf16 %v436, 1040203264
        %v443 = vmul.bf16 %v437, 1040203264
        %v445 = vlaneseq
        %v446 = vshrl.u32 %v445, 7
        %v447 = vsub.s32 0, %v446
        %v448 = vrot.slane %v435, %v447
        %v452 = vunpack.c.l.b16 %v442
        %v453 = vunpack.c.l.b16 %v443
        %v454 = vpack.c.b16 %v453, %v452
        %v457 = vunpack.c.l.b16 %v438
        %v458 = vunpack.c.l.b16 %v439
        %v459 = vpack.c.b16 %v458, %v457
        %vm460 = vcmask 523264
        %v462 = vsel %vm460, %v454, 0
        %v465 = vsel %vm460, %v459, 0
        %467 = vmatprep.subr.bf16.mxu0 0
        %468 = vmatpush1.bf16.xpose.msra.mxu0 0
        %469 = vmatprep.subr.bf16.mxu0 0
        %470 = vmatpush1.bf16.xpose.msra.mxu0 0
        %471 = vmatprep.subr.bf16.mxu0 0
        %472 = vmatpush1.bf16.xpose.msra.mxu0 0
        %473 = vmatprep.subr.bf16.mxu0 0
        %474 = vmatpush1.bf16.xpose.msra.mxu0 0
        %475 = vmatprep.subr.bf16.mxu0 0
        %476 = vmatpush1.bf16.xpose.msra.mxu0 0
        %477 = vmatprep.subr.bf16.mxu0 0
        %478 = vmatpush1.bf16.xpose.msra.mxu0 0
        %479 = vmatprep.subr.bf16.mxu0 0
        %480 = vmatpush1.bf16.xpose.msra.mxu0 0
        %481 = vmatprep.subr.bf16.mxu0 0
        %482 = vmatpush1.bf16.xpose.msra.mxu0 %v465
        %483 = vmatprep.subr.bf16.mxu0 0
        %484 = vmatpush2.bf16.xpose.msra.mxu0 0
        %485 = vmatprep.subr.bf16.mxu0 0
        %486 = vmatpush2.bf16.xpose.msra.mxu0 0
        %487 = vmatprep.subr.bf16.mxu0 0
        %488 = vmatpush2.bf16.xpose.msra.mxu0 0
        %489 = vmatprep.subr.bf16.mxu0 0
        %490 = vmatpush2.bf16.xpose.msra.mxu0 0
        %491 = vmatprep.subr.bf16.mxu0 0
        %492 = vmatpush2.bf16.xpose.msra.mxu0 0
        %493 = vmatprep.subr.bf16.mxu0 0
        %494 = vmatpush2.bf16.xpose.msra.mxu0 0
        %495 = vmatprep.subr.bf16.mxu0 0
        %496 = vmatpush2.bf16.xpose.msra.mxu0 0
        %497 = vmatprep.subr.bf16.mxu0 0
        %498 = vmatpush2.bf16.xpose.msra.mxu0 0
        %499 = vmatprep.mubr.bf16.mxu0 0
        %500 = vmatmul.mubr.bf16.gmra.mxu0 %v462
        %v501 = vpop.f32.mrf.mxu0
        %v502 = vadd.f32 %v448, %v501
        %v503 = vpop.f32.mrf.mxu0
        %v504 = vpop.f32.mrf.mxu0
        %v505 = vadd.f32 %v448, %v504
        %v506 = vpop.f32.mrf.mxu0
        %507 = vdwg.mxu0
        %vm508 = vcmask 130048
        %v509 = vsel %vm508, %v502, -inf
        %510 = vmax.xlane.f32.xlu0 %v509
        %v511 = vpop.xlane.xlu0 %510
        %v512 = vsel %vm508, %v505, -inf
        %513 = vmax.xlane.f32.xlu0 %v512
        %v514 = vpop.xlane.xlu0 %513
        %v515 = vsub.f32 %v502, %v511
        %v516 = vsub.f32 %v505, %v514
        %v517 = vmul.f32 %v515, 1.442695
        %v518 = vpow.pop %v517
        %v519 = vmul.f32 %v516, 1.442695
        %v520 = vpow.pop %v519
        %v521 = vsel %vm508, %v518, 0.0
        %522 = vadd.xlane.f32.xlu0 %v521
        %v523 = vpop.xlane.xlu0 %522
        %v524 = vsel %vm508, %v520, 0.0
        %525 = vadd.xlane.f32.xlu0 %v524
        %v526 = vpop.xlane.xlu0 %525
        %v527 = vrcp.pop %v523
        %v528 = vrcp.pop %v526
        %v529 = vmul.f32 %v518, %v527
        %v530 = vmul.f32 %v520, %v528
        %v531 = vpack.c.bf16 %v530, %v529
        %v534 = vunpack.c.l.b16 %v440
        %v535 = vunpack.c.l.b16 %v441
        %v536 = vpack.c.b16 %v535, %v534
        %v539 = vsel %vm508, %v531, 0
        %541 = vmatprep.subr.bf16.mxu0 0
        %542 = vmatpush1.bf16.msra.mxu0 0
        %543 = vmatprep.subr.bf16.mxu0 0
        %544 = vmatpush1.bf16.msra.mxu0 0
        %545 = vmatprep.subr.bf16.mxu0 0
        %546 = vmatpush1.bf16.msra.mxu0 0
        %547 = vmatprep.subr.bf16.mxu0 0
        %548 = vmatpush1.bf16.msra.mxu0 0
        %549 = vmatprep.subr.bf16.mxu0 0
        %550 = vmatpush1.bf16.msra.mxu0 0
        %551 = vmatprep.subr.bf16.mxu0 0
        %552 = vmatpush1.bf16.msra.mxu0 0
        %553 = vmatprep.subr.bf16.mxu0 0
        %554 = vmatpush1.bf16.msra.mxu0 0
        %555 = vmatprep.subr.bf16.mxu0 0
        %556 = vmatpush1.bf16.msra.mxu0 %v536
        %557 = vmatprep.subr.bf16.mxu0 0
        %558 = vmatpush2.bf16.msra.mxu0 0
        %559 = vmatprep.subr.bf16.mxu0 0
        %560 = vmatpush2.bf16.msra.mxu0 0
        %561 = vmatprep.subr.bf16.mxu0 0
        %562 = vmatpush2.bf16.msra.mxu0 0
        %563 = vmatprep.subr.bf16.mxu0 0
        %564 = vmatpush2.bf16.msra.mxu0 0
        %565 = vmatprep.subr.bf16.mxu0 0
        %566 = vmatpush2.bf16.msra.mxu0 0
        %567 = vmatprep.subr.bf16.mxu0 0
        %568 = vmatpush2.bf16.msra.mxu0 0
        %569 = vmatprep.subr.bf16.mxu0 0
        %570 = vmatpush2.bf16.msra.mxu0 0
        %571 = vmatprep.subr.bf16.mxu0 0
        %572 = vmatpush2.bf16.msra.mxu0 0
        %573 = vmatprep.mubr.bf16.mxu0 0
        %574 = vmatmul.mubr.bf16.gmra.mxu0 %v539
        %v575 = vpop.f32.mrf.mxu0
        %v576 = vadd.f32 0.0, %v575
        %v577 = vpop.f32.mrf.mxu0
        %v578 = vpop.f32.mrf.mxu0
        %v579 = vadd.f32 0.0, %v578
        %v580 = vpop.f32.mrf.mxu0
        %581 = vdwg.mxu0
        %582 = vrot.lane.b32.xlu0 %v454, 64
        %v583 = vpop.permute.xlu0 %582
        %584 = vrot.lane.b32.xlu0 %v459, 64
        %v585 = vpop.permute.xlu0 %584
        %v587 = vsel %vm460, %v583, 0
        %v590 = vsel %vm460, %v585, 0
        %592 = vmatprep.subr.bf16.mxu0 0
        %593 = vmatpush1.bf16.xpose.msra.mxu0 0
        %594 = vmatprep.subr.bf16.mxu0 0
        %595 = vmatpush1.bf16.xpose.msra.mxu0 0
        %596 = vmatprep.subr.bf16.mxu0 0
        %597 = vmatpush1.bf16.xpose.msra.mxu0 0
        %598 = vmatprep.subr.bf16.mxu0 0
        %599 = vmatpush1.bf16.xpose.msra.mxu0 0
        %600 = vmatprep.subr.bf16.mxu0 0
        %601 = vmatpush1.bf16.xpose.msra.mxu0 0
        %602 = vmatprep.subr.bf16.mxu0 0
        %603 = vmatpush1.bf16.xpose.msra.mxu0 0
        %604 = vmatprep.subr.bf16.mxu0 0
        %605 = vmatpush1.bf16.xpose.msra.mxu0 0
        %606 = vmatprep.subr.bf16.mxu0 0
        %607 = vmatpush1.bf16.xpose.msra.mxu0 %v590
        %608 = vmatprep.subr.bf16.mxu0 0
        %609 = vmatpush2.bf16.xpose.msra.mxu0 0
        %610 = vmatprep.subr.bf16.mxu0 0
        %611 = vmatpush2.bf16.xpose.msra.mxu0 0
        %612 = vmatprep.subr.bf16.mxu0 0
        %613 = vmatpush2.bf16.xpose.msra.mxu0 0
        %614 = vmatprep.subr.bf16.mxu0 0
        %615 = vmatpush2.bf16.xpose.msra.mxu0 0
        %616 = vmatprep.subr.bf16.mxu0 0
        %617 = vmatpush2.bf16.xpose.msra.mxu0 0
        %618 = vmatprep.subr.bf16.mxu0 0
        %619 = vmatpush2.bf16.xpose.msra.mxu0 0
        %620 = vmatprep.subr.bf16.mxu0 0
        %621 = vmatpush2.bf16.xpose.msra.mxu0 0
        %622 = vmatprep.subr.bf16.mxu0 0
        %623 = vmatpush2.bf16.xpose.msra.mxu0 0
        %624 = vmatprep.mubr.bf16.mxu0 0
        %625 = vmatmul.mubr.bf16.gmra.mxu0 %v587
        %v626 = vpop.f32.mrf.mxu0
        %v627 = vadd.f32 %v448, %v626
        %v628 = vpop.f32.mrf.mxu0
        %v629 = vpop.f32.mrf.mxu0
        %v630 = vadd.f32 %v448, %v629
        %v631 = vpop.f32.mrf.mxu0
        %632 = vdwg.mxu0
        %v633 = vsel %vm508, %v627, -inf
        %634 = vmax.xlane.f32.xlu0 %v633
        %v635 = vpop.xlane.xlu0 %634
        %v636 = vsel %vm508, %v630, -inf
        %637 = vmax.xlane.f32.xlu0 %v636
        %v638 = vpop.xlane.xlu0 %637
        %v639 = vsub.f32 %v627, %v635
        %v640 = vsub.f32 %v630, %v638
        %v641 = vmul.f32 %v639, 1.442695
        %v642 = vpow.pop %v641
        %v643 = vmul.f32 %v640, 1.442695
        %v644 = vpow.pop %v643
        %v645 = vsel %vm508, %v642, 0.0
        %646 = vadd.xlane.f32.xlu0 %v645
        %v647 = vpop.xlane.xlu0 %646
        %v648 = vsel %vm508, %v644, 0.0
        %649 = vadd.xlane.f32.xlu0 %v648
        %v650 = vpop.xlane.xlu0 %649
        %v651 = vrcp.pop %v647
        %v652 = vrcp.pop %v650
        %v653 = vmul.f32 %v642, %v651
        %v654 = vmul.f32 %v644, %v652
        %v655 = vpack.c.bf16 %v654, %v653
        %656 = vrot.lane.b32.xlu0 %v536, 64
        %v657 = vpop.permute.xlu0 %656
        %v660 = vsel %vm508, %v655, 0
        %662 = vmatprep.subr.bf16.mxu0 0
        %663 = vmatpush1.bf16.msra.mxu0 0
        %664 = vmatprep.subr.bf16.mxu0 0
        %665 = vmatpush1.bf16.msra.mxu0 0
        %666 = vmatprep.subr.bf16.mxu0 0
        %667 = vmatpush1.bf16.msra.mxu0 0
        %668 = vmatprep.subr.bf16.mxu0 0
        %669 = vmatpush1.bf16.msra.mxu0 0
        %670 = vmatprep.subr.bf16.mxu0 0
        %671 = vmatpush1.bf16.msra.mxu0 0
        %672 = vmatprep.subr.bf16.mxu0 0
        %673 = vmatpush1.bf16.msra.mxu0 0
        %674 = vmatprep.subr.bf16.mxu0 0
        %675 = vmatpush1.bf16.msra.mxu0 0
        %676 = vmatprep.subr.bf16.mxu0 0
        %677 = vmatpush1.bf16.msra.mxu0 %v657
        %678 = vmatprep.subr.bf16.mxu0 0
        %679 = vmatpush2.bf16.msra.mxu0 0
        %680 = vmatprep.subr.bf16.mxu0 0
        %681 = vmatpush2.bf16.msra.mxu0 0
        %682 = vmatprep.subr.bf16.mxu0 0
        %683 = vmatpush2.bf16.msra.mxu0 0
        %684 = vmatprep.subr.bf16.mxu0 0
        %685 = vmatpush2.bf16.msra.mxu0 0
        %686 = vmatprep.subr.bf16.mxu0 0
        %687 = vmatpush2.bf16.msra.mxu0 0
        %688 = vmatprep.subr.bf16.mxu0 0
        %689 = vmatpush2.bf16.msra.mxu0 0
        %690 = vmatprep.subr.bf16.mxu0 0
        %691 = vmatpush2.bf16.msra.mxu0 0
        %692 = vmatprep.subr.bf16.mxu0 0
        %693 = vmatpush2.bf16.msra.mxu0 0
        %694 = vmatprep.mubr.bf16.mxu0 0
        %695 = vmatmul.mubr.bf16.gmra.mxu0 %v660
        %v696 = vpop.f32.mrf.mxu0
        %v697 = vadd.f32 0.0, %v696
        %v698 = vpop.f32.mrf.mxu0
        %v699 = vpop.f32.mrf.mxu0
        %v700 = vadd.f32 0.0, %v699
        %v701 = vpop.f32.mrf.mxu0
        %702 = vdwg.mxu0
        %705 = vrot.lane.b32.xlu0 %v697, 64
        %v706 = vpop.permute.xlu0 %705
        %707 = vrot.lane.b32.xlu0 %v700, 64
        %v708 = vpop.permute.xlu0 %707
        %v711 = vsel %vm460, %v576, %v706
        %v712 = vsel %vm460, %v579, %v708
        %v713 = vpack.c.bf16 %v712, %v711
        %v715 = vunpack.c.l.b16 %v713
        %v716 = vunpack.c.h.b16 %v713
        %v717 = vpack.c.b16 %v715, %v715
        %v718 = vpack.c.b16 %v716, %v716
        %721 = vst [vmem:[%s432] sm:$0xf] %v717
        %722 = vst [vmem:[%s432 + $0x4] sm:$0xf] %v718
        %p723 = scmp.lt.s32.totalorder %s19, 1
        %s724 = scalar_select %p723, %s19, 1
        %p725 = scmp.lt.s32.totalorder %s20, 0
        %s726 = scalar_select %p725, %s20, 0
        %s727 = smul.addr %s724, 2
        %s728 = sadd.s32 %s726, %s727
        %s729 = smul.addr %s728, 4
        %s730 = scalar_lea.vmem %s4, %s729
        // Predicated region
        $region160: #{combine_bert_forward.12} parent=146 // pred_check
          %p731 = pneg %p161
        $region161: #{combine_bert_forward.12} parent=146 // pred_check_branch
          %733 = sbr.rel (%p731) target = $region163
        $region162: #{combine_bert_forward.12} parent=146 // pred_region
          _
        $region163: #{combine_bert_forward.12} parent=146 // pred_fallthru
          _
      $region147: #{combine_bert_forward.12} parent=5 // pred_fallthru
        _
      %p734 = scmp.le.s32.totalorder 2, %s10
      // Predicated region
      $region164: #{combine_bert_forward.12} parent=5 // pred_check
        %p735 = pneg %p734
      $region165: #{combine_bert_forward.12} parent=5 // pred_check_branch
        %737 = sbr.rel (%p735) target = $region167
      $region166: #{combine_bert_forward.12} parent=5 // pred_region
        %s738 = ssub.s32 %s10, 2
        // Predicated region
        $region168: #{combine_bert_forward.12} parent=166 // pred_check
          %p739 = pneg %p167
        $region169: #{combine_bert_forward.12} parent=166 // pred_check_branch
          %741 = sbr.rel (%p739) target = $region171
        $region170: #{combine_bert_forward.12} parent=166 // pred_region
          %p742 = scmp.lt.s32.totalorder %s21, 1
          %s743 = scalar_select %p742, %s21, 1
          %p744 = scmp.lt.s32.totalorder %s22, 0
          %s745 = scalar_select %p744, %s22, 0
          %s746 = smul.addr %s743, 2
          %s747 = sadd.s32 %s745, %s746
          %s748 = smul.addr %s747, 4
          %s749 = scalar_lea.vmem %s4, %s748
        $region171: #{combine_bert_forward.12} parent=166 // pred_fallthru
          _
      $region167: #{combine_bert_forward.12} parent=5 // pred_fallthru
        _
    $region6: #{combine_bert_forward.12} parent=1 // loop_footer
      %s14 = sadd.s32 1, %s10
    $region7: #{combine_bert_forward.12} parent=1 // loop_footer_branch
      %9 = sbr.rel target = $region3
    $region8: #{combine_bert_forward.12} parent=1 // loop_exit
      _

// kernel: combine_bert_forward.11
$region0: #{combine_bert_forward.11}
  #allocation0 [shape = 'u32[]', space=smem, size = 0x4, offset = 0x4, fixed_abs, tag = 'smem constant byte address 0x4 - core index']
  #allocation1 [shape = 'u32[144,128]{1,0:T(1,128)}', space=vmem, size = 0x12000, scoped, tag = 'internal scratch']
  %s0 = inlined_call_operand.vmem [shape: bf16[32,128], index: 0, kind: input, shape index: {}]
  %s1 = inlined_call_operand.vmem [shape: bf16[128,384], index: 1, kind: input, shape index: {}]
  %s2 = inlined_call_operand.vmem [shape: f32[1,384], index: 2, kind: input, shape index: {}]
  %s3 = inlined_call_operand.vmem [shape: bf16[32,384], index: 3, kind: output, shape index: {}]
  %s4 = sld [smem:[#allocation0]]
  $region22: #{combine_bert_forward.11} parent=0
    _
  %s6 = ssub.s32 1, %s4
  %s7 = scalar_select 0, %s6, %s4
  // Predicated region
  $region2: #{combine_bert_forward.11} parent=0 // pred_check
    _
  $region3: #{combine_bert_forward.11} parent=0 // pred_check_branch
    %9 = sbr.rel (0) target = $region5
  $region4: #{combine_bert_forward.11} parent=0 // pred_region
    _
  $region5: #{combine_bert_forward.11} parent=0 // pred_fallthru
    _
  // Predicated region
  $region6: #{combine_bert_forward.11} parent=0 // pred_check
    _
  $region7: #{combine_bert_forward.11} parent=0 // pred_check_branch
    %11 = sbr.rel (0) target = $region9
  $region8: #{combine_bert_forward.11} parent=0 // pred_region
    _
  $region9: #{combine_bert_forward.11} parent=0 // pred_fallthru
    _
  // Predicated region
  $region10: #{combine_bert_forward.11} parent=0 // pred_check
    _
  $region11: #{combine_bert_forward.11} parent=0 // pred_check_branch
    %13 = sbr.rel (0) target = $region13
  $region12: #{combine_bert_forward.11} parent=0 // pred_region
    _
  $region13: #{combine_bert_forward.11} parent=0 // pred_fallthru
    _
  %v15 = vld [vmem:[%s0] sm:$0xf]
  %v16 = vld [vmem:[%s0 + $0x4] sm:$0xf]
  %v17 = vld [vmem:[%s0 + $0x8] sm:$0xf]
  %v18 = vld [vmem:[%s0 + $0xc] sm:$0xf]
  %v19 = vld [vmem:[%s1] sm:$0xff]
  %v20 = vld [vmem:[%s1 + $0x8] sm:$0xf]
  %v21 = vld [vmem:[%s1 + $0xc] sm:$0xff]
  %v22 = vld [vmem:[%s1 + $0x14] sm:$0xf]
  %v23 = vld [vmem:[%s1 + $0x18] sm:$0xff]
  %v24 = vld [vmem:[%s1 + $0x20] sm:$0xf]
  %v25 = vld [vmem:[%s1 + $0x24] sm:$0xff]
  %v26 = vld [vmem:[%s1 + $0x2c] sm:$0xf]
  %v27 = vld [vmem:[%s1 + $0x30] sm:$0xff]
  %v28 = vld [vmem:[%s1 + $0x38] sm:$0xf]
  %v29 = vld [vmem:[%s1 + $0x3c] sm:$0xff]
  %v30 = vld [vmem:[%s1 + $0x44] sm:$0xf]
  %v31 = vld [vmem:[%s1 + $0x48] sm:$0xff]
  %v32 = vld [vmem:[%s1 + $0x50] sm:$0xf]
  %v33 = vld [vmem:[%s1 + $0x54] sm:$0xff]
  %v34 = vld [vmem:[%s1 + $0x5c] sm:$0xf]
  %v35 = vld [vmem:[%s1 + $0x60] sm:$0xff]
  %v36 = vld [vmem:[%s1 + $0x68] sm:$0xf]
  %v37 = vld [vmem:[%s1 + $0x6c] sm:$0xff]
  %v38 = vld [vmem:[%s1 + $0x74] sm:$0xf]
  %v39 = vld [vmem:[%s1 + $0x78] sm:$0xff]
  %v40 = vld [vmem:[%s1 + $0x80] sm:$0xf]
  %v41 = vld [vmem:[%s1 + $0x84] sm:$0xff]
  %v42 = vld [vmem:[%s1 + $0x8c] sm:$0xf]
  %v43 = vld [vmem:[%s1 + $0x90] sm:$0xff]
  %v44 = vld [vmem:[%s1 + $0x98] sm:$0xf]
  %v45 = vld [vmem:[%s1 + $0x9c] sm:$0xff]
  %v46 = vld [vmem:[%s1 + $0xa4] sm:$0xf]
  %v47 = vld [vmem:[%s1 + $0xa8] sm:$0xff]
  %v48 = vld [vmem:[%s1 + $0xb0] sm:$0xf]
  %v49 = vld [vmem:[%s1 + $0xb4] sm:$0xff]
  %v50 = vld [vmem:[%s1 + $0xbc] sm:$0xf]
  %v51 = vld [vmem:[%s2] sm:$0x7]
  %v53 = vlaneseq
  %v54 = vshrl.u32 %v53, 7
  %v55 = vsub.s32 0, %v54
  %v56 = vrot.slane %v51, %v55
  %v57 = vlaneseq
  %v58 = vshrl.u32 %v57, 7
  %v59 = vsub.s32 1, %v58
  %v60 = vrot.slane %v51, %v59
  %v61 = vlaneseq
  %v62 = vshrl.u32 %v61, 7
  %v63 = vsub.s32 2, %v62
  %v64 = vrot.slane %v51, %v63
  %v72 = vunpack.c.l.b16 %v15
  %v73 = vunpack.c.l.b16 %v16
  %v74 = vunpack.c.l.b16 %v17
  %v75 = vunpack.c.l.b16 %v18
  %v76 = vpack.c.b16 %v73, %v72
  %v77 = vpack.c.b16 %v75, %v74
  %v112 = vunpack.c.l.b16 %v19
  %v113 = vunpack.c.h.b16 %v19
  %v114 = vunpack.c.l.b16 %v20
  %v115 = vunpack.c.l.b16 %v21
  %v116 = vunpack.c.h.b16 %v21
  %v117 = vunpack.c.l.b16 %v22
  %v118 = vunpack.c.l.b16 %v23
  %v119 = vunpack.c.h.b16 %v23
  %v120 = vunpack.c.l.b16 %v24
  %v121 = vunpack.c.l.b16 %v25
  %v122 = vunpack.c.h.b16 %v25
  %v123 = vunpack.c.l.b16 %v26
  %v124 = vunpack.c.l.b16 %v27
  %v125 = vunpack.c.h.b16 %v27
  %v126 = vunpack.c.l.b16 %v28
  %v127 = vunpack.c.l.b16 %v29
  %v128 = vunpack.c.h.b16 %v29
  %v129 = vunpack.c.l.b16 %v30
  %v130 = vunpack.c.l.b16 %v31
  %v131 = vunpack.c.h.b16 %v31
  %v132 = vunpack.c.l.b16 %v32
  %v133 = vunpack.c.l.b16 %v33
  %v134 = vunpack.c.h.b16 %v33
  %v135 = vunpack.c.l.b16 %v34
  %v136 = vunpack.c.l.b16 %v35
  %v137 = vunpack.c.h.b16 %v35
  %v138 = vunpack.c.l.b16 %v36
  %v139 = vunpack.c.l.b16 %v37
  %v140 = vunpack.c.h.b16 %v37
  %v141 = vunpack.c.l.b16 %v38
  %v142 = vunpack.c.l.b16 %v39
  %v143 = vunpack.c.h.b16 %v39
  %v144 = vunpack.c.l.b16 %v40
  %v145 = vunpack.c.l.b16 %v41
  %v146 = vunpack.c.h.b16 %v41
  %v147 = vunpack.c.l.b16 %v42
  %v148 = vunpack.c.l.b16 %v43
  %v149 = vunpack.c.h.b16 %v43
  %v150 = vunpack.c.l.b16 %v44
  %v151 = vunpack.c.l.b16 %v45
  %v152 = vunpack.c.h.b16 %v45
  %v153 = vunpack.c.l.b16 %v46
  %v154 = vunpack.c.l.b16 %v47
  %v155 = vunpack.c.h.b16 %v47
  %v156 = vunpack.c.l.b16 %v48
  %v157 = vunpack.c.l.b16 %v49
  %v158 = vunpack.c.h.b16 %v49
  %v159 = vunpack.c.l.b16 %v50
  %v160 = vpack.c.b16 %v115, %v112
  %v161 = vpack.c.b16 %v116, %v113
  %v162 = vpack.c.b16 %v117, %v114
  %v163 = vpack.c.b16 %v121, %v118
  %v164 = vpack.c.b16 %v122, %v119
  %v165 = vpack.c.b16 %v123, %v120
  %v166 = vpack.c.b16 %v127, %v124
  %v167 = vpack.c.b16 %v128, %v125
  %v168 = vpack.c.b16 %v129, %v126
  %v169 = vpack.c.b16 %v133, %v130
  %v170 = vpack.c.b16 %v134, %v131
  %v171 = vpack.c.b16 %v135, %v132
  %v172 = vpack.c.b16 %v139, %v136
  %v173 = vpack.c.b16 %v140, %v137
  %v174 = vpack.c.b16 %v141, %v138
  %v175 = vpack.c.b16 %v145, %v142
  %v176 = vpack.c.b16 %v146, %v143
  %v177 = vpack.c.b16 %v147, %v144
  %v178 = vpack.c.b16 %v151, %v148
  %v179 = vpack.c.b16 %v152, %v149
  %v180 = vpack.c.b16 %v153, %v150
  %v181 = vpack.c.b16 %v157, %v154
  %v182 = vpack.c.b16 %v158, %v155
  %v183 = vpack.c.b16 %v159, %v156
  %208 = vmatprep.subr.bf16.mxu0 %v182
  %209 = vmatpush1.bf16.msra.mxu0 %v181
  %210 = vmatprep.subr.bf16.mxu0 %v179
  %211 = vmatpush1.bf16.msra.mxu0 %v178
  %212 = vmatprep.subr.bf16.mxu0 %v176
  %213 = vmatpush1.bf16.msra.mxu0 %v175
  %214 = vmatprep.subr.bf16.mxu0 %v173
  %215 = vmatpush1.bf16.msra.mxu0 %v172
  %216 = vmatprep.subr.bf16.mxu0 %v170
  %217 = vmatpush1.bf16.msra.mxu0 %v169
  %218 = vmatprep.subr.bf16.mxu0 %v167
  %219 = vmatpush1.bf16.msra.mxu0 %v166
  %220 = vmatprep.subr.bf16.mxu0 %v164
  %221 = vmatpush1.bf16.msra.mxu0 %v163
  %222 = vmatprep.subr.bf16.mxu0 %v161
  %223 = vmatpush1.bf16.msra.mxu0 %v160
  %224 = vmatprep.subr.bf16.mxu0 0
  %225 = vmatpush2.bf16.msra.mxu0 0
  %226 = vmatprep.subr.bf16.mxu0 0
  %227 = vmatpush2.bf16.msra.mxu0 0
  %228 = vmatprep.subr.bf16.mxu0 0
  %229 = vmatpush2.bf16.msra.mxu0 0
  %230 = vmatprep.subr.bf16.mxu0 0
  %231 = vmatpush2.bf16.msra.mxu0 0
  %232 = vmatprep.subr.bf16.mxu0 0
  %233 = vmatpush2.bf16.msra.mxu0 0
  %234 = vmatprep.subr.bf16.mxu0 0
  %235 = vmatpush2.bf16.msra.mxu0 0
  %236 = vmatprep.subr.bf16.mxu0 0
  %237 = vmatpush2.bf16.msra.mxu0 0
  %238 = vmatprep.subr.bf16.mxu0 0
  %239 = vmatpush2.bf16.msra.mxu0 0
  %240 = vmatprep.mubr.bf16.mxu0 0
  %241 = vmatmul.mubr.bf16.gmra.mxu0 %v76
  %v242 = vpop.f32.mrf.mxu0
  %v243 = vadd.f32 %v56, %v242
  %v244 = vpop.f32.mrf.mxu0
  %v245 = vadd.f32 %v60, %v244
  %v246 = vpop.f32.mrf.mxu0
  %v247 = vadd.f32 %v56, %v246
  %v248 = vpop.f32.mrf.mxu0
  %v249 = vadd.f32 %v60, %v248
  %250 = vmatprep.mubr.bf16.mxu0 0
  %251 = vmatmul.mubr.bf16.gmra.mxu0 %v77
  %v252 = vpop.f32.mrf.mxu0
  %v253 = vadd.f32 %v56, %v252
  %v254 = vpop.f32.mrf.mxu0
  %v255 = vadd.f32 %v60, %v254
  %v256 = vpop.f32.mrf.mxu0
  %v257 = vadd.f32 %v56, %v256
  %v258 = vpop.f32.mrf.mxu0
  %v259 = vadd.f32 %v60, %v258
  %260 = vdwg.mxu0
  %261 = vmatprep.subr.bf16.mxu0 0
  %262 = vmatpush1.bf16.msra.mxu0 %v183
  %263 = vmatprep.subr.bf16.mxu0 0
  %264 = vmatpush1.bf16.msra.mxu0 %v180
  %265 = vmatprep.subr.bf16.mxu0 0
  %266 = vmatpush1.bf16.msra.mxu0 %v177
  %267 = vmatprep.subr.bf16.mxu0 0
  %268 = vmatpush1.bf16.msra.mxu0 %v174
  %269 = vmatprep.subr.bf16.mxu0 0
  %270 = vmatpush1.bf16.msra.mxu0 %v171
  %271 = vmatprep.subr.bf16.mxu0 0
  %272 = vmatpush1.bf16.msra.mxu0 %v168
  %273 = vmatprep.subr.bf16.mxu0 0
  %274 = vmatpush1.bf16.msra.mxu0 %v165
  %275 = vmatprep.subr.bf16.mxu0 0
  %276 = vmatpush1.bf16.msra.mxu0 %v162
  %277 = vmatprep.subr.bf16.mxu0 0
  %278 = vmatpush2.bf16.msra.mxu0 0
  %279 = vmatprep.subr.bf16.mxu0 0
  %280 = vmatpush2.bf16.msra.mxu0 0
  %281 = vmatprep.subr.bf16.mxu0 0
  %282 = vmatpush2.bf16.msra.mxu0 0
  %283 = vmatprep.subr.bf16.mxu0 0
  %284 = vmatpush2.bf16.msra.mxu0 0
  %285 = vmatprep.subr.bf16.mxu0 0
  %286 = vmatpush2.bf16.msra.mxu0 0
  %287 = vmatprep.subr.bf16.mxu0 0
  %288 = vmatpush2.bf16.msra.mxu0 0
  %289 = vmatprep.subr.bf16.mxu0 0
  %290 = vmatpush2.bf16.msra.mxu0 0
  %291 = vmatprep.subr.bf16.mxu0 0
  %292 = vmatpush2.bf16.msra.mxu0 0
  %293 = vmatprep.mubr.bf16.mxu0 0
  %294 = vmatmul.mubr.bf16.gmra.mxu0 %v76
  %v295 = vpop.f32.mrf.mxu0
  %v296 = vadd.f32 %v64, %v295
  %v297 = vpop.f32.mrf.mxu0
  %v298 = vpop.f32.mrf.mxu0
  %v299 = vadd.f32 %v64, %v298
  %v300 = vpop.f32.mrf.mxu0
  %301 = vmatprep.mubr.bf16.mxu0 0
  %302 = vmatmul.mubr.bf16.gmra.mxu0 %v77
  %v303 = vpop.f32.mrf.mxu0
  %v304 = vadd.f32 %v64, %v303
  %v305 = vpop.f32.mrf.mxu0
  %v306 = vpop.f32.mrf.mxu0
  %v307 = vadd.f32 %v64, %v306
  %v308 = vpop.f32.mrf.mxu0
  %309 = vdwg.mxu0
  %v310 = vpack.c.bf16 %v247, %v243
  %v311 = vpack.c.bf16 %v249, %v245
  %v312 = vpack.c.bf16 %v299, %v296
  %v313 = vpack.c.bf16 %v257, %v253
  %v314 = vpack.c.bf16 %v259, %v255
  %v315 = vpack.c.bf16 %v307, %v304
  %v322 = vunpack.c.l.b16 %v310
  %v323 = vunpack.c.l.b16 %v311
  %v324 = vunpack.c.l.b16 %v312
  %v325 = vunpack.c.h.b16 %v310
  %v326 = vunpack.c.h.b16 %v311
  %v327 = vunpack.c.h.b16 %v312
  %v328 = vunpack.c.l.b16 %v313
  %v329 = vunpack.c.l.b16 %v314
  %v330 = vunpack.c.l.b16 %v315
  %v331 = vunpack.c.h.b16 %v313
  %v332 = vunpack.c.h.b16 %v314
  %v333 = vunpack.c.h.b16 %v315
  %v334 = vpack.c.b16 %v323, %v322
  %v335 = vpack.c.b16 %v324, %v324
  %v336 = vpack.c.b16 %v326, %v325
  %v337 = vpack.c.b16 %v327, %v327
  %v338 = vpack.c.b16 %v329, %v328
  %v339 = vpack.c.b16 %v330, %v330
  %v340 = vpack.c.b16 %v332, %v331
  %v341 = vpack.c.b16 %v333, %v333
  %350 = vst [vmem:[%s3] sm:$0xff] %v334
  %351 = vst [vmem:[%s3 + $0x8] sm:$0xf] %v335
  %352 = vst [vmem:[%s3 + $0xc] sm:$0xff] %v336
  %353 = vst [vmem:[%s3 + $0x14] sm:$0xf] %v337
  %354 = vst [vmem:[%s3 + $0x18] sm:$0xff] %v338
  %355 = vst [vmem:[%s3 + $0x20] sm:$0xf] %v339
  %356 = vst [vmem:[%s3 + $0x24] sm:$0xff] %v340
  %357 = vst [vmem:[%s3 + $0x2c] sm:$0xf] %v341
  // Predicated region
  $region14: #{combine_bert_forward.11} parent=0 // pred_check
    _
  $region15: #{combine_bert_forward.11} parent=0 // pred_check_branch
    %359 = sbr.rel (0) target = $region17
  $region16: #{combine_bert_forward.11} parent=0 // pred_region
    _
  $region17: #{combine_bert_forward.11} parent=0 // pred_fallthru
    _
  // Predicated region
  $region18: #{combine_bert_forward.11} parent=0 // pred_check
    _
  $region19: #{combine_bert_forward.11} parent=0 // pred_check_branch
    %361 = sbr.rel (0) target = $region21
  $region20: #{combine_bert_forward.11} parent=0 // pred_region
    _
  $region21: #{combine_bert_forward.11} parent=0 // pred_fallthru
    _

// kernel: combine_bert_forward.16
$region0: #{combine_bert_forward.16}
  #allocation0 [shape = 'u32[]', space=smem, size = 0x4, offset = 0x4, fixed_abs, tag = 'smem constant byte address 0x4 - core index']
  #allocation1 [shape = 'u32[144,128]{1,0:T(1,128)}', space=vmem, size = 0x12000, scoped, tag = 'internal scratch']
  %s0 = inlined_call_operand.vmem [shape: bf16[2,16,384], index: 0, kind: input, shape index: {}, may-alias: {0,1,2}]
  %s1 = inlined_call_operand.vmem [shape: bf16[2,16,384], index: 1, kind: input, shape index: {}, may-alias: {0,1,2}]
  %s2 = inlined_call_operand.vmem [shape: bf16[2,16,384], index: 2, kind: input, shape index: {}, may-alias: {0,1,2}]
  %s3 = inlined_call_operand.vmem [shape: bf16[2,16,128], index: 3, kind: output, shape index: {}]
  %s4 = sld [smem:[#allocation0]]
  $region168: #{combine_bert_forward.16} parent=0
    _
  %s6 = ssub.s32 1, %s4
  %s7 = scalar_select 0, %s6, %s4
  $region1: #{combine_bert_forward.16} parent=0
    #allocation2 [shape = 'u8[8192]{0}', space=vmem, size = 0x2000, scoped, tag = 'input window, operand 0']
    #allocation3 [shape = 'u8[8192]{0}', space=vmem, size = 0x2000, scoped, tag = 'input window, operand 1']
    #allocation4 [shape = 'u8[8192]{0}', space=vmem, size = 0x2000, scoped, tag = 'input window, operand 2']
    loop: start=0, step=1, limit=4
    $region2: #{combine_bert_forward.16} parent=1 // loop_pre_header
      _
    $region3: #{combine_bert_forward.16} parent=1 // loop_header
      %s9 = sphi 0, %s13
      %p10 = scmp.ge.s32.totalorder %s9, 4
      %s16 = sphi 0, %s28
      %s17 = sphi 0, %s24
      %s18 = sphi 0, %s16
      %s19 = sphi 0, %s17
      %s20 = sphi 0, %s18
      %s21 = sphi 0, %s19
      %s33 = sphi 0, %s35
      %s36 = sphi 0, %s33
      %s37 = sphi 0, %s36
      %s53 = sphi 0, %s37
      %s63 = sphi 0, %s65
      %s66 = sphi 0, %s63
      %s67 = sphi 0, %s66
      %s83 = sphi 0, %s67
      %s93 = sphi 0, %s95
      %s96 = sphi 0, %s93
      %s97 = sphi 0, %s96
      %s113 = sphi 0, %s97
      %s121 = sphi 0, %s123
      %s124 = sphi 0, %s121
      %s125 = sphi 0, %s124
      %s141 = sphi 0, %s125
    $region4: #{combine_bert_forward.16} parent=1 // loop_header_branch
      %12 = sbr.rel (%p10) target = $region8
    $region5: #{combine_bert_forward.16} parent=1 // loop_body
      %s14 = ssub.s32 %s9, 1
      %s15 = ssub.s32 %s9, 2
      %s22 = sadd.s32 1, %s17
      %p23 = scmp.ge.s32.totalorder %s22, 1
      %s24 = scalar_select %p23, 0, %s22
      %s25 = sadd.s32 1, %s16
      %s26 = scalar_select %p23, %s25, %s16
      %p27 = scmp.ge.s32.totalorder %s26, 2
      %s28 = scalar_select %p27, 0, %s26
      %s29 = ssub.s32 %s16, %s28
      %s30 = ssub.s32 %s17, %s24
      %s31 = sor.u32 %s29, %s30
      %p32 = scmp.eq.s32.totalorder %s31, 0
      %s34 = sadd.s32 %s33, 1
      %s35 = scalar_select %p32, %s33, %s34
      %p38 = pneg %p32
      %p39 = scmp.eq.s32.totalorder %s9, 1
      %p40 = por %p38, %p39
      %p41 = scmp.ne.s32.totalorder %s33, %s36
      %p42 = scmp.eq.s32.totalorder %s9, 0
      %p43 = por %p41, %p42
      %p44 = scmp.ne.s32.totalorder %s33, %s36
      %p45 = scmp.eq.s32.totalorder %s14, 1
      %p46 = por %p44, %p45
      %p47 = scmp.ne.s32.totalorder %s36, %s37
      %p48 = scmp.eq.s32.totalorder %s14, 0
      %p49 = por %p47, %p48
      %p50 = scmp.ne.s32.totalorder %s36, %s37
      %p51 = scmp.eq.s32.totalorder %s15, 1
      %p52 = por %p50, %p51
      %p54 = scmp.ne.s32.totalorder %s37, %s53
      %p55 = scmp.eq.s32.totalorder %s15, 0
      %p56 = por %p54, %p55
      %s57 = sadd.s32 %s17, 1
      %s58 = sadd.s32 %s24, 1
      %s59 = ssub.s32 %s16, %s28
      %s60 = ssub.s32 %s57, %s58
      %s61 = sor.u32 %s59, %s60
      %p62 = scmp.eq.s32.totalorder %s61, 0
      %s64 = sadd.s32 %s63, 1
      %s65 = scalar_select %p62, %s63, %s64
      %p68 = pneg %p62
      %p69 = scmp.eq.s32.totalorder %s9, 1
      %p70 = por %p68, %p69
      %p71 = scmp.ne.s32.totalorder %s63, %s66
      %p72 = scmp.eq.s32.totalorder %s9, 0
      %p73 = por %p71, %p72
      %p74 = scmp.ne.s32.totalorder %s63, %s66
      %p75 = scmp.eq.s32.totalorder %s14, 1
      %p76 = por %p74, %p75
      %p77 = scmp.ne.s32.totalorder %s66, %s67
      %p78 = scmp.eq.s32.totalorder %s14, 0
      %p79 = por %p77, %p78
      %p80 = scmp.ne.s32.totalorder %s66, %s67
      %p81 = scmp.eq.s32.totalorder %s15, 1
      %p82 = por %p80, %p81
      %p84 = scmp.ne.s32.totalorder %s67, %s83
      %p85 = scmp.eq.s32.totalorder %s15, 0
      %p86 = por %p84, %p85
      %s87 = sadd.s32 %s17, 2
      %s88 = sadd.s32 %s24, 2
      %s89 = ssub.s32 %s16, %s28
      %s90 = ssub.s32 %s87, %s88
      %s91 = sor.u32 %s89, %s90
      %p92 = scmp.eq.s32.totalorder %s91, 0
      %s94 = sadd.s32 %s93, 1
      %s95 = scalar_select %p92, %s93, %s94
      %p98 = pneg %p92
      %p99 = scmp.eq.s32.totalorder %s9, 1
      %p100 = por %p98, %p99
      %p101 = scmp.ne.s32.totalorder %s93, %s96
      %p102 = scmp.eq.s32.totalorder %s9, 0
      %p103 = por %p101, %p102
      %p104 = scmp.ne.s32.totalorder %s93, %s96
      %p105 = scmp.eq.s32.totalorder %s14, 1
      %p106 = por %p104, %p105
      %p107 = scmp.ne.s32.totalorder %s96, %s97
      %p108 = scmp.eq.s32.totalorder %s14, 0
      %p109 = por %p107, %p108
      %p110 = scmp.ne.s32.totalorder %s96, %s97
      %p111 = scmp.eq.s32.totalorder %s15, 1
      %p112 = por %p110, %p111
      %p114 = scmp.ne.s32.totalorder %s97, %s113
      %p115 = scmp.eq.s32.totalorder %s15, 0
      %p116 = por %p114, %p115
      %s117 = ssub.s32 %s16, %s28
      %s118 = ssub.s32 %s17, %s24
      %s119 = sor.u32 %s117, %s118
      %p120 = scmp.eq.s32.totalorder %s119, 0
      %s122 = sadd.s32 %s121, 1
      %s123 = scalar_select %p120, %s121, %s122
      %p126 = pneg %p120
      %p127 = scmp.eq.s32.totalorder %s9, 1
      %p128 = por %p126, %p127
      %p129 = scmp.ne.s32.totalorder %s121, %s124
      %p130 = scmp.eq.s32.totalorder %s9, 0
      %p131 = por %p129, %p130
      %p132 = scmp.ne.s32.totalorder %s121, %s124
      %p133 = scmp.eq.s32.totalorder %s14, 1
      %p134 = por %p132, %p133
      %p135 = scmp.ne.s32.totalorder %s124, %s125
      %p136 = scmp.eq.s32.totalorder %s14, 0
      %p137 = por %p135, %p136
      %p138 = scmp.ne.s32.totalorder %s124, %s125
      %p139 = scmp.eq.s32.totalorder %s15, 1
      %p140 = por %p138, %p139
      %p142 = scmp.ne.s32.totalorder %s125, %s141
      %p143 = scmp.eq.s32.totalorder %s15, 0
      %p144 = por %p142, %p143
      %p145 = scmp.le.s32.totalorder 1, %s9
      %p146 = scmp.lt.s32.totalorder %s9, 3
      %p147 = pnand %p145, %p146
      %p148 = pneg %p147
      // Predicated region
      $region9: #{combine_bert_forward.16} parent=5 // pred_check
        _
      $region10: #{combine_bert_forward.16} parent=5 // pred_check_branch
        %150 = sbr.rel (%p147) target = $region12
      $region11: #{combine_bert_forward.16} parent=5 // pred_region
        %s151 = ssub.s32 %s9, 1
      $region12: #{combine_bert_forward.16} parent=5 // pred_fallthru
        _
      %p152 = scmp.lt.s32.totalorder %s9, 2
      // Predicated region
      $region13: #{combine_bert_forward.16} parent=5 // pred_check
        %p153 = pneg %p152
      $region14: #{combine_bert_forward.16} parent=5 // pred_check_branch
        %155 = sbr.rel (%p153) target = $region16
      $region15: #{combine_bert_forward.16} parent=5 // pred_region
        // Predicated region
        $region17: #{combine_bert_forward.16} parent=15 // pred_check
          %p156 = pneg %p43
        $region18: #{combine_bert_forward.16} parent=15 // pred_check_branch
          %158 = sbr.rel (%p156) target = $region20
        $region19: #{combine_bert_forward.16} parent=15 // pred_region
          %s159 = sand.u32 %s33, 1
          %s160 = sand.u32 %s33, 1
          %s161 = smul.addr %s160, 8
          %s162 = scalar_lea.vmem [#allocation2], %s161
          %s163 = smul.addr %s16, 6
          %s164 = sadd.s32 %s17, %s163
          %s165 = smul.addr %s164, 4
          %s166 = scalar_lea.vmem %s0, %s165
          // Predicated region
          $region21: #{combine_bert_forward.16} parent=19 // pred_check
            _
          $region22: #{combine_bert_forward.16} parent=19 // pred_check_branch
            %168 = sbr.rel (0) target = $region24
          $region23: #{combine_bert_forward.16} parent=19 // pred_region
            // Predicated region
            $region25: #{combine_bert_forward.16} parent=23 // pred_check
              _
            $region26: #{combine_bert_forward.16} parent=23 // pred_check_branch
              %170 = sbr.rel target = $region28
            $region27: #{combine_bert_forward.16} parent=23 // pred_region
              // Predicated region
              $region40: #{combine_bert_forward.16} parent=27 // pred_check
                _
              $region41: #{combine_bert_forward.16} parent=27 // pred_check_branch
                %188 = sbr.rel (0) target = $region43
              $region42: #{combine_bert_forward.16} parent=27 // pred_region
                loop: start=0, step=1, limit=1
                $region44: #{combine_bert_forward.16} parent=42 // loop_pre_header
                  _
                $region45: #{combine_bert_forward.16} parent=42 // loop_header
                  %s190 = sphi 0, %s194
                  %p191 = scmp.ge.s32.totalorder %s190, 1
                  %s195 = sphi %s166, %s166
                  %s196 = sphi %s162, %s162
                $region46: #{combine_bert_forward.16} parent=42 // loop_header_branch
                  %193 = sbr.rel (%p191) target = $region50
                $region47: #{combine_bert_forward.16} parent=42 // loop_body
                  _
                $region48: #{combine_bert_forward.16} parent=42 // loop_footer
                  %s194 = sadd.s32 1, %s190
                $region49: #{combine_bert_forward.16} parent=42 // loop_footer_branch
                  %189 = sbr.rel target = $region45
                $region50: #{combine_bert_forward.16} parent=42 // loop_exit
                  _
                %s198 = ssub.s32 16, 1
                loop: start=0, step=1, limit=1
                $region51: #{combine_bert_forward.16} parent=42 // loop_pre_header
                  _
                $region52: #{combine_bert_forward.16} parent=42 // loop_header
                  %s200 = sphi 0, %s204
                  %p201 = scmp.ge.s32.totalorder %s200, 1
                  %s205 = sphi %s166, %s166
                  %s206 = sphi %s162, %s162
                $region53: #{combine_bert_forward.16} parent=42 // loop_header_branch
                  %203 = sbr.rel (%p201) target = $region57
                $region54: #{combine_bert_forward.16} parent=42 // loop_body
                  %v207 = vld [vmem:[%s205] sm:%s198]
                  %208 = vst [vmem:[%s206] sm:%s198] %v207
                  %v209 = vld [vmem:[%s205 + $0xc] sm:%s198]
                  %210 = vst [vmem:[%s206 + $0x4] sm:%s198] %v209
                $region55: #{combine_bert_forward.16} parent=42 // loop_footer
                  %s204 = sadd.s32 1, %s200
                $region56: #{combine_bert_forward.16} parent=42 // loop_footer_branch
                  %199 = sbr.rel target = $region52
                $region57: #{combine_bert_forward.16} parent=42 // loop_exit
                  _
              $region43: #{combine_bert_forward.16} parent=27 // pred_fallthru
                _
            $region28: #{combine_bert_forward.16} parent=23 // pred_fallthru
              _
            // Predicated region
            $region29: #{combine_bert_forward.16} parent=23 // pred_check
              _
            $region30: #{combine_bert_forward.16} parent=23 // pred_check_branch
              %172 = sbr.rel (0) target = $region32
            $region31: #{combine_bert_forward.16} parent=23 // pred_region
              %s174 = ssub.s32 16, 1
              loop: start=0, step=1, limit=1
              $region33: #{combine_bert_forward.16} parent=31 // loop_pre_header
                _
              $region34: #{combine_bert_forward.16} parent=31 // loop_header
                %s176 = sphi 0, %s180
                %p177 = scmp.ge.s32.totalorder %s176, 1
                %s181 = sphi %s166, %s166
                %s182 = sphi %s162, %s162
              $region35: #{combine_bert_forward.16} parent=31 // loop_header_branch
                %179 = sbr.rel (%p177) target = $region39
              $region36: #{combine_bert_forward.16} parent=31 // loop_body
                %v183 = vld [vmem:[%s181] sm:%s174]
                %184 = vst [vmem:[%s182] sm:%s174] %v183
                %v185 = vld [vmem:[%s181 + $0xc] sm:%s174]
                %186 = vst [vmem:[%s182 + $0x4] sm:%s174] %v185
              $region37: #{combine_bert_forward.16} parent=31 // loop_footer
                %s180 = sadd.s32 1, %s176
              $region38: #{combine_bert_forward.16} parent=31 // loop_footer_branch
                %175 = sbr.rel target = $region34
              $region39: #{combine_bert_forward.16} parent=31 // loop_exit
                _
            $region32: #{combine_bert_forward.16} parent=23 // pred_fallthru
              _
          $region24: #{combine_bert_forward.16} parent=19 // pred_fallthru
            _
          %211 = vnop
        $region20: #{combine_bert_forward.16} parent=15 // pred_fallthru
          _
        // Predicated region
        $region58: #{combine_bert_forward.16} parent=15 // pred_check
          %p212 = pneg %p73
        $region59: #{combine_bert_forward.16} parent=15 // pred_check_branch
          %214 = sbr.rel (%p212) target = $region61
        $region60: #{combine_bert_forward.16} parent=15 // pred_region
          %s215 = sand.u32 %s63, 1
          %s216 = sand.u32 %s63, 1
          %s217 = smul.addr %s216, 8
          %s218 = scalar_lea.vmem [#allocation3], %s217
          %s219 = sadd.s32 %s17, 1
          %s220 = smul.addr %s16, 6
          %s221 = sadd.s32 %s219, %s220
          %s222 = smul.addr %s221, 4
          %s223 = scalar_lea.vmem %s1, %s222
          // Predicated region
          $region62: #{combine_bert_forward.16} parent=60 // pred_check
            _
          $region63: #{combine_bert_forward.16} parent=60 // pred_check_branch
            %225 = sbr.rel (0) target = $region65
          $region64: #{combine_bert_forward.16} parent=60 // pred_region
            // Predicated region
            $region66: #{combine_bert_forward.16} parent=64 // pred_check
              _
            $region67: #{combine_bert_forward.16} parent=64 // pred_check_branch
              %227 = sbr.rel target = $region69
            $region68: #{combine_bert_forward.16} parent=64 // pred_region
              // Predicated region
              $region81: #{combine_bert_forward.16} parent=68 // pred_check
                _
              $region82: #{combine_bert_forward.16} parent=68 // pred_check_branch
                %245 = sbr.rel (0) target = $region84
              $region83: #{combine_bert_forward.16} parent=68 // pred_region
                loop: start=0, step=1, limit=1
                $region85: #{combine_bert_forward.16} parent=83 // loop_pre_header
                  _
                $region86: #{combine_bert_forward.16} parent=83 // loop_header
                  %s247 = sphi 0, %s251
                  %p248 = scmp.ge.s32.totalorder %s247, 1
                  %s252 = sphi %s223, %s223
                  %s253 = sphi %s218, %s218
                $region87: #{combine_bert_forward.16} parent=83 // loop_header_branch
                  %250 = sbr.rel (%p248) target = $region91
                $region88: #{combine_bert_forward.16} parent=83 // loop_body
                  _
                $region89: #{combine_bert_forward.16} parent=83 // loop_footer
                  %s251 = sadd.s32 1, %s247
                $region90: #{combine_bert_forward.16} parent=83 // loop_footer_branch
                  %246 = sbr.rel target = $region86
                $region91: #{combine_bert_forward.16} parent=83 // loop_exit
                  _
                %s255 = ssub.s32 16, 1
                loop: start=0, step=1, limit=1
                $region92: #{combine_bert_forward.16} parent=83 // loop_pre_header
                  _
                $region93: #{combine_bert_forward.16} parent=83 // loop_header
                  %s257 = sphi 0, %s261
                  %p258 = scmp.ge.s32.totalorder %s257, 1
                  %s262 = sphi %s223, %s223
                  %s263 = sphi %s218, %s218
                $region94: #{combine_bert_forward.16} parent=83 // loop_header_branch
                  %260 = sbr.rel (%p258) target = $region98
                $region95: #{combine_bert_forward.16} parent=83 // loop_body
                  %v264 = vld [vmem:[%s262] sm:%s255]
                  %265 = vst [vmem:[%s263] sm:%s255] %v264
                  %v266 = vld [vmem:[%s262 + $0xc] sm:%s255]
                  %267 = vst [vmem:[%s263 + $0x4] sm:%s255] %v266
                $region96: #{combine_bert_forward.16} parent=83 // loop_footer
                  %s261 = sadd.s32 1, %s257
                $region97: #{combine_bert_forward.16} parent=83 // loop_footer_branch
                  %256 = sbr.rel target = $region93
                $region98: #{combine_bert_forward.16} parent=83 // loop_exit
                  _
              $region84: #{combine_bert_forward.16} parent=68 // pred_fallthru
                _
            $region69: #{combine_bert_forward.16} parent=64 // pred_fallthru
              _
            // Predicated region
            $region70: #{combine_bert_forward.16} parent=64 // pred_check
              _
            $region71: #{combine_bert_forward.16} parent=64 // pred_check_branch
              %229 = sbr.rel (0) target = $region73
            $region72: #{combine_bert_forward.16} parent=64 // pred_region
              %s231 = ssub.s32 16, 1
              loop: start=0, step=1, limit=1
              $region74: #{combine_bert_forward.16} parent=72 // loop_pre_header
                _
              $region75: #{combine_bert_forward.16} parent=72 // loop_header
                %s233 = sphi 0, %s237
                %p234 = scmp.ge.s32.totalorder %s233, 1
                %s238 = sphi %s223, %s223
                %s239 = sphi %s218, %s218
              $region76: #{combine_bert_forward.16} parent=72 // loop_header_branch
                %236 = sbr.rel (%p234) target = $region80
              $region77: #{combine_bert_forward.16} parent=72 // loop_body
                %v240 = vld [vmem:[%s238] sm:%s231]
                %241 = vst [vmem:[%s239] sm:%s231] %v240
                %v242 = vld [vmem:[%s238 + $0xc] sm:%s231]
                %243 = vst [vmem:[%s239 + $0x4] sm:%s231] %v242
              $region78: #{combine_bert_forward.16} parent=72 // loop_footer
                %s237 = sadd.s32 1, %s233
              $region79: #{combine_bert_forward.16} parent=72 // loop_footer_branch
                %232 = sbr.rel target = $region75
              $region80: #{combine_bert_forward.16} parent=72 // loop_exit
                _
            $region73: #{combine_bert_forward.16} parent=64 // pred_fallthru
              _
          $region65: #{combine_bert_forward.16} parent=60 // pred_fallthru
            _
          %268 = vnop
        $region61: #{combine_bert_forward.16} parent=15 // pred_fallthru
          _
        // Predicated region
        $region99: #{combine_bert_forward.16} parent=15 // pred_check
          %p269 = pneg %p103
        $region100: #{combine_bert_forward.16} parent=15 // pred_check_branch
          %271 = sbr.rel (%p269) target = $region102
        $region101: #{combine_bert_forward.16} parent=15 // pred_region
          %s272 = sand.u32 %s93, 1
          %s273 = sand.u32 %s93, 1
          %s274 = smul.addr %s273, 8
          %s275 = scalar_lea.vmem [#allocation4], %s274
          %s276 = sadd.s32 %s17, 2
          %s277 = smul.addr %s16, 6
          %s278 = sadd.s32 %s276, %s277
          %s279 = smul.addr %s278, 4
          %s280 = scalar_lea.vmem %s2, %s279
          // Predicated region
          $region103: #{combine_bert_forward.16} parent=101 // pred_check
            _
          $region104: #{combine_bert_forward.16} parent=101 // pred_check_branch
            %282 = sbr.rel (0) target = $region106
          $region105: #{combine_bert_forward.16} parent=101 // pred_region
            // Predicated region
            $region107: #{combine_bert_forward.16} parent=105 // pred_check
              _
            $region108: #{combine_bert_forward.16} parent=105 // pred_check_branch
              %284 = sbr.rel target = $region110
            $region109: #{combine_bert_forward.16} parent=105 // pred_region
              // Predicated region
              $region122: #{combine_bert_forward.16} parent=109 // pred_check
                _
              $region123: #{combine_bert_forward.16} parent=109 // pred_check_branch
                %302 = sbr.rel (0) target = $region125
              $region124: #{combine_bert_forward.16} parent=109 // pred_region
                loop: start=0, step=1, limit=1
                $region126: #{combine_bert_forward.16} parent=124 // loop_pre_header
                  _
                $region127: #{combine_bert_forward.16} parent=124 // loop_header
                  %s304 = sphi 0, %s308
                  %p305 = scmp.ge.s32.totalorder %s304, 1
                  %s309 = sphi %s280, %s280
                  %s310 = sphi %s275, %s275
                $region128: #{combine_bert_forward.16} parent=124 // loop_header_branch
                  %307 = sbr.rel (%p305) target = $region132
                $region129: #{combine_bert_forward.16} parent=124 // loop_body
                  _
                $region130: #{combine_bert_forward.16} parent=124 // loop_footer
                  %s308 = sadd.s32 1, %s304
                $region131: #{combine_bert_forward.16} parent=124 // loop_footer_branch
                  %303 = sbr.rel target = $region127
                $region132: #{combine_bert_forward.16} parent=124 // loop_exit
                  _
                %s312 = ssub.s32 16, 1
                loop: start=0, step=1, limit=1
                $region133: #{combine_bert_forward.16} parent=124 // loop_pre_header
                  _
                $region134: #{combine_bert_forward.16} parent=124 // loop_header
                  %s314 = sphi 0, %s318
                  %p315 = scmp.ge.s32.totalorder %s314, 1
                  %s319 = sphi %s280, %s280
                  %s320 = sphi %s275, %s275
                $region135: #{combine_bert_forward.16} parent=124 // loop_header_branch
                  %317 = sbr.rel (%p315) target = $region139
                $region136: #{combine_bert_forward.16} parent=124 // loop_body
                  %v321 = vld [vmem:[%s319] sm:%s312]
                  %322 = vst [vmem:[%s320] sm:%s312] %v321
                  %v323 = vld [vmem:[%s319 + $0xc] sm:%s312]
                  %324 = vst [vmem:[%s320 + $0x4] sm:%s312] %v323
                $region137: #{combine_bert_forward.16} parent=124 // loop_footer
                  %s318 = sadd.s32 1, %s314
                $region138: #{combine_bert_forward.16} parent=124 // loop_footer_branch
                  %313 = sbr.rel target = $region134
                $region139: #{combine_bert_forward.16} parent=124 // loop_exit
                  _
              $region125: #{combine_bert_forward.16} parent=109 // pred_fallthru
                _
            $region110: #{combine_bert_forward.16} parent=105 // pred_fallthru
              _
            // Predicated region
            $region111: #{combine_bert_forward.16} parent=105 // pred_check
              _
            $region112: #{combine_bert_forward.16} parent=105 // pred_check_branch
              %286 = sbr.rel (0) target = $region114
            $region113: #{combine_bert_forward.16} parent=105 // pred_region
              %s288 = ssub.s32 16, 1
              loop: start=0, step=1, limit=1
              $region115: #{combine_bert_forward.16} parent=113 // loop_pre_header
                _
              $region116: #{combine_bert_forward.16} parent=113 // loop_header
                %s290 = sphi 0, %s294
                %p291 = scmp.ge.s32.totalorder %s290, 1
                %s295 = sphi %s280, %s280
                %s296 = sphi %s275, %s275
              $region117: #{combine_bert_forward.16} parent=113 // loop_header_branch
                %293 = sbr.rel (%p291) target = $region121
              $region118: #{combine_bert_forward.16} parent=113 // loop_body
                %v297 = vld [vmem:[%s295] sm:%s288]
                %298 = vst [vmem:[%s296] sm:%s288] %v297
                %v299 = vld [vmem:[%s295 + $0xc] sm:%s288]
                %300 = vst [vmem:[%s296 + $0x4] sm:%s288] %v299
              $region119: #{combine_bert_forward.16} parent=113 // loop_footer
                %s294 = sadd.s32 1, %s290
              $region120: #{combine_bert_forward.16} parent=113 // loop_footer_branch
                %289 = sbr.rel target = $region116
              $region121: #{combine_bert_forward.16} parent=113 // loop_exit
                _
            $region114: #{combine_bert_forward.16} parent=105 // pred_fallthru
              _
          $region106: #{combine_bert_forward.16} parent=101 // pred_fallthru
            _
          %325 = vnop
        $region102: #{combine_bert_forward.16} parent=15 // pred_fallthru
          _
      $region16: #{combine_bert_forward.16} parent=5 // pred_fallthru
        _
      %p326 = scmp.le.s32.totalorder 1, %s9
      %p327 = scmp.lt.s32.totalorder %s9, 3
      %p328 = pnand %p326, %p327
      %p329 = pneg %p328
      // Predicated region
      $region140: #{combine_bert_forward.16} parent=5 // pred_check
        _
      $region141: #{combine_bert_forward.16} parent=5 // pred_check_branch
        %331 = sbr.rel (%p328) target = $region143
      $region142: #{combine_bert_forward.16} parent=5 // pred_region
        %s332 = ssub.s32 %s9, 1
        %s333 = sand.u32 %s36, 1
        %s334 = sand.u32 %s36, 1
        %s335 = smul.addr %s334, 8
        %s336 = scalar_lea.vmem [#allocation2], %s335
        // Predicated region
        $region144: #{combine_bert_forward.16} parent=142 // pred_check
          %p337 = pneg %p49
        $region145: #{combine_bert_forward.16} parent=142 // pred_check_branch
          %339 = sbr.rel (%p337) target = $region147
        $region146: #{combine_bert_forward.16} parent=142 // pred_region
          _
        $region147: #{combine_bert_forward.16} parent=142 // pred_fallthru
          _
        %s340 = sand.u32 %s66, 1
        %s341 = sand.u32 %s66, 1
        %s342 = smul.addr %s341, 8
        %s343 = scalar_lea.vmem [#allocation3], %s342
        // Predicated region
        $region148: #{combine_bert_forward.16} parent=142 // pred_check
          %p344 = pneg %p79
        $region149: #{combine_bert_forward.16} parent=142 // pred_check_branch
          %346 = sbr.rel (%p344) target = $region151
        $region150: #{combine_bert_forward.16} parent=142 // pred_region
          _
        $region151: #{combine_bert_forward.16} parent=142 // pred_fallthru
          _
        %s347 = sand.u32 %s96, 1
        %s348 = sand.u32 %s96, 1
        %s349 = smul.addr %s348, 8
        %s350 = scalar_lea.vmem [#allocation4], %s349
        // Predicated region
        $region152: #{combine_bert_forward.16} parent=142 // pred_check
          %p351 = pneg %p109
        $region153: #{combine_bert_forward.16} parent=142 // pred_check_branch
          %353 = sbr.rel (%p351) target = $region155
        $region154: #{combine_bert_forward.16} parent=142 // pred_region
          _
        $region155: #{combine_bert_forward.16} parent=142 // pred_fallthru
          _
        %s354 = sand.u32 %s36, 1
        %s355 = sand.u32 %s36, 1
        %s356 = smul.addr %s355, 8
        %s357 = scalar_lea.vmem [#allocation2], %s356
        %p358 = pneg %p49
        %p359 = pneg %p46
        %s360 = sand.u32 %s66, 1
        %s361 = sand.u32 %s66, 1
        %s362 = smul.addr %s361, 8
        %s363 = scalar_lea.vmem [#allocation3], %s362
        %p364 = pneg %p79
        %p365 = pneg %p76
        %s366 = sand.u32 %s96, 1
        %s367 = sand.u32 %s96, 1
        %s368 = smul.addr %s367, 8
        %s369 = scalar_lea.vmem [#allocation4], %s368
        %p370 = pneg %p109
        %p371 = pneg %p106
        %p372 = pneg %p137
        %p373 = pneg %p134
        %p374 = scmp.lt.s32.totalorder %s18, 1
        %s375 = scalar_select %p374, %s18, 1
        %p376 = scmp.lt.s32.totalorder %s19, 0
        %s377 = scalar_select %p376, %s19, 0
        %s378 = smul.addr %s375, 2
        %s379 = sadd.s32 %s377, %s378
        %s380 = smul.addr %s379, 4
        %s381 = scalar_lea.vmem %s3, %s380
        %s382 = sadd.s32 %s19, 1
        %s383 = sadd.s32 %s19, 2
        %p384 = scmp.lt.s32.totalorder %s18, 1
        %s385 = scalar_select %p384, %s18, 1
        %p386 = scmp.lt.s32.totalorder %s19, 0
        %s387 = scalar_select %p386, %s19, 0
        %s388 = smul.addr %s385, 2
        %s389 = sadd.s32 %s387, %s388
        %s390 = smul.addr %s389, 4
        %s391 = scalar_lea.vmem %s3, %s390
        %v394 = vld [vmem:[%s336] sm:$0xf]
        %v395 = vld [vmem:[%s336 + $0x4] sm:$0xf]
        %v396 = vld [vmem:[%s343] sm:$0xf]
        %v397 = vld [vmem:[%s343 + $0x4] sm:$0xf]
        %v398 = vld [vmem:[%s350] sm:$0xf]
        %v399 = vld [vmem:[%s350 + $0x4] sm:$0xf]
        %v400 = vmul.bf16 %v394, 1040203264
        %v401 = vmul.bf16 %v395, 1040203264
        %v404 = vunpack.c.l.b16 %v400
        %v405 = vunpack.c.l.b16 %v401
        %v406 = vpack.c.b16 %v405, %v404
        %v409 = vunpack.c.l.b16 %v396
        %v410 = vunpack.c.l.b16 %v397
        %v411 = vpack.c.b16 %v410, %v409
        %vm412 = vcmask 523264
        %v414 = vsel %vm412, %v406, 0
        %v417 = vsel %vm412, %v411, 0
        %419 = vmatprep.subr.bf16.mxu0 0
        %420 = vmatpush1.bf16.xpose.msra.mxu0 0
        %421 = vmatprep.subr.bf16.mxu0 0
        %422 = vmatpush1.bf16.xpose.msra.mxu0 0
        %423 = vmatprep.subr.bf16.mxu0 0
        %424 = vmatpush1.bf16.xpose.msra.mxu0 0
        %425 = vmatprep.subr.bf16.mxu0 0
        %426 = vmatpush1.bf16.xpose.msra.mxu0 0
        %427 = vmatprep.subr.bf16.mxu0 0
        %428 = vmatpush1.bf16.xpose.msra.mxu0 0
        %429 = vmatprep.subr.bf16.mxu0 0
        %430 = vmatpush1.bf16.xpose.msra.mxu0 0
        %431 = vmatprep.subr.bf16.mxu0 0
        %432 = vmatpush1.bf16.xpose.msra.mxu0 0
        %433 = vmatprep.subr.bf16.mxu0 0
        %434 = vmatpush1.bf16.xpose.msra.mxu0 %v417
        %435 = vmatprep.subr.bf16.mxu0 0
        %436 = vmatpush2.bf16.xpose.msra.mxu0 0
        %437 = vmatprep.subr.bf16.mxu0 0
        %438 = vmatpush2.bf16.xpose.msra.mxu0 0
        %439 = vmatprep.subr.bf16.mxu0 0
        %440 = vmatpush2.bf16.xpose.msra.mxu0 0
        %441 = vmatprep.subr.bf16.mxu0 0
        %442 = vmatpush2.bf16.xpose.msra.mxu0 0
        %443 = vmatprep.subr.bf16.mxu0 0
        %444 = vmatpush2.bf16.xpose.msra.mxu0 0
        %445 = vmatprep.subr.bf16.mxu0 0
        %446 = vmatpush2.bf16.xpose.msra.mxu0 0
        %447 = vmatprep.subr.bf16.mxu0 0
        %448 = vmatpush2.bf16.xpose.msra.mxu0 0
        %449 = vmatprep.subr.bf16.mxu0 0
        %450 = vmatpush2.bf16.xpose.msra.mxu0 0
        %451 = vmatprep.mubr.bf16.mxu0 0
        %452 = vmatmul.mubr.bf16.gmra.mxu0 %v414
        %v453 = vpop.f32.mrf.mxu0
        %v454 = vadd.f32 0.0, %v453
        %v455 = vpop.f32.mrf.mxu0
        %v456 = vpop.f32.mrf.mxu0
        %v457 = vadd.f32 0.0, %v456
        %v458 = vpop.f32.mrf.mxu0
        %459 = vdwg.mxu0
        %vm460 = vcmask 130048
        %v461 = vsel %vm460, %v454, -inf
        %462 = vmax.xlane.f32.xlu0 %v461
        %v463 = vpop.xlane.xlu0 %462
        %v464 = vsel %vm460, %v457, -inf
        %465 = vmax.xlane.f32.xlu0 %v464
        %v466 = vpop.xlane.xlu0 %465
        %v467 = vsub.f32 %v454, %v463
        %v468 = vsub.f32 %v457, %v466
        %v469 = vmul.f32 %v467, 1.442695
        %v470 = vpow.pop %v469
        %v471 = vmul.f32 %v468, 1.442695
        %v472 = vpow.pop %v471
        %v473 = vsel %vm460, %v470, 0.0
        %474 = vadd.xlane.f32.xlu0 %v473
        %v475 = vpop.xlane.xlu0 %474
        %v476 = vsel %vm460, %v472, 0.0
        %477 = vadd.xlane.f32.xlu0 %v476
        %v478 = vpop.xlane.xlu0 %477
        %v479 = vrcp.pop %v475
        %v480 = vrcp.pop %v478
        %v481 = vmul.f32 %v470, %v479
        %v482 = vmul.f32 %v472, %v480
        %v483 = vpack.c.bf16 %v482, %v481
        %v486 = vunpack.c.l.b16 %v398
        %v487 = vunpack.c.l.b16 %v399
        %v488 = vpack.c.b16 %v487, %v486
        %v491 = vsel %vm460, %v483, 0
        %493 = vmatprep.subr.bf16.mxu0 0
        %494 = vmatpush1.bf16.msra.mxu0 0
        %495 = vmatprep.subr.bf16.mxu0 0
        %496 = vmatpush1.bf16.msra.mxu0 0
        %497 = vmatprep.subr.bf16.mxu0 0
        %498 = vmatpush1.bf16.msra.mxu0 0
        %499 = vmatprep.subr.bf16.mxu0 0
        %500 = vmatpush1.bf16.msra.mxu0 0
        %501 = vmatprep.subr.bf16.mxu0 0
        %502 = vmatpush1.bf16.msra.mxu0 0
        %503 = vmatprep.subr.bf16.mxu0 0
        %504 = vmatpush1.bf16.msra.mxu0 0
        %505 = vmatprep.subr.bf16.mxu0 0
        %506 = vmatpush1.bf16.msra.mxu0 0
        %507 = vmatprep.subr.bf16.mxu0 0
        %508 = vmatpush1.bf16.msra.mxu0 %v488
        %509 = vmatprep.subr.bf16.mxu0 0
        %510 = vmatpush2.bf16.msra.mxu0 0
        %511 = vmatprep.subr.bf16.mxu0 0
        %512 = vmatpush2.bf16.msra.mxu0 0
        %513 = vmatprep.subr.bf16.mxu0 0
        %514 = vmatpush2.bf16.msra.mxu0 0
        %515 = vmatprep.subr.bf16.mxu0 0
        %516 = vmatpush2.bf16.msra.mxu0 0
        %517 = vmatprep.subr.bf16.mxu0 0
        %518 = vmatpush2.bf16.msra.mxu0 0
        %519 = vmatprep.subr.bf16.mxu0 0
        %520 = vmatpush2.bf16.msra.mxu0 0
        %521 = vmatprep.subr.bf16.mxu0 0
        %522 = vmatpush2.bf16.msra.mxu0 0
        %523 = vmatprep.subr.bf16.mxu0 0
        %524 = vmatpush2.bf16.msra.mxu0 0
        %525 = vmatprep.mubr.bf16.mxu0 0
        %526 = vmatmul.mubr.bf16.gmra.mxu0 %v491
        %v527 = vpop.f32.mrf.mxu0
        %v528 = vadd.f32 0.0, %v527
        %v529 = vpop.f32.mrf.mxu0
        %v530 = vpop.f32.mrf.mxu0
        %v531 = vadd.f32 0.0, %v530
        %v532 = vpop.f32.mrf.mxu0
        %533 = vdwg.mxu0
        %534 = vrot.lane.b32.xlu0 %v406, 64
        %v535 = vpop.permute.xlu0 %534
        %536 = vrot.lane.b32.xlu0 %v411, 64
        %v537 = vpop.permute.xlu0 %536
        %v539 = vsel %vm412, %v535, 0
        %v542 = vsel %vm412, %v537, 0
        %544 = vmatprep.subr.bf16.mxu0 0
        %545 = vmatpush1.bf16.xpose.msra.mxu0 0
        %546 = vmatprep.subr.bf16.mxu0 0
        %547 = vmatpush1.bf16.xpose.msra.mxu0 0
        %548 = vmatprep.subr.bf16.mxu0 0
        %549 = vmatpush1.bf16.xpose.msra.mxu0 0
        %550 = vmatprep.subr.bf16.mxu0 0
        %551 = vmatpush1.bf16.xpose.msra.mxu0 0
        %552 = vmatprep.subr.bf16.mxu0 0
        %553 = vmatpush1.bf16.xpose.msra.mxu0 0
        %554 = vmatprep.subr.bf16.mxu0 0
        %555 = vmatpush1.bf16.xpose.msra.mxu0 0
        %556 = vmatprep.subr.bf16.mxu0 0
        %557 = vmatpush1.bf16.xpose.msra.mxu0 0
        %558 = vmatprep.subr.bf16.mxu0 0
        %559 = vmatpush1.bf16.xpose.msra.mxu0 %v542
        %560 = vmatprep.subr.bf16.mxu0 0
        %561 = vmatpush2.bf16.xpose.msra.mxu0 0
        %562 = vmatprep.subr.bf16.mxu0 0
        %563 = vmatpush2.bf16.xpose.msra.mxu0 0
        %564 = vmatprep.subr.bf16.mxu0 0
        %565 = vmatpush2.bf16.xpose.msra.mxu0 0
        %566 = vmatprep.subr.bf16.mxu0 0
        %567 = vmatpush2.bf16.xpose.msra.mxu0 0
        %568 = vmatprep.subr.bf16.mxu0 0
        %569 = vmatpush2.bf16.xpose.msra.mxu0 0
        %570 = vmatprep.subr.bf16.mxu0 0
        %571 = vmatpush2.bf16.xpose.msra.mxu0 0
        %572 = vmatprep.subr.bf16.mxu0 0
        %573 = vmatpush2.bf16.xpose.msra.mxu0 0
        %574 = vmatprep.subr.bf16.mxu0 0
        %575 = vmatpush2.bf16.xpose.msra.mxu0 0
        %576 = vmatprep.mubr.bf16.mxu0 0
        %577 = vmatmul.mubr.bf16.gmra.mxu0 %v539
        %v578 = vpop.f32.mrf.mxu0
        %v579 = vadd.f32 0.0, %v578
        %v580 = vpop.f32.mrf.mxu0
        %v581 = vpop.f32.mrf.mxu0
        %v582 = vadd.f32 0.0, %v581
        %v583 = vpop.f32.mrf.mxu0
        %584 = vdwg.mxu0
        %v585 = vsel %vm460, %v579, -inf
        %586 = vmax.xlane.f32.xlu0 %v585
        %v587 = vpop.xlane.xlu0 %586
        %v588 = vsel %vm460, %v582, -inf
        %589 = vmax.xlane.f32.xlu0 %v588
        %v590 = vpop.xlane.xlu0 %589
        %v591 = vsub.f32 %v579, %v587
        %v592 = vsub.f32 %v582, %v590
        %v593 = vmul.f32 %v591, 1.442695
        %v594 = vpow.pop %v593
        %v595 = vmul.f32 %v592, 1.442695
        %v596 = vpow.pop %v595
        %v597 = vsel %vm460, %v594, 0.0
        %598 = vadd.xlane.f32.xlu0 %v597
        %v599 = vpop.xlane.xlu0 %598
        %v600 = vsel %vm460, %v596, 0.0
        %601 = vadd.xlane.f32.xlu0 %v600
        %v602 = vpop.xlane.xlu0 %601
        %v603 = vrcp.pop %v599
        %v604 = vrcp.pop %v602
        %v605 = vmul.f32 %v594, %v603
        %v606 = vmul.f32 %v596, %v604
        %v607 = vpack.c.bf16 %v606, %v605
        %608 = vrot.lane.b32.xlu0 %v488, 64
        %v609 = vpop.permute.xlu0 %608
        %v612 = vsel %vm460, %v607, 0
        %614 = vmatprep.subr.bf16.mxu0 0
        %615 = vmatpush1.bf16.msra.mxu0 0
        %616 = vmatprep.subr.bf16.mxu0 0
        %617 = vmatpush1.bf16.msra.mxu0 0
        %618 = vmatprep.subr.bf16.mxu0 0
        %619 = vmatpush1.bf16.msra.mxu0 0
        %620 = vmatprep.subr.bf16.mxu0 0
        %621 = vmatpush1.bf16.msra.mxu0 0
        %622 = vmatprep.subr.bf16.mxu0 0
        %623 = vmatpush1.bf16.msra.mxu0 0
        %624 = vmatprep.subr.bf16.mxu0 0
        %625 = vmatpush1.bf16.msra.mxu0 0
        %626 = vmatprep.subr.bf16.mxu0 0
        %627 = vmatpush1.bf16.msra.mxu0 0
        %628 = vmatprep.subr.bf16.mxu0 0
        %629 = vmatpush1.bf16.msra.mxu0 %v609
        %630 = vmatprep.subr.bf16.mxu0 0
        %631 = vmatpush2.bf16.msra.mxu0 0
        %632 = vmatprep.subr.bf16.mxu0 0
        %633 = vmatpush2.bf16.msra.mxu0 0
        %634 = vmatprep.subr.bf16.mxu0 0
        %635 = vmatpush2.bf16.msra.mxu0 0
        %636 = vmatprep.subr.bf16.mxu0 0
        %637 = vmatpush2.bf16.msra.mxu0 0
        %638 = vmatprep.subr.bf16.mxu0 0
        %639 = vmatpush2.bf16.msra.mxu0 0
        %640 = vmatprep.subr.bf16.mxu0 0
        %641 = vmatpush2.bf16.msra.mxu0 0
        %642 = vmatprep.subr.bf16.mxu0 0
        %643 = vmatpush2.bf16.msra.mxu0 0
        %644 = vmatprep.subr.bf16.mxu0 0
        %645 = vmatpush2.bf16.msra.mxu0 0
        %646 = vmatprep.mubr.bf16.mxu0 0
        %647 = vmatmul.mubr.bf16.gmra.mxu0 %v612
        %v648 = vpop.f32.mrf.mxu0
        %v649 = vadd.f32 0.0, %v648
        %v650 = vpop.f32.mrf.mxu0
        %v651 = vpop.f32.mrf.mxu0
        %v652 = vadd.f32 0.0, %v651
        %v653 = vpop.f32.mrf.mxu0
        %654 = vdwg.mxu0
        %657 = vrot.lane.b32.xlu0 %v649, 64
        %v658 = vpop.permute.xlu0 %657
        %659 = vrot.lane.b32.xlu0 %v652, 64
        %v660 = vpop.permute.xlu0 %659
        %v663 = vsel %vm412, %v528, %v658
        %v664 = vsel %vm412, %v531, %v660
        %v665 = vpack.c.bf16 %v664, %v663
        %v667 = vunpack.c.l.b16 %v665
        %v668 = vunpack.c.h.b16 %v665
        %v669 = vpack.c.b16 %v667, %v667
        %v670 = vpack.c.b16 %v668, %v668
        %673 = vst [vmem:[%s391] sm:$0xf] %v669
        %674 = vst [vmem:[%s391 + $0x4] sm:$0xf] %v670
        %p675 = scmp.lt.s32.totalorder %s18, 1
        %s676 = scalar_select %p675, %s18, 1
        %p677 = scmp.lt.s32.totalorder %s19, 0
        %s678 = scalar_select %p677, %s19, 0
        %s679 = smul.addr %s676, 2
        %s680 = sadd.s32 %s678, %s679
        %s681 = smul.addr %s680, 4
        %s682 = scalar_lea.vmem %s3, %s681
        // Predicated region
        $region156: #{combine_bert_forward.16} parent=142 // pred_check
          %p683 = pneg %p134
        $region157: #{combine_bert_forward.16} parent=142 // pred_check_branch
          %685 = sbr.rel (%p683) target = $region159
        $region158: #{combine_bert_forward.16} parent=142 // pred_region
          _
        $region159: #{combine_bert_forward.16} parent=142 // pred_fallthru
          _
      $region143: #{combine_bert_forward.16} parent=5 // pred_fallthru
        _
      %p686 = scmp.le.s32.totalorder 2, %s9
      // Predicated region
      $region160: #{combine_bert_forward.16} parent=5 // pred_check
        %p687 = pneg %p686
      $region161: #{combine_bert_forward.16} parent=5 // pred_check_branch
        %689 = sbr.rel (%p687) target = $region163
      $region162: #{combine_bert_forward.16} parent=5 // pred_region
        %s690 = ssub.s32 %s9, 2
        // Predicated region
        $region164: #{combine_bert_forward.16} parent=162 // pred_check
          %p691 = pneg %p140
        $region165: #{combine_bert_forward.16} parent=162 // pred_check_branch
          %693 = sbr.rel (%p691) target = $region167
        $region166: #{combine_bert_forward.16} parent=162 // pred_region
          %p694 = scmp.lt.s32.totalorder %s20, 1
          %s695 = scalar_select %p694, %s20, 1
          %p696 = scmp.lt.s32.totalorder %s21, 0
          %s697 = scalar_select %p696, %s21, 0
          %s698 = smul.addr %s695, 2
          %s699 = sadd.s32 %s697, %s698
          %s700 = smul.addr %s699, 4
          %s701 = scalar_lea.vmem %s3, %s700
        $region167: #{combine_bert_forward.16} parent=162 // pred_fallthru
          _
      $region163: #{combine_bert_forward.16} parent=5 // pred_fallthru
        _
    $region6: #{combine_bert_forward.16} parent=1 // loop_footer
      %s13 = sadd.s32 1, %s9
    $region7: #{combine_bert_forward.16} parent=1 // loop_footer_branch
      %8 = sbr.rel target = $region3
    $region8: #{combine_bert_forward.16} parent=1 // loop_exit
      _

// kernel: combine_bert_forward.19
$region0: #{combine_bert_forward.19}
  #allocation0 [shape = 'u32[]', space=smem, size = 0x4, offset = 0x4, fixed_abs, tag = 'smem constant byte address 0x4 - core index']
  #allocation1 [shape = 'u32[144,128]{1,0:T(1,128)}', space=vmem, size = 0x12000, scoped, tag = 'internal scratch']
  %s0 = inlined_call_operand.vmem [shape: bf16[32,128], index: 0, kind: input, shape index: {}]
  %s1 = inlined_call_operand.vmem [shape: bf16[128,512], index: 1, kind: input, shape index: {}]
  %s2 = inlined_call_operand.vmem [shape: f32[1,512], index: 2, kind: input, shape index: {}]
  %s3 = inlined_call_operand.vmem [shape: f32[32,512], index: 3, kind: output, shape index: {}]
  %s4 = sld [smem:[#allocation0]]
  $region22: #{combine_bert_forward.19} parent=0
    _
  %s6 = ssub.s32 1, %s4
  %s7 = scalar_select 0, %s6, %s4
  // Predicated region
  $region2: #{combine_bert_forward.19} parent=0 // pred_check
    _
  $region3: #{combine_bert_forward.19} parent=0 // pred_check_branch
    %9 = sbr.rel (0) target = $region5
  $region4: #{combine_bert_forward.19} parent=0 // pred_region
    _
  $region5: #{combine_bert_forward.19} parent=0 // pred_fallthru
    _
  // Predicated region
  $region6: #{combine_bert_forward.19} parent=0 // pred_check
    _
  $region7: #{combine_bert_forward.19} parent=0 // pred_check_branch
    %11 = sbr.rel (0) target = $region9
  $region8: #{combine_bert_forward.19} parent=0 // pred_region
    _
  $region9: #{combine_bert_forward.19} parent=0 // pred_fallthru
    _
  // Predicated region
  $region10: #{combine_bert_forward.19} parent=0 // pred_check
    _
  $region11: #{combine_bert_forward.19} parent=0 // pred_check_branch
    %13 = sbr.rel (0) target = $region13
  $region12: #{combine_bert_forward.19} parent=0 // pred_region
    _
  $region13: #{combine_bert_forward.19} parent=0 // pred_fallthru
    _
  %v15 = vld [vmem:[%s0] sm:$0xf]
  %v16 = vld [vmem:[%s0 + $0x4] sm:$0xf]
  %v17 = vld [vmem:[%s0 + $0x8] sm:$0xf]
  %v18 = vld [vmem:[%s0 + $0xc] sm:$0xf]
  %v19 = vld [vmem:[%s1] sm:$0xff]
  %v20 = vld [vmem:[%s1 + $0x8] sm:$0xff]
  %v21 = vld [vmem:[%s1 + $0x10] sm:$0xff]
  %v22 = vld [vmem:[%s1 + $0x18] sm:$0xff]
  %v23 = vld [vmem:[%s1 + $0x20] sm:$0xff]
  %v24 = vld [vmem:[%s1 + $0x28] sm:$0xff]
  %v25 = vld [vmem:[%s1 + $0x30] sm:$0xff]
  %v26 = vld [vmem:[%s1 + $0x38] sm:$0xff]
  %v27 = vld [vmem:[%s1 + $0x40] sm:$0xff]
  %v28 = vld [vmem:[%s1 + $0x48] sm:$0xff]
  %v29 = vld [vmem:[%s1 + $0x50] sm:$0xff]
  %v30 = vld [vmem:[%s1 + $0x58] sm:$0xff]
  %v31 = vld [vmem:[%s1 + $0x60] sm:$0xff]
  %v32 = vld [vmem:[%s1 + $0x68] sm:$0xff]
  %v33 = vld [vmem:[%s1 + $0x70] sm:$0xff]
  %v34 = vld [vmem:[%s1 + $0x78] sm:$0xff]
  %v35 = vld [vmem:[%s1 + $0x80] sm:$0xff]
  %v36 = vld [vmem:[%s1 + $0x88] sm:$0xff]
  %v37 = vld [vmem:[%s1 + $0x90] sm:$0xff]
  %v38 = vld [vmem:[%s1 + $0x98] sm:$0xff]
  %v39 = vld [vmem:[%s1 + $0xa0] sm:$0xff]
  %v40 = vld [vmem:[%s1 + $0xa8] sm:$0xff]
  %v41 = vld [vmem:[%s1 + $0xb0] sm:$0xff]
  %v42 = vld [vmem:[%s1 + $0xb8] sm:$0xff]
  %v43 = vld [vmem:[%s1 + $0xc0] sm:$0xff]
  %v44 = vld [vmem:[%s1 + $0xc8] sm:$0xff]
  %v45 = vld [vmem:[%s1 + $0xd0] sm:$0xff]
  %v46 = vld [vmem:[%s1 + $0xd8] sm:$0xff]
  %v47 = vld [vmem:[%s1 + $0xe0] sm:$0xff]
  %v48 = vld [vmem:[%s1 + $0xe8] sm:$0xff]
  %v49 = vld [vmem:[%s1 + $0xf0] sm:$0xff]
  %v50 = vld [vmem:[%s1 + $0xf8] sm:$0xff]
  %v51 = vld [vmem:[%s2] sm:$0xf]
  %v53 = vlaneseq
  %v54 = vshrl.u32 %v53, 7
  %v55 = vsub.s32 0, %v54
  %v56 = vrot.slane %v51, %v55
  %v57 = vlaneseq
  %v58 = vshrl.u32 %v57, 7
  %v59 = vsub.s32 1, %v58
  %v60 = vrot.slane %v51, %v59
  %v61 = vlaneseq
  %v62 = vshrl.u32 %v61, 7
  %v63 = vsub.s32 2, %v62
  %v64 = vrot.slane %v51, %v63
  %v65 = vlaneseq
  %v66 = vshrl.u32 %v65, 7
  %v67 = vsub.s32 3, %v66
  %v68 = vrot.slane %v51, %v67
  %v77 = vunpack.c.l.b16 %v15
  %v78 = vunpack.c.l.b16 %v16
  %v79 = vunpack.c.l.b16 %v17
  %v80 = vunpack.c.l.b16 %v18
  %v81 = vpack.c.b16 %v78, %v77
  %v82 = vpack.c.b16 %v80, %v79
  %v117 = vunpack.c.l.b16 %v19
  %v118 = vunpack.c.h.b16 %v19
  %v119 = vunpack.c.l.b16 %v20
  %v120 = vunpack.c.h.b16 %v20
  %v121 = vunpack.c.l.b16 %v21
  %v122 = vunpack.c.h.b16 %v21
  %v123 = vunpack.c.l.b16 %v22
  %v124 = vunpack.c.h.b16 %v22
  %v125 = vunpack.c.l.b16 %v23
  %v126 = vunpack.c.h.b16 %v23
  %v127 = vunpack.c.l.b16 %v24
  %v128 = vunpack.c.h.b16 %v24
  %v129 = vunpack.c.l.b16 %v25
  %v130 = vunpack.c.h.b16 %v25
  %v131 = vunpack.c.l.b16 %v26
  %v132 = vunpack.c.h.b16 %v26
  %v133 = vunpack.c.l.b16 %v27
  %v134 = vunpack.c.h.b16 %v27
  %v135 = vunpack.c.l.b16 %v28
  %v136 = vunpack.c.h.b16 %v28
  %v137 = vunpack.c.l.b16 %v29
  %v138 = vunpack.c.h.b16 %v29
  %v139 = vunpack.c.l.b16 %v30
  %v140 = vunpack.c.h.b16 %v30
  %v141 = vunpack.c.l.b16 %v31
  %v142 = vunpack.c.h.b16 %v31
  %v143 = vunpack.c.l.b16 %v32
  %v144 = vunpack.c.h.b16 %v32
  %v145 = vunpack.c.l.b16 %v33
  %v146 = vunpack.c.h.b16 %v33
  %v147 = vunpack.c.l.b16 %v34
  %v148 = vunpack.c.h.b16 %v34
  %v149 = vunpack.c.l.b16 %v35
  %v150 = vunpack.c.h.b16 %v35
  %v151 = vunpack.c.l.b16 %v36
  %v152 = vunpack.c.h.b16 %v36
  %v153 = vunpack.c.l.b16 %v37
  %v154 = vunpack.c.h.b16 %v37
  %v155 = vunpack.c.l.b16 %v38
  %v156 = vunpack.c.h.b16 %v38
  %v157 = vunpack.c.l.b16 %v39
  %v158 = vunpack.c.h.b16 %v39
  %v159 = vunpack.c.l.b16 %v40
  %v160 = vunpack.c.h.b16 %v40
  %v161 = vunpack.c.l.b16 %v41
  %v162 = vunpack.c.h.b16 %v41
  %v163 = vunpack.c.l.b16 %v42
  %v164 = vunpack.c.h.b16 %v42
  %v165 = vunpack.c.l.b16 %v43
  %v166 = vunpack.c.h.b16 %v43
  %v167 = vunpack.c.l.b16 %v44
  %v168 = vunpack.c.h.b16 %v44
  %v169 = vunpack.c.l.b16 %v45
  %v170 = vunpack.c.h.b16 %v45
  %v171 = vunpack.c.l.b16 %v46
  %v172 = vunpack.c.h.b16 %v46
  %v173 = vunpack.c.l.b16 %v47
  %v174 = vunpack.c.h.b16 %v47
  %v175 = vunpack.c.l.b16 %v48
  %v176 = vunpack.c.h.b16 %v48
  %v177 = vunpack.c.l.b16 %v49
  %v178 = vunpack.c.h.b16 %v49
  %v179 = vunpack.c.l.b16 %v50
  %v180 = vunpack.c.h.b16 %v50
  %v181 = vpack.c.b16 %v121, %v117
  %v182 = vpack.c.b16 %v122, %v118
  %v183 = vpack.c.b16 %v123, %v119
  %v184 = vpack.c.b16 %v124, %v120
  %v185 = vpack.c.b16 %v129, %v125
  %v186 = vpack.c.b16 %v130, %v126
  %v187 = vpack.c.b16 %v131, %v127
  %v188 = vpack.c.b16 %v132, %v128
  %v189 = vpack.c.b16 %v137, %v133
  %v190 = vpack.c.b16 %v138, %v134
  %v191 = vpack.c.b16 %v139, %v135
  %v192 = vpack.c.b16 %v140, %v136
  %v193 = vpack.c.b16 %v145, %v141
  %v194 = vpack.c.b16 %v146, %v142
  %v195 = vpack.c.b16 %v147, %v143
  %v196 = vpack.c.b16 %v148, %v144
  %v197 = vpack.c.b16 %v153, %v149
  %v198 = vpack.c.b16 %v154, %v150
  %v199 = vpack.c.b16 %v155, %v151
  %v200 = vpack.c.b16 %v156, %v152
  %v201 = vpack.c.b16 %v161, %v157
  %v202 = vpack.c.b16 %v162, %v158
  %v203 = vpack.c.b16 %v163, %v159
  %v204 = vpack.c.b16 %v164, %v160
  %v205 = vpack.c.b16 %v169, %v165
  %v206 = vpack.c.b16 %v170, %v166
  %v207 = vpack.c.b16 %v171, %v167
  %v208 = vpack.c.b16 %v172, %v168
  %v209 = vpack.c.b16 %v177, %v173
  %v210 = vpack.c.b16 %v178, %v174
  %v211 = vpack.c.b16 %v179, %v175
  %v212 = vpack.c.b16 %v180, %v176
  %245 = vmatprep.subr.bf16.mxu0 %v210
  %246 = vmatpush1.bf16.msra.mxu0 %v209
  %247 = vmatprep.subr.bf16.mxu0 %v206
  %248 = vmatpush1.bf16.msra.mxu0 %v205
  %249 = vmatprep.subr.bf16.mxu0 %v202
  %250 = vmatpush1.bf16.msra.mxu0 %v201
  %251 = vmatprep.subr.bf16.mxu0 %v198
  %252 = vmatpush1.bf16.msra.mxu0 %v197
  %253 = vmatprep.subr.bf16.mxu0 %v194
  %254 = vmatpush1.bf16.msra.mxu0 %v193
  %255 = vmatprep.subr.bf16.mxu0 %v190
  %256 = vmatpush1.bf16.msra.mxu0 %v189
  %257 = vmatprep.subr.bf16.mxu0 %v186
  %258 = vmatpush1.bf16.msra.mxu0 %v185
  %259 = vmatprep.subr.bf16.mxu0 %v182
  %260 = vmatpush1.bf16.msra.mxu0 %v181
  %261 = vmatprep.subr.bf16.mxu0 0
  %262 = vmatpush2.bf16.msra.mxu0 0
  %263 = vmatprep.subr.bf16.mxu0 0
  %264 = vmatpush2.bf16.msra.mxu0 0
  %265 = vmatprep.subr.bf16.mxu0 0
  %266 = vmatpush2.bf16.msra.mxu0 0
  %267 = vmatprep.subr.bf16.mxu0 0
  %268 = vmatpush2.bf16.msra.mxu0 0
  %269 = vmatprep.subr.bf16.mxu0 0
  %270 = vmatpush2.bf16.msra.mxu0 0
  %271 = vmatprep.subr.bf16.mxu0 0
  %272 = vmatpush2.bf16.msra.mxu0 0
  %273 = vmatprep.subr.bf16.mxu0 0
  %274 = vmatpush2.bf16.msra.mxu0 0
  %275 = vmatprep.subr.bf16.mxu0 0
  %276 = vmatpush2.bf16.msra.mxu0 0
  %277 = vmatprep.mubr.bf16.mxu0 0
  %278 = vmatmul.mubr.bf16.gmra.mxu0 %v81
  %v279 = vpop.f32.mrf.mxu0
  %v280 = vadd.f32 %v56, %v279
  %v281 = vpop.f32.mrf.mxu0
  %v282 = vadd.f32 %v60, %v281
  %v283 = vpop.f32.mrf.mxu0
  %v284 = vadd.f32 %v56, %v283
  %v285 = vpop.f32.mrf.mxu0
  %v286 = vadd.f32 %v60, %v285
  %287 = vmatprep.mubr.bf16.mxu0 0
  %288 = vmatmul.mubr.bf16.gmra.mxu0 %v82
  %v289 = vpop.f32.mrf.mxu0
  %v290 = vadd.f32 %v56, %v289
  %v291 = vpop.f32.mrf.mxu0
  %v292 = vadd.f32 %v60, %v291
  %v293 = vpop.f32.mrf.mxu0
  %v294 = vadd.f32 %v56, %v293
  %v295 = vpop.f32.mrf.mxu0
  %v296 = vadd.f32 %v60, %v295
  %297 = vdwg.mxu0
  %298 = vmatprep.subr.bf16.mxu0 %v212
  %299 = vmatpush1.bf16.msra.mxu0 %v211
  %300 = vmatprep.subr.bf16.mxu0 %v208
  %301 = vmatpush1.bf16.msra.mxu0 %v207
  %302 = vmatprep.subr.bf16.mxu0 %v204
  %303 = vmatpush1.bf16.msra.mxu0 %v203
  %304 = vmatprep.subr.bf16.mxu0 %v200
  %305 = vmatpush1.bf16.msra.mxu0 %v199
  %306 = vmatprep.subr.bf16.mxu0 %v196
  %307 = vmatpush1.bf16.msra.mxu0 %v195
  %308 = vmatprep.subr.bf16.mxu0 %v192
  %309 = vmatpush1.bf16.msra.mxu0 %v191
  %310 = vmatprep.subr.bf16.mxu0 %v188
  %311 = vmatpush1.bf16.msra.mxu0 %v187
  %312 = vmatprep.subr.bf16.mxu0 %v184
  %313 = vmatpush1.bf16.msra.mxu0 %v183
  %314 = vmatprep.subr.bf16.mxu0 0
  %315 = vmatpush2.bf16.msra.mxu0 0
  %316 = vmatprep.subr.bf16.mxu0 0
  %317 = vmatpush2.bf16.msra.mxu0 0
  %318 = vmatprep.subr.bf16.mxu0 0
  %319 = vmatpush2.bf16.msra.mxu0 0
  %320 = vmatprep.subr.bf16.mxu0 0
  %321 = vmatpush2.bf16.msra.mxu0 0
  %322 = vmatprep.subr.bf16.mxu0 0
  %323 = vmatpush2.bf16.msra.mxu0 0
  %324 = vmatprep.subr.bf16.mxu0 0
  %325 = vmatpush2.bf16.msra.mxu0 0
  %326 = vmatprep.subr.bf16.mxu0 0
  %327 = vmatpush2.bf16.msra.mxu0 0
  %328 = vmatprep.subr.bf16.mxu0 0
  %329 = vmatpush2.bf16.msra.mxu0 0
  %330 = vmatprep.mubr.bf16.mxu0 0
  %331 = vmatmul.mubr.bf16.gmra.mxu0 %v81
  %v332 = vpop.f32.mrf.mxu0
  %v333 = vadd.f32 %v64, %v332
  %v334 = vpop.f32.mrf.mxu0
  %v335 = vadd.f32 %v68, %v334
  %v336 = vpop.f32.mrf.mxu0
  %v337 = vadd.f32 %v64, %v336
  %v338 = vpop.f32.mrf.mxu0
  %v339 = vadd.f32 %v68, %v338
  %340 = vmatprep.mubr.bf16.mxu0 0
  %341 = vmatmul.mubr.bf16.gmra.mxu0 %v82
  %v342 = vpop.f32.mrf.mxu0
  %v343 = vadd.f32 %v64, %v342
  %v344 = vpop.f32.mrf.mxu0
  %v345 = vadd.f32 %v68, %v344
  %v346 = vpop.f32.mrf.mxu0
  %v347 = vadd.f32 %v64, %v346
  %v348 = vpop.f32.mrf.mxu0
  %v349 = vadd.f32 %v68, %v348
  %350 = vdwg.mxu0
  %351 = vst [vmem:[%s3] sm:$0xff] %v280
  %352 = vst [vmem:[%s3 + $0x8] sm:$0xff] %v282
  %353 = vst [vmem:[%s3 + $0x10] sm:$0xff] %v333
  %354 = vst [vmem:[%s3 + $0x18] sm:$0xff] %v335
  %355 = vst [vmem:[%s3 + $0x20] sm:$0xff] %v284
  %356 = vst [vmem:[%s3 + $0x28] sm:$0xff] %v286
  %357 = vst [vmem:[%s3 + $0x30] sm:$0xff] %v337
  %358 = vst [vmem:[%s3 + $0x38] sm:$0xff] %v339
  %359 = vst [vmem:[%s3 + $0x40] sm:$0xff] %v290
  %360 = vst [vmem:[%s3 + $0x48] sm:$0xff] %v292
  %361 = vst [vmem:[%s3 + $0x50] sm:$0xff] %v343
  %362 = vst [vmem:[%s3 + $0x58] sm:$0xff] %v345
  %363 = vst [vmem:[%s3 + $0x60] sm:$0xff] %v294
  %364 = vst [vmem:[%s3 + $0x68] sm:$0xff] %v296
  %365 = vst [vmem:[%s3 + $0x70] sm:$0xff] %v347
  %366 = vst [vmem:[%s3 + $0x78] sm:$0xff] %v349
  // Predicated region
  $region14: #{combine_bert_forward.19} parent=0 // pred_check
    _
  $region15: #{combine_bert_forward.19} parent=0 // pred_check_branch
    %368 = sbr.rel (0) target = $region17
  $region16: #{combine_bert_forward.19} parent=0 // pred_region
    _
  $region17: #{combine_bert_forward.19} parent=0 // pred_fallthru
    _
  // Predicated region
  $region18: #{combine_bert_forward.19} parent=0 // pred_check
    _
  $region19: #{combine_bert_forward.19} parent=0 // pred_check_branch
    %370 = sbr.rel (0) target = $region21
  $region20: #{combine_bert_forward.19} parent=0 // pred_region
    _
  $region21: #{combine_bert_forward.19} parent=0 // pred_fallthru
    _

// kernel: combine_bert_forward.14
$region0: #{combine_bert_forward.14}
  #allocation0 [shape = 'u32[]', space=smem, size = 0x4, offset = 0x4, fixed_abs, tag = 'smem constant byte address 0x4 - core index']
  #allocation1 [shape = 'u32[144,128]{1,0:T(1,128)}', space=vmem, size = 0x12000, scoped, tag = 'internal scratch']
  #allocation2 [shape = 'f32[32,128]{1,0:T(8,128)}', space=vmem, size = 0x4000, scoped, tag = 'scratch operand']
  %s0 = inlined_call_operand.vmem [shape: bf16[32,128], index: 0, kind: input, shape index: {}]
  %s1 = inlined_call_operand.vmem [shape: bf16[128,256], index: 1, kind: input, shape index: {}]
  %s2 = inlined_call_operand.vmem [shape: f32[1,256], index: 2, kind: input, shape index: {}]
  %s3 = inlined_call_operand.vmem [shape: bf16[256,128], index: 3, kind: input, shape index: {}]
  %s4 = inlined_call_operand.vmem [shape: f32[1,128], index: 4, kind: input, shape index: {}]
  %s5 = inlined_call_operand.vmem [shape: f32[1,128], index: 5, kind: input, shape index: {}]
  %s6 = inlined_call_operand.vmem [shape: f32[1,128], index: 6, kind: input, shape index: {}]
  %s7 = inlined_call_operand.vmem [shape: bf16[32,128], index: 7, kind: output, shape index: {}]
  %s8 = sld [smem:[#allocation0]]
  $region46: #{combine_bert_forward.14} parent=0
    _
  %s10 = ssub.s32 1, %s8
  %s11 = scalar_select 0, %s10, %s8
  // Predicated region
  $region2: #{combine_bert_forward.14} parent=0 // pred_check
    _
  $region3: #{combine_bert_forward.14} parent=0 // pred_check_branch
    %13 = sbr.rel (0) target = $region5
  $region4: #{combine_bert_forward.14} parent=0 // pred_region
    _
  $region5: #{combine_bert_forward.14} parent=0 // pred_fallthru
    _
  // Predicated region
  $region6: #{combine_bert_forward.14} parent=0 // pred_check
    _
  $region7: #{combine_bert_forward.14} parent=0 // pred_check_branch
    %15 = sbr.rel (0) target = $region9
  $region8: #{combine_bert_forward.14} parent=0 // pred_region
    _
  $region9: #{combine_bert_forward.14} parent=0 // pred_fallthru
    _
  // Predicated region
  $region10: #{combine_bert_forward.14} parent=0 // pred_check
    _
  $region11: #{combine_bert_forward.14} parent=0 // pred_check_branch
    %17 = sbr.rel (0) target = $region13
  $region12: #{combine_bert_forward.14} parent=0 // pred_region
    _
  $region13: #{combine_bert_forward.14} parent=0 // pred_fallthru
    _
  // Predicated region
  $region14: #{combine_bert_forward.14} parent=0 // pred_check
    _
  $region15: #{combine_bert_forward.14} parent=0 // pred_check_branch
    %19 = sbr.rel (0) target = $region17
  $region16: #{combine_bert_forward.14} parent=0 // pred_region
    _
  $region17: #{combine_bert_forward.14} parent=0 // pred_fallthru
    _
  // Predicated region
  $region18: #{combine_bert_forward.14} parent=0 // pred_check
    _
  $region19: #{combine_bert_forward.14} parent=0 // pred_check_branch
    %21 = sbr.rel (0) target = $region21
  $region20: #{combine_bert_forward.14} parent=0 // pred_region
    _
  $region21: #{combine_bert_forward.14} parent=0 // pred_fallthru
    _
  // Predicated region
  $region22: #{combine_bert_forward.14} parent=0 // pred_check
    _
  $region23: #{combine_bert_forward.14} parent=0 // pred_check_branch
    %23 = sbr.rel (0) target = $region25
  $region24: #{combine_bert_forward.14} parent=0 // pred_region
    _
  $region25: #{combine_bert_forward.14} parent=0 // pred_fallthru
    _
  // Predicated region
  $region26: #{combine_bert_forward.14} parent=0 // pred_check
    _
  $region27: #{combine_bert_forward.14} parent=0 // pred_check_branch
    %25 = sbr.rel (0) target = $region29
  $region28: #{combine_bert_forward.14} parent=0 // pred_region
    _
  $region29: #{combine_bert_forward.14} parent=0 // pred_fallthru
    _
  %p27 = scmp.eq.s32.totalorder 0, 0
  // Predicated region
  $region30: #{combine_bert_forward.14} parent=0 // pred_check
    %p28 = pneg %p27
  $region31: #{combine_bert_forward.14} parent=0 // pred_check_branch
    %30 = sbr.rel (%p28) target = $region33
  $region32: #{combine_bert_forward.14} parent=0 // pred_region
    %31 = vst [vmem:[#allocation2] sm:$0xff] 0.0
    %32 = vst [vmem:[#allocation2 + $0x8] sm:$0xff] 0.0
    %33 = vst [vmem:[#allocation2 + $0x10] sm:$0xff] 0.0
    %34 = vst [vmem:[#allocation2 + $0x18] sm:$0xff] 0.0
  $region33: #{combine_bert_forward.14} parent=0 // pred_fallthru
    _
  %v35 = vld [vmem:[%s0] sm:$0xf]
  %v36 = vld [vmem:[%s0 + $0x4] sm:$0xf]
  %v37 = vld [vmem:[%s0 + $0x8] sm:$0xf]
  %v38 = vld [vmem:[%s0 + $0xc] sm:$0xf]
  %v39 = vld [vmem:[%s1] sm:$0xff]
  %v40 = vld [vmem:[%s1 + $0x8] sm:$0xff]
  %v41 = vld [vmem:[%s1 + $0x10] sm:$0xff]
  %v42 = vld [vmem:[%s1 + $0x18] sm:$0xff]
  %v43 = vld [vmem:[%s1 + $0x20] sm:$0xff]
  %v44 = vld [vmem:[%s1 + $0x28] sm:$0xff]
  %v45 = vld [vmem:[%s1 + $0x30] sm:$0xff]
  %v46 = vld [vmem:[%s1 + $0x38] sm:$0xff]
  %v47 = vld [vmem:[%s1 + $0x40] sm:$0xff]
  %v48 = vld [vmem:[%s1 + $0x48] sm:$0xff]
  %v49 = vld [vmem:[%s1 + $0x50] sm:$0xff]
  %v50 = vld [vmem:[%s1 + $0x58] sm:$0xff]
  %v51 = vld [vmem:[%s1 + $0x60] sm:$0xff]
  %v52 = vld [vmem:[%s1 + $0x68] sm:$0xff]
  %v53 = vld [vmem:[%s1 + $0x70] sm:$0xff]
  %v54 = vld [vmem:[%s1 + $0x78] sm:$0xff]
  %v55 = vld [vmem:[%s2] sm:$0x3]
  %v57 = vlaneseq
  %v58 = vshrl.u32 %v57, 7
  %v59 = vsub.s32 0, %v58
  %v60 = vrot.slane %v55, %v59
  %v61 = vlaneseq
  %v62 = vshrl.u32 %v61, 7
  %v63 = vsub.s32 1, %v62
  %v64 = vrot.slane %v55, %v63
  %v71 = vunpack.c.l.b16 %v35
  %v72 = vunpack.c.l.b16 %v36
  %v73 = vunpack.c.l.b16 %v37
  %v74 = vunpack.c.l.b16 %v38
  %v75 = vpack.c.b16 %v72, %v71
  %v76 = vpack.c.b16 %v74, %v73
  %v95 = vunpack.c.l.b16 %v39
  %v96 = vunpack.c.h.b16 %v39
  %v97 = vunpack.c.l.b16 %v40
  %v98 = vunpack.c.h.b16 %v40
  %v99 = vunpack.c.l.b16 %v41
  %v100 = vunpack.c.h.b16 %v41
  %v101 = vunpack.c.l.b16 %v42
  %v102 = vunpack.c.h.b16 %v42
  %v103 = vunpack.c.l.b16 %v43
  %v104 = vunpack.c.h.b16 %v43
  %v105 = vunpack.c.l.b16 %v44
  %v106 = vunpack.c.h.b16 %v44
  %v107 = vunpack.c.l.b16 %v45
  %v108 = vunpack.c.h.b16 %v45
  %v109 = vunpack.c.l.b16 %v46
  %v110 = vunpack.c.h.b16 %v46
  %v111 = vunpack.c.l.b16 %v47
  %v112 = vunpack.c.h.b16 %v47
  %v113 = vunpack.c.l.b16 %v48
  %v114 = vunpack.c.h.b16 %v48
  %v115 = vunpack.c.l.b16 %v49
  %v116 = vunpack.c.h.b16 %v49
  %v117 = vunpack.c.l.b16 %v50
  %v118 = vunpack.c.h.b16 %v50
  %v119 = vunpack.c.l.b16 %v51
  %v120 = vunpack.c.h.b16 %v51
  %v121 = vunpack.c.l.b16 %v52
  %v122 = vunpack.c.h.b16 %v52
  %v123 = vunpack.c.l.b16 %v53
  %v124 = vunpack.c.h.b16 %v53
  %v125 = vunpack.c.l.b16 %v54
  %v126 = vunpack.c.h.b16 %v54
  %v127 = vpack.c.b16 %v97, %v95
  %v128 = vpack.c.b16 %v98, %v96
  %v129 = vpack.c.b16 %v101, %v99
  %v130 = vpack.c.b16 %v102, %v100
  %v131 = vpack.c.b16 %v105, %v103
  %v132 = vpack.c.b16 %v106, %v104
  %v133 = vpack.c.b16 %v109, %v107
  %v134 = vpack.c.b16 %v110, %v108
  %v135 = vpack.c.b16 %v113, %v111
  %v136 = vpack.c.b16 %v114, %v112
  %v137 = vpack.c.b16 %v117, %v115
  %v138 = vpack.c.b16 %v118, %v116
  %v139 = vpack.c.b16 %v121, %v119
  %v140 = vpack.c.b16 %v122, %v120
  %v141 = vpack.c.b16 %v125, %v123
  %v142 = vpack.c.b16 %v126, %v124
  %159 = vmatprep.subr.bf16.mxu0 %v142
  %160 = vmatpush1.bf16.msra.mxu0 %v141
  %161 = vmatprep.subr.bf16.mxu0 %v140
  %162 = vmatpush1.bf16.msra.mxu0 %v139
  %163 = vmatprep.subr.bf16.mxu0 %v138
  %164 = vmatpush1.bf16.msra.mxu0 %v137
  %165 = vmatprep.subr.bf16.mxu0 %v136
  %166 = vmatpush1.bf16.msra.mxu0 %v135
  %167 = vmatprep.subr.bf16.mxu0 %v134
  %168 = vmatpush1.bf16.msra.mxu0 %v133
  %169 = vmatprep.subr.bf16.mxu0 %v132
  %170 = vmatpush1.bf16.msra.mxu0 %v131
  %171 = vmatprep.subr.bf16.mxu0 %v130
  %172 = vmatpush1.bf16.msra.mxu0 %v129
  %173 = vmatprep.subr.bf16.mxu0 %v128
  %174 = vmatpush1.bf16.msra.mxu0 %v127
  %175 = vmatprep.subr.bf16.mxu0 0
  %176 = vmatpush2.bf16.msra.mxu0 0
  %177 = vmatprep.subr.bf16.mxu0 0
  %178 = vmatpush2.bf16.msra.mxu0 0
  %179 = vmatprep.subr.bf16.mxu0 0
  %180 = vmatpush2.bf16.msra.mxu0 0
  %181 = vmatprep.subr.bf16.mxu0 0
  %182 = vmatpush2.bf16.msra.mxu0 0
  %183 = vmatprep.subr.bf16.mxu0 0
  %184 = vmatpush2.bf16.msra.mxu0 0
  %185 = vmatprep.subr.bf16.mxu0 0
  %186 = vmatpush2.bf16.msra.mxu0 0
  %187 = vmatprep.subr.bf16.mxu0 0
  %188 = vmatpush2.bf16.msra.mxu0 0
  %189 = vmatprep.subr.bf16.mxu0 0
  %190 = vmatpush2.bf16.msra.mxu0 0
  %191 = vmatprep.mubr.bf16.mxu0 0
  %192 = vmatmul.mubr.bf16.gmra.mxu0 %v75
  %v193 = vpop.f32.mrf.mxu0
  %v194 = vadd.f32 %v60, %v193
  %v195 = vpop.f32.mrf.mxu0
  %v196 = vadd.f32 %v64, %v195
  %v197 = vpop.f32.mrf.mxu0
  %v198 = vadd.f32 %v60, %v197
  %v199 = vpop.f32.mrf.mxu0
  %v200 = vadd.f32 %v64, %v199
  %201 = vmatprep.mubr.bf16.mxu0 0
  %202 = vmatmul.mubr.bf16.gmra.mxu0 %v76
  %v203 = vpop.f32.mrf.mxu0
  %v204 = vadd.f32 %v60, %v203
  %v205 = vpop.f32.mrf.mxu0
  %v206 = vadd.f32 %v64, %v205
  %v207 = vpop.f32.mrf.mxu0
  %v208 = vadd.f32 %v60, %v207
  %v209 = vpop.f32.mrf.mxu0
  %v210 = vadd.f32 %v64, %v209
  %211 = vdwg.mxu0
  %v212 = vmul.f32 %v194, 0.5
  %v213 = vmul.f32 %v196, 0.5
  %v214 = vmul.f32 %v198, 0.5
  %v215 = vmul.f32 %v200, 0.5
  %v216 = vmul.f32 %v204, 0.5
  %v217 = vmul.f32 %v206, 0.5
  %v218 = vmul.f32 %v208, 0.5
  %v219 = vmul.f32 %v210, 0.5
  %v220 = vmul.f32 %v194, 0.044715
  %v221 = vmul.f32 %v196, 0.044715
  %v222 = vmul.f32 %v198, 0.044715
  %v223 = vmul.f32 %v200, 0.044715
  %v224 = vmul.f32 %v204, 0.044715
  %v225 = vmul.f32 %v206, 0.044715
  %v226 = vmul.f32 %v208, 0.044715
  %v227 = vmul.f32 %v210, 0.044715
  %v228 = vmul.f32 %v220, %v194
  %v229 = vmul.f32 %v221, %v196
  %v230 = vmul.f32 %v222, %v198
  %v231 = vmul.f32 %v223, %v200
  %v232 = vmul.f32 %v224, %v204
  %v233 = vmul.f32 %v225, %v206
  %v234 = vmul.f32 %v226, %v208
  %v235 = vmul.f32 %v227, %v210
  %v236 = vmul.f32 %v228, %v194
  %v237 = vmul.f32 %v229, %v196
  %v238 = vmul.f32 %v230, %v198
  %v239 = vmul.f32 %v231, %v200
  %v240 = vmul.f32 %v232, %v204
  %v241 = vmul.f32 %v233, %v206
  %v242 = vmul.f32 %v234, %v208
  %v243 = vmul.f32 %v235, %v210
  %v244 = vadd.f32 %v194, %v236
  %v245 = vadd.f32 %v196, %v237
  %v246 = vadd.f32 %v198, %v238
  %v247 = vadd.f32 %v200, %v239
  %v248 = vadd.f32 %v204, %v240
  %v249 = vadd.f32 %v206, %v241
  %v250 = vadd.f32 %v208, %v242
  %v251 = vadd.f32 %v210, %v243
  %v252 = vmul.f32 %v244, 0.7978846
  %v253 = vmul.f32 %v245, 0.7978846
  %v254 = vmul.f32 %v246, 0.7978846
  %v255 = vmul.f32 %v247, 0.7978846
  %v256 = vmul.f32 %v248, 0.7978846
  %v257 = vmul.f32 %v249, 0.7978846
  %v258 = vmul.f32 %v250, 0.7978846
  %v259 = vmul.f32 %v251, 0.7978846
  %v260 = vtanh.pop %v252
  %v261 = vtanh.pop %v253
  %v262 = vtanh.pop %v254
  %v263 = vtanh.pop %v255
  %v264 = vtanh.pop %v256
  %v265 = vtanh.pop %v257
  %v266 = vtanh.pop %v258
  %v267 = vtanh.pop %v259
  %v268 = vadd.f32 %v260, 1.0
  %v269 = vadd.f32 %v261, 1.0
  %v270 = vadd.f32 %v262, 1.0
  %v271 = vadd.f32 %v263, 1.0
  %v272 = vadd.f32 %v264, 1.0
  %v273 = vadd.f32 %v265, 1.0
  %v274 = vadd.f32 %v266, 1.0
  %v275 = vadd.f32 %v267, 1.0
  %v276 = vmul.f32 %v212, %v268
  %v277 = vmul.f32 %v213, %v269
  %v278 = vmul.f32 %v214, %v270
  %v279 = vmul.f32 %v215, %v271
  %v280 = vmul.f32 %v216, %v272
  %v281 = vmul.f32 %v217, %v273
  %v282 = vmul.f32 %v218, %v274
  %v283 = vmul.f32 %v219, %v275
  %v284 = vld [vmem:[#allocation2] sm:$0xff]
  %v285 = vld [vmem:[#allocation2 + $0x8] sm:$0xff]
  %v286 = vld [vmem:[#allocation2 + $0x10] sm:$0xff]
  %v287 = vld [vmem:[#allocation2 + $0x18] sm:$0xff]
  %v288 = vpack.c.bf16 %v278, %v276
  %v289 = vpack.c.bf16 %v279, %v277
  %v290 = vpack.c.bf16 %v282, %v280
  %v291 = vpack.c.bf16 %v283, %v281
  %v292 = vld [vmem:[%s3] sm:$0xf]
  %v293 = vld [vmem:[%s3 + $0x4] sm:$0xf]
  %v294 = vld [vmem:[%s3 + $0x8] sm:$0xf]
  %v295 = vld [vmem:[%s3 + $0xc] sm:$0xf]
  %v296 = vld [vmem:[%s3 + $0x10] sm:$0xf]
  %v297 = vld [vmem:[%s3 + $0x14] sm:$0xf]
  %v298 = vld [vmem:[%s3 + $0x18] sm:$0xf]
  %v299 = vld [vmem:[%s3 + $0x1c] sm:$0xf]
  %v300 = vld [vmem:[%s3 + $0x20] sm:$0xf]
  %v301 = vld [vmem:[%s3 + $0x24] sm:$0xf]
  %v302 = vld [vmem:[%s3 + $0x28] sm:$0xf]
  %v303 = vld [vmem:[%s3 + $0x2c] sm:$0xf]
  %v304 = vld [vmem:[%s3 + $0x30] sm:$0xf]
  %v305 = vld [vmem:[%s3 + $0x34] sm:$0xf]
  %v306 = vld [vmem:[%s3 + $0x38] sm:$0xf]
  %v307 = vld [vmem:[%s3 + $0x3c] sm:$0xf]
  %v308 = vld [vmem:[%s3 + $0x40] sm:$0xf]
  %v309 = vld [vmem:[%s3 + $0x44] sm:$0xf]
  %v310 = vld [vmem:[%s3 + $0x48] sm:$0xf]
  %v311 = vld [vmem:[%s3 + $0x4c] sm:$0xf]
  %v312 = vld [vmem:[%s3 + $0x50] sm:$0xf]
  %v313 = vld [vmem:[%s3 + $0x54] sm:$0xf]
  %v314 = vld [vmem:[%s3 + $0x58] sm:$0xf]
  %v315 = vld [vmem:[%s3 + $0x5c] sm:$0xf]
  %v316 = vld [vmem:[%s3 + $0x60] sm:$0xf]
  %v317 = vld [vmem:[%s3 + $0x64] sm:$0xf]
  %v318 = vld [vmem:[%s3 + $0x68] sm:$0xf]
  %v319 = vld [vmem:[%s3 + $0x6c] sm:$0xf]
  %v320 = vld [vmem:[%s3 + $0x70] sm:$0xf]
  %v321 = vld [vmem:[%s3 + $0x74] sm:$0xf]
  %v322 = vld [vmem:[%s3 + $0x78] sm:$0xf]
  %v323 = vld [vmem:[%s3 + $0x7c] sm:$0xf]
  %v356 = vunpack.c.l.b16 %v292
  %v357 = vunpack.c.l.b16 %v293
  %v358 = vunpack.c.l.b16 %v294
  %v359 = vunpack.c.l.b16 %v295
  %v360 = vunpack.c.l.b16 %v296
  %v361 = vunpack.c.l.b16 %v297
  %v362 = vunpack.c.l.b16 %v298
  %v363 = vunpack.c.l.b16 %v299
  %v364 = vunpack.c.l.b16 %v300
  %v365 = vunpack.c.l.b16 %v301
  %v366 = vunpack.c.l.b16 %v302
  %v367 = vunpack.c.l.b16 %v303
  %v368 = vunpack.c.l.b16 %v304
  %v369 = vunpack.c.l.b16 %v305
  %v370 = vunpack.c.l.b16 %v306
  %v371 = vunpack.c.l.b16 %v307
  %v372 = vunpack.c.l.b16 %v308
  %v373 = vunpack.c.l.b16 %v309
  %v374 = vunpack.c.l.b16 %v310
  %v375 = vunpack.c.l.b16 %v311
  %v376 = vunpack.c.l.b16 %v312
  %v377 = vunpack.c.l.b16 %v313
  %v378 = vunpack.c.l.b16 %v314
  %v379 = vunpack.c.l.b16 %v315
  %v380 = vunpack.c.l.b16 %v316
  %v381 = vunpack.c.l.b16 %v317
  %v382 = vunpack.c.l.b16 %v318
  %v383 = vunpack.c.l.b16 %v319
  %v384 = vunpack.c.l.b16 %v320
  %v385 = vunpack.c.l.b16 %v321
  %v386 = vunpack.c.l.b16 %v322
  %v387 = vunpack.c.l.b16 %v323
  %v388 = vpack.c.b16 %v357, %v356
  %v389 = vpack.c.b16 %v359, %v358
  %v390 = vpack.c.b16 %v361, %v360
  %v391 = vpack.c.b16 %v363, %v362
  %v392 = vpack.c.b16 %v365, %v364
  %v393 = vpack.c.b16 %v367, %v366
  %v394 = vpack.c.b16 %v369, %v368
  %v395 = vpack.c.b16 %v371, %v370
  %v396 = vpack.c.b16 %v373, %v372
  %v397 = vpack.c.b16 %v375, %v374
  %v398 = vpack.c.b16 %v377, %v376
  %v399 = vpack.c.b16 %v379, %v378
  %v400 = vpack.c.b16 %v381, %v380
  %v401 = vpack.c.b16 %v383, %v382
  %v402 = vpack.c.b16 %v385, %v384
  %v403 = vpack.c.b16 %v387, %v386
  %420 = vmatprep.subr.bf16.mxu0 0
  %421 = vmatpush1.bf16.msra.mxu0 %v395
  %422 = vmatprep.subr.bf16.mxu0 0
  %423 = vmatpush1.bf16.msra.mxu0 %v394
  %424 = vmatprep.subr.bf16.mxu0 0
  %425 = vmatpush1.bf16.msra.mxu0 %v393
  %426 = vmatprep.subr.bf16.mxu0 0
  %427 = vmatpush1.bf16.msra.mxu0 %v392
  %428 = vmatprep.subr.bf16.mxu0 0
  %429 = vmatpush1.bf16.msra.mxu0 %v391
  %430 = vmatprep.subr.bf16.mxu0 0
  %431 = vmatpush1.bf16.msra.mxu0 %v390
  %432 = vmatprep.subr.bf16.mxu0 0
  %433 = vmatpush1.bf16.msra.mxu0 %v389
  %434 = vmatprep.subr.bf16.mxu0 0
  %435 = vmatpush1.bf16.msra.mxu0 %v388
  %436 = vmatprep.subr.bf16.mxu0 0
  %437 = vmatpush2.bf16.msra.mxu0 %v403
  %438 = vmatprep.subr.bf16.mxu0 0
  %439 = vmatpush2.bf16.msra.mxu0 %v402
  %440 = vmatprep.subr.bf16.mxu0 0
  %441 = vmatpush2.bf16.msra.mxu0 %v401
  %442 = vmatprep.subr.bf16.mxu0 0
  %443 = vmatpush2.bf16.msra.mxu0 %v400
  %444 = vmatprep.subr.bf16.mxu0 0
  %445 = vmatpush2.bf16.msra.mxu0 %v399
  %446 = vmatprep.subr.bf16.mxu0 0
  %447 = vmatpush2.bf16.msra.mxu0 %v398
  %448 = vmatprep.subr.bf16.mxu0 0
  %449 = vmatpush2.bf16.msra.mxu0 %v397
  %450 = vmatprep.subr.bf16.mxu0 0
  %451 = vmatpush2.bf16.msra.mxu0 %v396
  %452 = vmatprep.mubr.bf16.mxu0 %v289
  %453 = vmatmul.mubr.bf16.gmra.mxu0 %v288
  %v454 = vpop.f32.mrf.mxu0
  %v455 = vadd.f32 0.0, %v454
  %v456 = vpop.f32.mrf.mxu0
  %v457 = vpop.f32.mrf.mxu0
  %v458 = vadd.f32 0.0, %v457
  %v459 = vpop.f32.mrf.mxu0
  %460 = vmatprep.mubr.bf16.mxu0 %v291
  %461 = vmatmul.mubr.bf16.gmra.mxu0 %v290
  %v462 = vpop.f32.mrf.mxu0
  %v463 = vadd.f32 0.0, %v462
  %v464 = vpop.f32.mrf.mxu0
  %v465 = vpop.f32.mrf.mxu0
  %v466 = vadd.f32 0.0, %v465
  %v467 = vpop.f32.mrf.mxu0
  %468 = vdwg.mxu0
  %v469 = vadd.f32 %v284, %v455
  %v470 = vadd.f32 %v285, %v458
  %v471 = vadd.f32 %v286, %v463
  %v472 = vadd.f32 %v287, %v466
  %473 = vst [vmem:[#allocation2] sm:$0xff] %v469
  %474 = vst [vmem:[#allocation2 + $0x8] sm:$0xff] %v470
  %475 = vst [vmem:[#allocation2 + $0x10] sm:$0xff] %v471
  %476 = vst [vmem:[#allocation2 + $0x18] sm:$0xff] %v472
  // Predicated region
  $region34: #{combine_bert_forward.14} parent=0 // pred_check
    %p477 = pneg %p27
  $region35: #{combine_bert_forward.14} parent=0 // pred_check_branch
    %479 = sbr.rel (%p477) target = $region37
  $region36: #{combine_bert_forward.14} parent=0 // pred_region
    %v480 = vld [vmem:[#allocation2] sm:$0xff]
    %v481 = vld [vmem:[#allocation2 + $0x8] sm:$0xff]
    %v482 = vld [vmem:[#allocation2 + $0x10] sm:$0xff]
    %v483 = vld [vmem:[#allocation2 + $0x18] sm:$0xff]
    %v484 = vld [vmem:[%s4] sm:$0x1]
    %v486 = vlaneseq
    %v487 = vshrl.u32 %v486, 7
    %v488 = vsub.s32 0, %v487
    %v489 = vrot.slane %v484, %v488
    %v491 = vadd.f32 %v480, %v489
    %v492 = vadd.f32 %v481, %v489
    %v493 = vadd.f32 %v482, %v489
    %v494 = vadd.f32 %v483, %v489
    %v495 = vld [vmem:[%s0] sm:$0xf]
    %v496 = vld [vmem:[%s0 + $0x4] sm:$0xf]
    %v497 = vld [vmem:[%s0 + $0x8] sm:$0xf]
    %v498 = vld [vmem:[%s0 + $0xc] sm:$0xf]
    %v499 = vunpack.c.l.bf16 %v495
    %v500 = vunpack.c.l.bf16 %v496
    %v501 = vunpack.c.l.bf16 %v497
    %v502 = vunpack.c.l.bf16 %v498
    %v503 = vadd.f32 %v491, %v499
    %v504 = vadd.f32 %v492, %v500
    %v505 = vadd.f32 %v493, %v501
    %v506 = vadd.f32 %v494, %v502
    %507 = vadd.xlane.f32.xlu0 %v503
    %v508 = vpop.xlane.xlu0 %507
    %509 = vadd.xlane.f32.xlu0 %v504
    %v510 = vpop.xlane.xlu0 %509
    %511 = vadd.xlane.f32.xlu0 %v505
    %v512 = vpop.xlane.xlu0 %511
    %513 = vadd.xlane.f32.xlu0 %v506
    %v514 = vpop.xlane.xlu0 %513
    %v515 = vrcp.pop 128.0
    %v516 = vmul.f32 %v508, %v515
    %v517 = vmul.f32 %v510, %v515
    %v518 = vmul.f32 %v512, %v515
    %v519 = vmul.f32 %v514, %v515
    %v520 = vsub.f32 %v503, %v516
    %v521 = vsub.f32 %v504, %v517
    %v522 = vsub.f32 %v505, %v518
    %v523 = vsub.f32 %v506, %v519
    %v524 = vmul.f32 %v520, %v520
    %v525 = vmul.f32 %v521, %v521
    %v526 = vmul.f32 %v522, %v522
    %v527 = vmul.f32 %v523, %v523
    %528 = vadd.xlane.f32.xlu0 %v524
    %v529 = vpop.xlane.xlu0 %528
    %530 = vadd.xlane.f32.xlu0 %v525
    %v531 = vpop.xlane.xlu0 %530
    %532 = vadd.xlane.f32.xlu0 %v526
    %v533 = vpop.xlane.xlu0 %532
    %534 = vadd.xlane.f32.xlu0 %v527
    %v535 = vpop.xlane.xlu0 %534
    %v536 = vmul.f32 %v529, %v515
    %v537 = vmul.f32 %v531, %v515
    %v538 = vmul.f32 %v533, %v515
    %v539 = vmul.f32 %v535, %v515
    %v540 = vadd.f32 %v536, 1e-12
    %v541 = vadd.f32 %v537, 1e-12
    %v542 = vadd.f32 %v538, 1e-12
    %v543 = vadd.f32 %v539, 1e-12
    %v544 = vrsqrt.pop %v540
    %v545 = vrsqrt.pop %v541
    %v546 = vrsqrt.pop %v542
    %v547 = vrsqrt.pop %v543
    %v548 = vmul.f32 %v520, %v544
    %v549 = vmul.f32 %v521, %v545
    %v550 = vmul.f32 %v522, %v546
    %v551 = vmul.f32 %v523, %v547
    %v552 = vld [vmem:[%s5] sm:$0x1]
    %v554 = vlaneseq
    %v555 = vshrl.u32 %v554, 7
    %v556 = vsub.s32 0, %v555
    %v557 = vrot.slane %v552, %v556
    %v559 = vmul.f32 %v548, %v557
    %v560 = vmul.f32 %v549, %v557
    %v561 = vmul.f32 %v550, %v557
    %v562 = vmul.f32 %v551, %v557
    %v563 = vld [vmem:[%s6] sm:$0x1]
    %v565 = vlaneseq
    %v566 = vshrl.u32 %v565, 7
    %v567 = vsub.s32 0, %v566
    %v568 = vrot.slane %v563, %v567
    %v570 = vadd.f32 %v559, %v568
    %v571 = vadd.f32 %v560, %v568
    %v572 = vadd.f32 %v561, %v568
    %v573 = vadd.f32 %v562, %v568
    %v574 = vpack.c.bf16 %v571, %v570
    %v575 = vpack.c.bf16 %v573, %v572
    %v578 = vunpack.c.l.b16 %v574
    %v579 = vunpack.c.h.b16 %v574
    %v580 = vunpack.c.l.b16 %v575
    %v581 = vunpack.c.h.b16 %v575
    %v582 = vpack.c.b16 %v578, %v578
    %v583 = vpack.c.b16 %v579, %v579
    %v584 = vpack.c.b16 %v580, %v580
    %v585 = vpack.c.b16 %v581, %v581
    %590 = vst [vmem:[%s7] sm:$0xf] %v582
    %591 = vst [vmem:[%s7 + $0x4] sm:$0xf] %v583
    %592 = vst [vmem:[%s7 + $0x8] sm:$0xf] %v584
    %593 = vst [vmem:[%s7 + $0xc] sm:$0xf] %v585
  $region37: #{combine_bert_forward.14} parent=0 // pred_fallthru
    _
  // Predicated region
  $region38: #{combine_bert_forward.14} parent=0 // pred_check
    _
  $region39: #{combine_bert_forward.14} parent=0 // pred_check_branch
    %595 = sbr.rel (0) target = $region41
  $region40: #{combine_bert_forward.14} parent=0 // pred_region
    _
  $region41: #{combine_bert_forward.14} parent=0 // pred_fallthru
    _
  // Predicated region
  $region42: #{combine_bert_forward.14} parent=0 // pred_check
    _
  $region43: #{combine_bert_forward.14} parent=0 // pred_check_branch
    %597 = sbr.rel (0) target = $region45
  $region44: #{combine_bert_forward.14} parent=0 // pred_region
    _
  $region45: #{combine_bert_forward.14} parent=0 // pred_fallthru
    _

</llo_original>
